<compile_context>
chip_gen: v7x
topology: tpu7x:2x2x1
jax: 0.10.0
libtpu: 0.0.40
codegen_flags: <defaults>
</compile_context>

<pallas_src>
import functools

import jax
import jax.numpy as jnp
from jax import lax
from jax.experimental import pallas as pl
from jax.experimental.pallas import tpu as pltpu

EPS = 1e-5
LANES = 128      # lane (last-dim) tile width
SUBLANES = 8     # sublane (second-minor) tile width

_VMEM_LIMIT_CACHE = [None]


def _round_up(x, m):
    return (x + m - 1) // m * m


def _vmem_limit_bytes():
    # Generation-aware VMEM budget: ~3/4 of physical VMEM (v5e/v6e: 128 MiB ->
    # 96 MiB, v7x: 64 MiB -> 48 MiB); conservative fallback if the query fails.
    if _VMEM_LIMIT_CACHE[0] is None:
        limit = 64 * 1024 * 1024
        try:
            cap = getattr(pltpu.get_tpu_info(), "vmem_capacity_bytes", None)
            if cap:
                limit = int(min(cap * 3 // 4, 100 * 1024 * 1024))
        except Exception:
            pass
        _VMEM_LIMIT_CACHE[0] = limit
    return _VMEM_LIMIT_CACHE[0]


def _compiler_params():
    return pltpu.CompilerParams(
        dimension_semantics=("parallel",),
        vmem_limit_bytes=_vmem_limit_bytes(),
    )


def _pick_b_blk(n, hw, max_rows=1024):
    """Batch block: largest divisor of n with <= max_rows matmul rows,
    preferring a grid >= 2 (even if possible) for v7x megacore."""
    divs = [b for b in range(1, n + 1) if n % b == 0 and b * hw <= max_rows]
    if not divs:
        divs = [1]
    pref = [b for b in divs if n // b >= 2] or divs
    even = [b for b in pref if (n // b) % 2 == 0] or pref
    return max(even)


def _pick_tile_m(m_tot, cap=1024):
    """Row tile for the normalize kernel: a multiple of 8 dividing m_tot, as
    close to 512-1024 rows as possible, preferring an (even) grid >= 2."""
    divs = [t for t in range(SUBLANES, min(cap, m_tot) + 1, SUBLANES)
            if m_tot % t == 0]
    if not divs:
        return m_tot
    pref = [t for t in divs if m_tot // t >= 2] or divs
    even = [t for t in pref if (m_tot // t) % 2 == 0] or pref
    return max(even)


# ---------------------------------------------------------------------------
# Kernel 1: conv1 (3x3, stride) as one K = 9*Cin matmul + BN1 partial stats
# ---------------------------------------------------------------------------
def _conv_stats_kernel(*refs, taps, hout, wout, b_blk, cin_p, n_phase):
    """y = im2col(x) @ W (single folded MXU matmul, f32 accumulation);
    partial BN stats = [sum(y), sum(y^2)] over the block's rows (f32)."""
    phase_refs = refs[:n_phase]
    w_ref = refs[n_phase]
    y_ref = refs[n_phase + 1]
    stat_ref = refs[n_phase + 2]
    lhs_ref = refs[n_phase + 3]          # VMEM scratch (b_blk*hw, 9*cin_p) bf16

    hw = hout * wout
    # Copy the 9 unit-stride tap windows side-by-side along K (im2col in VMEM,
    # sliced from the refs at point of use -- no whole-plane live values).
    for n in range(b_blk):
        for t, (ph, a, b) in enumerate(taps):
            win = phase_refs[ph][n, a:a + hout, b:b + wout, :]
            lhs_ref[n * hw:(n + 1) * hw, t * cin_p:(t + 1) * cin_p] = (
                win.reshape(hw, cin_p))
    acc = jnp.dot(lhs_ref[...], w_ref[...], preferred_element_type=jnp.float32)
    y_ref[...] = acc.astype(y_ref.dtype)                  # bf16 intermediate
    stat_ref[0, 0:1, :] = jnp.sum(acc, axis=0, keepdims=True)
    stat_ref[0, 1:2, :] = jnp.sum(acc * acc, axis=0, keepdims=True)


def conv_stats_pallas(phases, w_folded, hout, wout, taps, b_blk):
    """phases: list of (N, Hp, Wp, cin_p) bf16 stride-phase planes.
    w_folded: (len(taps)*cin_p, cout_p) bf16 (tap-major / Cin-minor).
    Returns y (N*hw, cout_p) bf16 and partial stats (N//b_blk, 2, cout_p) f32."""
    n, hp, wp, cin_p = phases[0].shape
    k_dim, cout_p = w_folded.shape
    assert k_dim == len(taps) * cin_p and cout_p % LANES == 0
    hw = hout * wout
    assert (b_blk * hw) % SUBLANES == 0 and n % b_blk == 0
    nb = n // b_blk
    m_tot = n * hw

    kernel = functools.partial(
        _conv_stats_kernel, taps=taps, hout=hout, wout=wout,
        b_blk=b_blk, cin_p=cin_p, n_phase=len(phases))
    in_specs = [pl.BlockSpec((b_blk, hp, wp, cin_p), lambda i: (i, 0, 0, 0))
                for _ in phases]
    # Folded weights stay VMEM-resident (constant index_map).
    in_specs.append(pl.BlockSpec(w_folded.shape, lambda i: (0, 0)))

    flops = 2 * m_tot * k_dim * cout_p
    bytes_accessed = (len(phases) * n * hp * wp * cin_p * 2
                      + k_dim * cout_p * 2
                      + m_tot * cout_p * 2 + nb * 2 * cout_p * 4)

    return pl.pallas_call(
        kernel,
        grid=(nb,),
        in_specs=in_specs,
        out_specs=(pl.BlockSpec((b_blk * hw, cout_p), lambda i: (i, 0)),
                   pl.BlockSpec((1, 2, cout_p), lambda i: (i, 0, 0))),
        out_shape=(jax.ShapeDtypeStruct((m_tot, cout_p), jnp.bfloat16),
                   jax.ShapeDtypeStruct((nb, 2, cout_p), jnp.float32)),
        scratch_shapes=[pltpu.VMEM((b_blk * hw, k_dim), jnp.bfloat16)],
        compiler_params=_compiler_params(),
        cost_estimate=pl.CostEstimate(flops=int(flops), transcendentals=0,
                                      bytes_accessed=int(bytes_accessed)),
    )(*phases, w_folded)


# ---------------------------------------------------------------------------
# Kernel 2: BN1-apply + ReLU + halo pad (VMEM) + conv2 (K = 9*128 matmul)
#           [+ fused 1x1 downsample conv], each with BN partial stats
# ---------------------------------------------------------------------------
def _bn_relu_conv_kernel(*refs, b_blk, h1, w1, cout_p, cin_p, has_down):
    y1_ref, sc1_ref, sh1_ref, w2_ref = refs[:4]
    if has_down:
        xs_ref, wd_ref = refs[4:6]
        y2_ref, st2_ref, res_ref, std_ref, pad_ref, lhs_ref = refs[6:]
    else:
        y2_ref, st2_ref, pad_ref, lhs_ref = refs[4:]

    hw = h1 * w1
    # BN1 scale/shift + ReLU at the 128-lane padded width (padded channels have
    # scale = shift = 0, so they stay exactly zero).
    act = jnp.maximum(
        y1_ref[...].astype(jnp.float32) * sc1_ref[...] + sh1_ref[...], 0.0)
    act = act.reshape(b_blk, h1, w1, cout_p).astype(pad_ref.dtype)

    # Spatial halo pad lives in VMEM -- no extra HBM pass for an XLA pad.
    pad_ref[...] = jnp.zeros_like(pad_ref)
    pad_ref[:, 1:1 + h1, 1:1 + w1, :] = act

    # im2col: 9 unit-stride windows side by side along K -> one MXU matmul
    # with K = 9 * cout_p (1152 for 128-lane channels).
    for n in range(b_blk):
        for t in range(9):
            ki, kj = t // 3, t % 3
            win = pad_ref[n, ki:ki + h1, kj:kj + w1, :]
            lhs_ref[n * hw:(n + 1) * hw, t * cout_p:(t + 1) * cout_p] = (
                win.reshape(hw, cout_p))
    acc = jnp.dot(lhs_ref[...], w2_ref[...], preferred_element_type=jnp.float32)
    y2_ref[...] = acc.astype(y2_ref.dtype)
    st2_ref[0, 0:1, :] = jnp.sum(acc, axis=0, keepdims=True)
    st2_ref[0, 1:2, :] = jnp.sum(acc * acc, axis=0, keepdims=True)

    if has_down:
        # Fused 1x1/stride downsample conv on the stride-sampled input tile.
        xs = xs_ref[...].reshape(b_blk * hw, cin_p)
        accd = jnp.dot(xs, wd_ref[...], preferred_element_type=jnp.float32)
        res_ref[...] = accd.astype(res_ref.dtype)
        std_ref[0, 0:1, :] = jnp.sum(accd, axis=0, keepdims=True)
        std_ref[0, 1:2, :] = jnp.sum(accd * accd, axis=0, keepdims=True)


def bn_relu_conv_pallas(y1, sc1, sh1, w2_folded, n, h1, w1, b_blk,
                        x_sub=None, wd_folded=None):
    m_tot, cout_p = y1.shape
    hw = h1 * w1
    assert m_tot == n * hw and n % b_blk == 0
    has_down = x_sub is not None
    nb = n // b_blk
    cin_p = x_sub.shape[-1] if has_down else 0

    row_spec = pl.BlockSpec((b_blk * hw, cout_p), lambda i: (i, 0))
    vec_spec = pl.BlockSpec((1, cout_p), lambda i: (0, 0))
    stat_spec = pl.BlockSpec((1, 2, cout_p), lambda i: (i, 0, 0))

    operands = [y1, sc1.reshape(1, cout_p).astype(jnp.float32),
                sh1.reshape(1, cout_p).astype(jnp.float32), w2_folded]
    in_specs = [row_spec, vec_spec, vec_spec,
                pl.BlockSpec(w2_folded.shape, lambda i: (0, 0))]
    out_specs = [row_spec, stat_spec]
    out_shape = [jax.ShapeDtypeStruct((m_tot, cout_p), jnp.bfloat16),
                 jax.ShapeDtypeStruct((nb, 2, cout_p), jnp.float32)]
    flops = 2 * m_tot * 9 * cout_p * cout_p
    bytes_accessed = (2 * m_tot * cout_p * 2 + 2 * cout_p * 4
                      + 9 * cout_p * cout_p * 2 + nb * 2 * cout_p * 4)
    if has_down:
        operands += [x_sub, wd_folded]
        in_specs += [pl.BlockSpec((b_blk, h1, w1, cin_p),
                                  lambda i: (i, 0, 0, 0)),
                     pl.BlockSpec(wd_folded.shape, lambda i: (0, 0))]
        out_specs += [row_spec, stat_spec]
        out_shape += [jax.ShapeDtypeStruct((m_tot, cout_p), jnp.bfloat16),
                      jax.ShapeDtypeStruct((nb, 2, cout_p), jnp.float32)]
        flops += 2 * m_tot * cin_p * cout_p
        bytes_accessed += (m_tot * cin_p * 2 + cin_p * cout_p * 2
                           + m_tot * cout_p * 2 + nb * 2 * cout_p * 4)

    kernel = functools.partial(_bn_relu_conv_kernel, b_blk=b_blk, h1=h1, w1=w1,
                               cout_p=cout_p, cin_p=cin_p, has_down=has_down)
    scratch = [pltpu.VMEM((b_blk, h1 + 2, w1 + 2, cout_p), jnp.bfloat16),
               pltpu.VMEM((b_blk * hw, 9 * cout_p), jnp.bfloat16)]
    # NOTE: the VMEM-resident weight / scale blocks could be single-buffered
    # (pipeline_mode=pl.Buffered(1)) to reclaim headroom on v7x; left at the
    # default double-buffering here since they are tiny at these shapes.
    return pl.pallas_call(
        kernel,
        grid=(nb,),
        in_specs=in_specs,
        out_specs=tuple(out_specs),
        out_shape=tuple(out_shape),
        scratch_shapes=scratch,
        compiler_params=_compiler_params(),
        cost_estimate=pl.CostEstimate(flops=int(flops), transcendentals=0,
                                      bytes_accessed=int(bytes_accessed)),
    )(*operands)


# ---------------------------------------------------------------------------
# Kernel 3: BN2 apply + folded residual-BN + add + final ReLU (row tiled)
# ---------------------------------------------------------------------------
def _bn_add_relu_kernel(y_ref, sc_ref, sh_ref, r_ref, rsc_ref, rsh_ref, o_ref):
    out = y_ref[...].astype(jnp.float32) * sc_ref[...] + sh_ref[...]
    out = out + (r_ref[...].astype(jnp.float32) * rsc_ref[...] + rsh_ref[...])
    o_ref[...] = jnp.maximum(out, 0.0).astype(o_ref.dtype)


def bn_add_relu_pallas(y, scale, shift, res, res_scale, res_shift,
                       out_dtype=jnp.float32):
    m_tot, cp = y.shape
    tile_m = _pick_tile_m(m_tot)
    row_spec = pl.BlockSpec((tile_m, cp), lambda i: (i, 0))
    vec_spec = pl.BlockSpec((1, cp), lambda i: (0, 0))
    operands = [y, scale.reshape(1, cp).astype(jnp.float32),
                shift.reshape(1, cp).astype(jnp.float32),
                res, res_scale.reshape(1, cp).astype(jnp.float32),
                res_shift.reshape(1, cp).astype(jnp.float32)]
    in_specs = [row_spec, vec_spec, vec_spec, row_spec, vec_spec, vec_spec]
    bytes_accessed = (2 * m_tot * cp * 2 + 4 * cp * 4
                      + m_tot * cp * jnp.dtype(out_dtype).itemsize)
    return pl.pallas_call(
        _bn_add_relu_kernel,
        grid=(m_tot // tile_m,),
        in_specs=in_specs,
        out_specs=row_spec,
        out_shape=jax.ShapeDtypeStruct((m_tot, cp), out_dtype),
        compiler_params=_compiler_params(),
        cost_estimate=pl.CostEstimate(flops=int(6 * m_tot * cp),
                                      transcendentals=0,
                                      bytes_accessed=int(bytes_accessed)),
    )(*operands)


# ---------------------------------------------------------------------------
# Plain-JAX glue: layout prep, weight folding, tiny per-channel BN reductions
# ---------------------------------------------------------------------------
def _phase_decompose(x_nhwc, stride, cin_p):
    """3x3 / pad=1 conv prep: zero-pad border + channels, split into
    stride*stride phase planes so the kernel only needs unit-stride windows."""
    N, H, W, C = x_nhwc.shape
    hout = (H + 2 - 3) // stride + 1
    wout = (W + 2 - 3) // stride + 1
    xp = jnp.pad(x_nhwc, ((0, 0), (1, 1), (1, 1), (0, cin_p - C)))
    xp = xp.astype(jnp.bfloat16)
    if stride == 1:
        phases = [xp]
    else:
        # Functional limitation vs. the reference conv: (H+2), (W+2) must be
        # divisible by stride so all phase planes have equal shape.
        assert (H + 2) % stride == 0 and (W + 2) % stride == 0, (
            "strided conv path requires (H+2), (W+2) divisible by stride")
        phases = [xp[:, p::stride, q::stride, :]
                  for p in range(stride) for q in range(stride)]
    taps = [((ki % stride) * stride + (kj % stride), ki // stride, kj // stride)
            for ki in range(3) for kj in range(3)]
    return phases, taps, (hout, wout)


def _fold_conv3x3_weight(w_oihw, cin_p, cout_p):
    """(Cout, Cin, 3, 3) -> (9*cin_p, cout_p) bf16, tap-major / Cin-minor."""
    cout, cin = w_oihw.shape[:2]
    w = jnp.transpose(w_oihw, (2, 3, 1, 0)).reshape(9, cin, cout)
    w = jnp.pad(w, ((0, 0), (0, cin_p - cin), (0, cout_p - cout)))
    return w.reshape(9 * cin_p, cout_p).astype(jnp.bfloat16)


def _fold_conv1x1_weight(w_oihw, cin_p, cout_p):
    """(Cout, Cin, 1, 1) -> (cin_p, cout_p) bf16."""
    cout, cin = w_oihw.shape[:2]
    w = jnp.transpose(w_oihw[:, :, 0, 0], (1, 0))
    return jnp.pad(w, ((0, cin_p - cin), (0, cout_p - cout))).astype(jnp.bfloat16)


def _bn_scale_shift(stats, gamma, beta, n_rows):
    """Fold training-mode batch stats + affine params into y*scale + shift.
    NOTE: var = E[y^2] - E[y]^2 in f32 (stats come from the f32 accumulator);
    adequate at these magnitudes, a shifted formulation would be safer for
    very large activations."""
    total = jnp.sum(stats, axis=0)                            # (2, C)
    mean = total[0] / n_rows
    var = jnp.maximum(total[1] / n_rows - mean * mean, 0.0)   # biased variance
    scale = gamma * lax.rsqrt(var + EPS)
    shift = beta - mean * scale
    return scale, shift


def _pad_vec(v, n):
    return jnp.pad(v.astype(jnp.float32), (0, n - v.shape[0]))


def init_basic_block_params(key, inplanes, planes, stride, n_ops=4):
    """Deterministic synthetic parameters, conv weights in PyTorch OIHW layout."""
    ks = jax.random.split(key, 8)
    s1 = 1.0 / jnp.sqrt(9.0 * inplanes)
    s2 = 1.0 / jnp.sqrt(9.0 * planes)
    params = {
        "w1": jax.random.normal(ks[0], (planes, inplanes, 3, 3), jnp.float32) * s1,
        "g1": 1.0 + 0.1 * jax.random.normal(ks[1], (planes,), jnp.float32),
        "b1": 0.1 * jax.random.normal(ks[2], (planes,), jnp.float32),
        "w2": jax.random.normal(ks[3], (planes, planes, 3, 3), jnp.float32) * s2,
        "g2": 1.0 + 0.1 * jax.random.normal(ks[4], (planes,), jnp.float32),
        "b2": 0.1 * jax.random.normal(ks[5], (planes,), jnp.float32),
        "alpha": jax.random.normal(ks[6], (n_ops,), jnp.float32),
    }
    if inplanes != planes or stride != 1:
        kd = jax.random.split(ks[7], 3)
        params["wd"] = (jax.random.normal(kd[0], (planes, inplanes, 1, 1),
                                          jnp.float32)
                        / jnp.sqrt(float(inplanes)))
        params["gd"] = 1.0 + 0.1 * jax.random.normal(kd[1], (planes,), jnp.float32)
        params["bd"] = 0.1 * jax.random.normal(kd[2], (planes,), jnp.float32)
    return params


def basic_block_forward(x_nchw, params, *, stride):
    x = jnp.transpose(x_nchw, (0, 2, 3, 1)).astype(jnp.float32)   # NCHW -> NHWC
    N, H, W, cin = x.shape
    planes = params["g1"].shape[0]
    cout_p = _round_up(planes, LANES)   # 128-lane channel width, end to end
    cin_p = _round_up(cin, SUBLANES)    # conv1 input stays narrow: its K is
                                        # folded to 9*cin_p; padding the input
                                        # to 128 lanes would only inflate
                                        # conv1's HBM read.

    # ---- conv1 (3x3, stride) as one K = 9*cin_p matmul + BN1 partial stats --
    phases1, taps1, (h1, w1) = _phase_decompose(x, stride, cin_p)
    hw = h1 * w1
    m1 = N * hw
    b_blk = _pick_b_blk(N, hw)
    w1f = _fold_conv3x3_weight(params["w1"], cin_p, cout_p)
    y1, st1 = conv_stats_pallas(phases1, w1f, h1, w1, taps1, b_blk)
    sc1, sh1 = _bn_scale_shift(st1, _pad_vec(params["g1"], cout_p),
                               _pad_vec(params["b1"], cout_p), m1)

    # ---- fused BN1+ReLU+halo-pad+conv2 (+ fused 1x1 downsample) + stats -----
    w2f = _fold_conv3x3_weight(params["w2"], cout_p, cout_p)
    has_down = "wd" in params
    if has_down:
        x_sub = x[:, ::stride, ::stride, :]
        x_sub = jnp.pad(x_sub, ((0, 0), (0, 0), (0, 0), (0, cin_p - cin)))
        x_sub = x_sub.astype(jnp.bfloat16)
        wdf = _fold_conv1x1_weight(params["wd"], cin_p, cout_p)
        y2, st2, res, std = bn_relu_conv_pallas(y1, sc1, sh1, w2f, N, h1, w1,
                                                b_blk, x_sub=x_sub,
                                                wd_folded=wdf)
        res_sc, res_sh = _bn_scale_shift(std, _pad_vec(params["gd"], cout_p),
                                         _pad_vec(params["bd"], cout_p), m1)
    else:
        y2, st2 = bn_relu_conv_pallas(y1, sc1, sh1, w2f, N, h1, w1, b_blk)
        # Identity residual: bf16, channel-padded to the 128-lane width in the
        # wrapper (cheap here; an in-kernel pad would avoid the read inflation
        # when planes << 128).
        res = jnp.pad(x, ((0, 0), (0, 0), (0, 0), (0, cout_p - cin))
                      ).astype(jnp.bfloat16).reshape(m1, cout_p)
        res_sc = jnp.ones((cout_p,), jnp.float32)
        res_sh = jnp.zeros((cout_p,), jnp.float32)

    sc2, sh2 = _bn_scale_shift(st2, _pad_vec(params["g2"], cout_p),
                               _pad_vec(params["b2"], cout_p), m1)

    # Architecture-attention mixing weights (reference: softmax over alpha).
    weights = jax.nn.softmax(params["alpha"], axis=-1)
    # TODO(synk): a_Cell is not defined in the reference source; the mixed
    # attention op is treated as identity (weights computed but unused).
    del weights

    # ---- BN2 apply + folded residual-BN + add + final ReLU ------------------
    out = bn_add_relu_pallas(y2, sc2, sh2, res, res_sc, res_sh,
                             out_dtype=jnp.float32)
    out = out[:, :planes].reshape(N, h1, w1, planes)
    return jnp.transpose(out, (0, 3, 1, 2))                       # NHWC -> NCHW


# ---------------------------------------------------------------------------
# Pure-JAX reference (f32) used for a tolerance check of the Pallas path
# ---------------------------------------------------------------------------
def _ref_bn_train(y_nchw, gamma, beta):
    mean = jnp.mean(y_nchw, axis=(0, 2, 3), keepdims=True)
    var = jnp.mean((y_nchw - mean) ** 2, axis=(0, 2, 3), keepdims=True)
    return (gamma.reshape(1, -1, 1, 1) * (y_nchw - mean)
            * lax.rsqrt(var + EPS) + beta.reshape(1, -1, 1, 1))


def reference_forward(x_nchw, params, stride):
    dn = ("NCHW", "OIHW", "NCHW")
    prec = lax.Precision.HIGHEST
    y1 = lax.conv_general_dilated(x_nchw, params["w1"], (stride, stride),
                                  ((1, 1), (1, 1)), dimension_numbers=dn,
                                  precision=prec)
    a1 = jnp.maximum(_ref_bn_train(y1, params["g1"], params["b1"]), 0.0)
    y2 = lax.conv_general_dilated(a1, params["w2"], (1, 1), ((1, 1), (1, 1)),
                                  dimension_numbers=dn, precision=prec)
    o = _ref_bn_train(y2, params["g2"], params["b2"])
    if "wd" in params:
        r = lax.conv_general_dilated(x_nchw, params["wd"], (stride, stride),
                                     ((0, 0), (0, 0)), dimension_numbers=dn,
                                     precision=prec)
        r = _ref_bn_train(r, params["gd"], params["bd"])
    else:
        r = x_nchw
    # a_Cell attention treated as identity (matching the kernel path).
    return jnp.maximum(o + r, 0.0)


if __name__ == "__main__":
    root = jax.random.PRNGKey(0)

    def run_case(case_key, n, cin, planes, stride, hw_size):
        kx, kp = jax.random.split(case_key)
        x = jax.random.normal(kx, (n, cin, hw_size, hw_size), jnp.float32)
        params = init_basic_block_params(kp, cin, planes, stride)
        fwd = jax.jit(functools.partial(basic_block_forward, stride=stride))
        out = jax.block_until_ready(fwd(x, params))
        assert out.shape == (n, planes, hw_size // stride, hw_size // stride)
        assert bool(jnp.all(jnp.isfinite(out)))
        assert bool(jnp.all(out >= 0.0))            # final ReLU
        ref = reference_forward(x, params, stride)
        err = float(jnp.max(jnp.abs(out - ref)))
        assert err < 0.25, f"max |pallas - reference| too large: {err}"

    # Downsample path: inplanes != planes, stride 2.
    run_case(jax.random.fold_in(root, 0), n=2, cin=4, planes=8, stride=2,
             hw_size=16)
    # Identity-residual path: inplanes == planes, stride 1.
    run_case(jax.random.fold_in(root, 1), n=2, cin=8, planes=8, stride=1,
             hw_size=8)
    print("KERNEL_OK")
</pallas_src>

<mosaic_0001>
module attributes {stable_mosaic.version = 11 : i64} {
  func.func @_conv_stats_kernel(%arg0: i32, %arg1: memref<1x9x9x8xbf16, #tpu.memory_space<vmem>>, %arg2: memref<1x9x9x8xbf16, #tpu.memory_space<vmem>>, %arg3: memref<1x9x9x8xbf16, #tpu.memory_space<vmem>>, %arg4: memref<1x9x9x8xbf16, #tpu.memory_space<vmem>>, %arg5: memref<72x128xbf16, #tpu.memory_space<vmem>>, %arg6: memref<64x128xbf16, #tpu.memory_space<vmem>>, %arg7: memref<1x2x128xf32, #tpu.memory_space<vmem>>, %arg8: memref<64x72xbf16, #tpu.memory_space<vmem>>) attributes {dimension_semantics = [#tpu.dimension_semantics<parallel>], iteration_bounds = array<i64: 2>, scalar_prefetch = 0 : i64, scratch_operands = 1 : i64, tpu.core_type = #tpu.core_type<tc>, window_params = [{transform_indices = @transform_0, window_bounds = array<i64: 1, 9, 9, 8>}, {transform_indices = @transform_1, window_bounds = array<i64: 1, 9, 9, 8>}, {transform_indices = @transform_2, window_bounds = array<i64: 1, 9, 9, 8>}, {transform_indices = @transform_3, window_bounds = array<i64: 1, 9, 9, 8>}, {pipeline_mode = #tpu.pipeline_mode<synchronous>, transform_indices = @transform_4, window_bounds = array<i64: 72, 128>}, {transform_indices = @transform_5, window_bounds = array<i64: 64, 128>}, {transform_indices = @transform_6, window_bounds = array<i64: 1, 2, 128>}]} {
    %c0 = arith.constant 0 : index
    %c0_0 = arith.constant 0 : index
    %c0_1 = arith.constant 0 : index
    %c0_2 = arith.constant 0 : index
    %0 = vector.load %arg1[%c0, %c0_0, %c0_1, %c0_2] : memref<1x9x9x8xbf16, #tpu.memory_space<vmem>>, vector<1x8x8x8xbf16>
    %1 = vector.shape_cast %0 : vector<1x8x8x8xbf16> to vector<8x8x8xbf16>
    %2 = vector.shape_cast %1 : vector<8x8x8xbf16> to vector<64x8xbf16>
    %c0_3 = arith.constant 0 : index
    %c0_4 = arith.constant 0 : index
    %3 = vector.load %arg8[%c0_3, %c0_4] : memref<64x72xbf16, #tpu.memory_space<vmem>>, vector<64x8xbf16>
    tpu.vector_store %arg8[%c0_3, %c0_4], %2 {strides = array<i32>} : memref<64x72xbf16, #tpu.memory_space<vmem>>, vector<64x8xbf16>,
    %c0_5 = arith.constant 0 : index
    %c0_6 = arith.constant 0 : index
    %c0_7 = arith.constant 0 : index
    %c0_8 = arith.constant 0 : index
    %4 = vector.load %arg2[%c0_5, %c0_6, %c0_7, %c0_8] : memref<1x9x9x8xbf16, #tpu.memory_space<vmem>>, vector<1x8x8x8xbf16>
    %5 = vector.shape_cast %4 : vector<1x8x8x8xbf16> to vector<8x8x8xbf16>
    %6 = vector.shape_cast %5 : vector<8x8x8xbf16> to vector<64x8xbf16>
    %c0_9 = arith.constant 0 : index
    %c8 = arith.constant 8 : index
    %7 = vector.load %arg8[%c0_9, %c8] : memref<64x72xbf16, #tpu.memory_space<vmem>>, vector<64x8xbf16>
    tpu.vector_store %arg8[%c0_9, %c8], %6 {strides = array<i32>} : memref<64x72xbf16, #tpu.memory_space<vmem>>, vector<64x8xbf16>,
    %c0_10 = arith.constant 0 : index
    %c0_11 = arith.constant 0 : index
    %c1 = arith.constant 1 : index
    %c0_12 = arith.constant 0 : index
    %8 = vector.load %arg1[%c0_10, %c0_11, %c1, %c0_12] : memref<1x9x9x8xbf16, #tpu.memory_space<vmem>>, vector<1x8x8x8xbf16>
    %9 = vector.shape_cast %8 : vector<1x8x8x8xbf16> to vector<8x8x8xbf16>
    %10 = vector.shape_cast %9 : vector<8x8x8xbf16> to vector<64x8xbf16>
    %c0_13 = arith.constant 0 : index
    %c16 = arith.constant 16 : index
    %11 = vector.load %arg8[%c0_13, %c16] : memref<64x72xbf16, #tpu.memory_space<vmem>>, vector<64x8xbf16>
    tpu.vector_store %arg8[%c0_13, %c16], %10 {strides = array<i32>} : memref<64x72xbf16, #tpu.memory_space<vmem>>, vector<64x8xbf16>,
    %c0_14 = arith.constant 0 : index
    %c0_15 = arith.constant 0 : index
    %c0_16 = arith.constant 0 : index
    %c0_17 = arith.constant 0 : index
    %12 = vector.load %arg3[%c0_14, %c0_15, %c0_16, %c0_17] : memref<1x9x9x8xbf16, #tpu.memory_space<vmem>>, vector<1x8x8x8xbf16>
    %13 = vector.shape_cast %12 : vector<1x8x8x8xbf16> to vector<8x8x8xbf16>
    %14 = vector.shape_cast %13 : vector<8x8x8xbf16> to vector<64x8xbf16>
    %c0_18 = arith.constant 0 : index
    %c24 = arith.constant 24 : index
    %15 = vector.load %arg8[%c0_18, %c24] : memref<64x72xbf16, #tpu.memory_space<vmem>>, vector<64x8xbf16>
    tpu.vector_store %arg8[%c0_18, %c24], %14 {strides = array<i32>} : memref<64x72xbf16, #tpu.memory_space<vmem>>, vector<64x8xbf16>,
    %c0_19 = arith.constant 0 : index
    %c0_20 = arith.constant 0 : index
    %c0_21 = arith.constant 0 : index
    %c0_22 = arith.constant 0 : index
    %16 = vector.load %arg4[%c0_19, %c0_20, %c0_21, %c0_22] : memref<1x9x9x8xbf16, #tpu.memory_space<vmem>>, vector<1x8x8x8xbf16>
    %17 = vector.shape_cast %16 : vector<1x8x8x8xbf16> to vector<8x8x8xbf16>
    %18 = vector.shape_cast %17 : vector<8x8x8xbf16> to vector<64x8xbf16>
    %c0_23 = arith.constant 0 : index
    %c32 = arith.constant 32 : index
    %19 = vector.load %arg8[%c0_23, %c32] : memref<64x72xbf16, #tpu.memory_space<vmem>>, vector<64x8xbf16>
    tpu.vector_store %arg8[%c0_23, %c32], %18 {strides = array<i32>} : memref<64x72xbf16, #tpu.memory_space<vmem>>, vector<64x8xbf16>,
    %c0_24 = arith.constant 0 : index
    %c0_25 = arith.constant 0 : index
    %c1_26 = arith.constant 1 : index
    %c0_27 = arith.constant 0 : index
    %20 = vector.load %arg3[%c0_24, %c0_25, %c1_26, %c0_27] : memref<1x9x9x8xbf16, #tpu.memory_space<vmem>>, vector<1x8x8x8xbf16>
    %21 = vector.shape_cast %20 : vector<1x8x8x8xbf16> to vector<8x8x8xbf16>
    %22 = vector.shape_cast %21 : vector<8x8x8xbf16> to vector<64x8xbf16>
    %c0_28 = arith.constant 0 : index
    %c40 = arith.constant 40 : index
    %23 = vector.load %arg8[%c0_28, %c40] : memref<64x72xbf16, #tpu.memory_space<vmem>>, vector<64x8xbf16>
    tpu.vector_store %arg8[%c0_28, %c40], %22 {strides = array<i32>} : memref<64x72xbf16, #tpu.memory_space<vmem>>, vector<64x8xbf16>,
    %c0_29 = arith.constant 0 : index
    %c1_30 = arith.constant 1 : index
    %c0_31 = arith.constant 0 : index
    %c0_32 = arith.constant 0 : index
    %24 = vector.load %arg1[%c0_29, %c1_30, %c0_31, %c0_32] : memref<1x9x9x8xbf16, #tpu.memory_space<vmem>>, vector<1x8x8x8xbf16>
    %25 = vector.shape_cast %24 : vector<1x8x8x8xbf16> to vector<8x8x8xbf16>
    %26 = vector.shape_cast %25 : vector<8x8x8xbf16> to vector<64x8xbf16>
    %c0_33 = arith.constant 0 : index
    %c48 = arith.constant 48 : index
    %27 = vector.load %arg8[%c0_33, %c48] : memref<64x72xbf16, #tpu.memory_space<vmem>>, vector<64x8xbf16>
    tpu.vector_store %arg8[%c0_33, %c48], %26 {strides = array<i32>} : memref<64x72xbf16, #tpu.memory_space<vmem>>, vector<64x8xbf16>,
    %c0_34 = arith.constant 0 : index
    %c1_35 = arith.constant 1 : index
    %c0_36 = arith.constant 0 : index
    %c0_37 = arith.constant 0 : index
    %28 = vector.load %arg2[%c0_34, %c1_35, %c0_36, %c0_37] : memref<1x9x9x8xbf16, #tpu.memory_space<vmem>>, vector<1x8x8x8xbf16>
    %29 = vector.shape_cast %28 : vector<1x8x8x8xbf16> to vector<8x8x8xbf16>
    %30 = vector.shape_cast %29 : vector<8x8x8xbf16> to vector<64x8xbf16>
    %c0_38 = arith.constant 0 : index
    %c56 = arith.constant 56 : index
    %31 = vector.load %arg8[%c0_38, %c56] : memref<64x72xbf16, #tpu.memory_space<vmem>>, vector<64x8xbf16>
    tpu.vector_store %arg8[%c0_38, %c56], %30 {strides = array<i32>} : memref<64x72xbf16, #tpu.memory_space<vmem>>, vector<64x8xbf16>,
    %c0_39 = arith.constant 0 : index
    %c1_40 = arith.constant 1 : index
    %c1_41 = arith.constant 1 : index
    %c0_42 = arith.constant 0 : index
    %32 = vector.load %arg1[%c0_39, %c1_40, %c1_41, %c0_42] : memref<1x9x9x8xbf16, #tpu.memory_space<vmem>>, vector<1x8x8x8xbf16>
    %33 = vector.shape_cast %32 : vector<1x8x8x8xbf16> to vector<8x8x8xbf16>
    %34 = vector.shape_cast %33 : vector<8x8x8xbf16> to vector<64x8xbf16>
    %c0_43 = arith.constant 0 : index
    %c64 = arith.constant 64 : index
    %35 = vector.load %arg8[%c0_43, %c64] : memref<64x72xbf16, #tpu.memory_space<vmem>>, vector<64x8xbf16>
    tpu.vector_store %arg8[%c0_43, %c64], %34 {strides = array<i32>} : memref<64x72xbf16, #tpu.memory_space<vmem>>, vector<64x8xbf16>,
    %c0_44 = arith.constant 0 : index
    %c0_45 = arith.constant 0 : index
    %36 = vector.load %arg8[%c0_44, %c0_45] : memref<64x72xbf16, #tpu.memory_space<vmem>>, vector<64x72xbf16>
    %c0_46 = arith.constant 0 : index
    %c0_47 = arith.constant 0 : index
    %37 = vector.load %arg5[%c0_46, %c0_47] : memref<72x128xbf16, #tpu.memory_space<vmem>>, vector<72x128xbf16>
    %cst = arith.constant dense<0.000000e+00> : vector<64x128xf32>
    %38 = tpu.matmul %36, %37, %cst {dimension_numbers = #tpu.dot_dimension_numbers<[1], [0], [0], [1], [0, 0, 1, 1], [], []>} : vector<64x72xbf16>, vector<72x128xbf16>, vector<64x128xf32> -> vector<64x128xf32>
    %39 = arith.truncf %38 : vector<64x128xf32> to vector<64x128xbf16>
    %c0_48 = arith.constant 0 : index
    %c0_49 = arith.constant 0 : index
    %40 = vector.load %arg6[%c0_48, %c0_49] : memref<64x128xbf16, #tpu.memory_space<vmem>>, vector<64x128xbf16>
    tpu.vector_store %arg6[%c0_48, %c0_49], %39 {strides = array<i32>} : memref<64x128xbf16, #tpu.memory_space<vmem>>, vector<64x128xbf16>,
    %cst_50 = arith.constant dense<0.000000e+00> : vector<128xf32>
    %41 = vector.multi_reduction <add>, %38, %cst_50 [0] : vector<64x128xf32> to vector<128xf32>
    %42 = vector.shape_cast %41 : vector<128xf32> to vector<1x128xf32>
    %c0_51 = arith.constant 0 : index
    %c0_52 = arith.constant 0 : index
    %c0_53 = arith.constant 0 : index
    %43 = vector.load %arg7[%c0_51, %c0_52, %c0_53] : memref<1x2x128xf32, #tpu.memory_space<vmem>>, vector<1x1x128xf32>
    %44 = vector.shape_cast %43 : vector<1x1x128xf32> to vector<1x128xf32>
    %45 = vector.shape_cast %42 : vector<1x128xf32> to vector<1x1x128xf32>
    tpu.vector_store %arg7[%c0_51, %c0_52, %c0_53], %45 {strides = array<i32>} : memref<1x2x128xf32, #tpu.memory_space<vmem>>, vector<1x1x128xf32>,
    %46 = arith.mulf %38, %38 : vector<64x128xf32>
    %cst_54 = arith.constant dense<0.000000e+00> : vector<128xf32>
    %47 = vector.multi_reduction <add>, %46, %cst_54 [0] : vector<64x128xf32> to vector<128xf32>
    %48 = vector.shape_cast %47 : vector<128xf32> to vector<1x128xf32>
    %c0_55 = arith.constant 0 : index
    %c1_56 = arith.constant 1 : index
    %c0_57 = arith.constant 0 : index
    %49 = vector.load %arg7[%c0_55, %c1_56, %c0_57] : memref<1x2x128xf32, #tpu.memory_space<vmem>>, vector<1x1x128xf32>
    %50 = vector.shape_cast %49 : vector<1x1x128xf32> to vector<1x128xf32>
    %51 = vector.shape_cast %48 : vector<1x128xf32> to vector<1x1x128xf32>
    tpu.vector_store %arg7[%c0_55, %c1_56, %c0_57], %51 {strides = array<i32>} : memref<1x2x128xf32, #tpu.memory_space<vmem>>, vector<1x1x128xf32>,
    return
  }
  func.func @transform_0(%arg0: i32) -> (i32, i32, i32, i32) {
    %c0_i32 = arith.constant 0 : i32
    %c0_i32_0 = arith.constant 0 : i32
    %c0_i32_1 = arith.constant 0 : i32
    %c0_i32_2 = arith.constant 0 : i32
    return %arg0, %c0_i32, %c0_i32_0, %c0_i32_1 : i32, i32, i32, i32
  }
  func.func @transform_1(%arg0: i32) -> (i32, i32, i32, i32) {
    %c0_i32 = arith.constant 0 : i32
    %c0_i32_0 = arith.constant 0 : i32
    %c0_i32_1 = arith.constant 0 : i32
    %c0_i32_2 = arith.constant 0 : i32
    return %arg0, %c0_i32, %c0_i32_0, %c0_i32_1 : i32, i32, i32, i32
  }
  func.func @transform_2(%arg0: i32) -> (i32, i32, i32, i32) {
    %c0_i32 = arith.constant 0 : i32
    %c0_i32_0 = arith.constant 0 : i32
    %c0_i32_1 = arith.constant 0 : i32
    %c0_i32_2 = arith.constant 0 : i32
    return %arg0, %c0_i32, %c0_i32_0, %c0_i32_1 : i32, i32, i32, i32
  }
  func.func @transform_3(%arg0: i32) -> (i32, i32, i32, i32) {
    %c0_i32 = arith.constant 0 : i32
    %c0_i32_0 = arith.constant 0 : i32
    %c0_i32_1 = arith.constant 0 : i32
    %c0_i32_2 = arith.constant 0 : i32
    return %arg0, %c0_i32, %c0_i32_0, %c0_i32_1 : i32, i32, i32, i32
  }
  func.func @transform_4(%arg0: i32) -> (i32, i32) {
    %c0_i32 = arith.constant 0 : i32
    %c0_i32_0 = arith.constant 0 : i32
    %c0_i32_1 = arith.constant 0 : i32
    return %c0_i32, %c0_i32_0 : i32, i32
  }
  func.func @transform_5(%arg0: i32) -> (i32, i32) {
    %c0_i32 = arith.constant 0 : i32
    %c0_i32_0 = arith.constant 0 : i32
    return %arg0, %c0_i32 : i32, i32
  }
  func.func @transform_6(%arg0: i32) -> (i32, i32, i32) {
    %c0_i32 = arith.constant 0 : i32
    %c0_i32_0 = arith.constant 0 : i32
    %c0_i32_1 = arith.constant 0 : i32
    return %arg0, %c0_i32, %c0_i32_0 : i32, i32, i32
  }
}

module attributes {stable_mosaic.version = 11 : i64} {
  func.func @_bn_relu_conv_kernel(%arg0: i32, %arg1: memref<64x128xbf16, #tpu.memory_space<vmem>>, %arg2: memref<1x128xf32, #tpu.memory_space<vmem>>, %arg3: memref<1x128xf32, #tpu.memory_space<vmem>>, %arg4: memref<1152x128xbf16, #tpu.memory_space<vmem>>, %arg5: memref<1x8x8x8xbf16, #tpu.memory_space<vmem>>, %arg6: memref<8x128xbf16, #tpu.memory_space<vmem>>, %arg7: memref<64x128xbf16, #tpu.memory_space<vmem>>, %arg8: memref<1x2x128xf32, #tpu.memory_space<vmem>>, %arg9: memref<64x128xbf16, #tpu.memory_space<vmem>>, %arg10: memref<1x2x128xf32, #tpu.memory_space<vmem>>, %arg11: memref<1x10x10x128xbf16, #tpu.memory_space<vmem>>, %arg12: memref<64x1152xbf16, #tpu.memory_space<vmem>>) attributes {dimension_semantics = [#tpu.dimension_semantics<parallel>], iteration_bounds = array<i64: 2>, scalar_prefetch = 0 : i64, scratch_operands = 2 : i64, tpu.core_type = #tpu.core_type<tc>, window_params = [{transform_indices = @transform_0, window_bounds = array<i64: 64, 128>}, {pipeline_mode = #tpu.pipeline_mode<synchronous>, transform_indices = @transform_1, window_bounds = array<i64: 1, 128>}, {pipeline_mode = #tpu.pipeline_mode<synchronous>, transform_indices = @transform_2, window_bounds = array<i64: 1, 128>}, {pipeline_mode = #tpu.pipeline_mode<synchronous>, transform_indices = @transform_3, window_bounds = array<i64: 1152, 128>}, {transform_indices = @transform_4, window_bounds = array<i64: 1, 8, 8, 8>}, {pipeline_mode = #tpu.pipeline_mode<synchronous>, transform_indices = @transform_5, window_bounds = array<i64: 8, 128>}, {transform_indices = @transform_6, window_bounds = array<i64: 64, 128>}, {transform_indices = @transform_7, window_bounds = array<i64: 1, 2, 128>}, {transform_indices = @transform_8, window_bounds = array<i64: 64, 128>}, {transform_indices = @transform_9, window_bounds = array<i64: 1, 2, 128>}]} {
    %c0 = arith.constant 0 : index
    %c0_0 = arith.constant 0 : index
    %0 = vector.load %arg1[%c0, %c0_0] : memref<64x128xbf16, #tpu.memory_space<vmem>>, vector<64x128xbf16>
    %1 = arith.extf %0 : vector<64x128xbf16> to vector<64x128xf32>
    %c0_1 = arith.constant 0 : index
    %c0_2 = arith.constant 0 : index
    %2 = vector.load %arg2[%c0_1, %c0_2] : memref<1x128xf32, #tpu.memory_space<vmem>>, vector<1x128xf32>
    %3 = vector.broadcast %2 : vector<1x128xf32> to vector<64x128xf32>
    %4 = arith.mulf %1, %3 : vector<64x128xf32>
    %c0_3 = arith.constant 0 : index
    %c0_4 = arith.constant 0 : index
    %5 = vector.load %arg3[%c0_3, %c0_4] : memref<1x128xf32, #tpu.memory_space<vmem>>, vector<1x128xf32>
    %6 = vector.broadcast %5 : vector<1x128xf32> to vector<64x128xf32>
    %7 = arith.addf %4, %6 : vector<64x128xf32>
    %cst = arith.constant 0.000000e+00 : f32
    %8 = vector.broadcast %cst : f32 to vector<64x128xf32>
    %9 = arith.maximumf %7, %8 : vector<64x128xf32>
    %10 = vector.shape_cast %9 : vector<64x128xf32> to vector<1x8x8x128xf32>
    %11 = arith.truncf %10 : vector<1x8x8x128xf32> to vector<1x8x8x128xbf16>
    %cst_5 = arith.constant 0.000000e+00 : bf16
    %12 = vector.broadcast %cst_5 : bf16 to vector<1x10x10x128xbf16>
    %c0_6 = arith.constant 0 : index
    %c0_7 = arith.constant 0 : index
    %c0_8 = arith.constant 0 : index
    %c0_9 = arith.constant 0 : index
    %13 = vector.load %arg11[%c0_6, %c0_7, %c0_8, %c0_9] : memref<1x10x10x128xbf16, #tpu.memory_space<vmem>>, vector<1x10x10x128xbf16>
    tpu.vector_store %arg11[%c0_6, %c0_7, %c0_8, %c0_9], %12 {strides = array<i32>} : memref<1x10x10x128xbf16, #tpu.memory_space<vmem>>, vector<1x10x10x128xbf16>,
    %c0_10 = arith.constant 0 : index
    %c1 = arith.constant 1 : index
    %c1_11 = arith.constant 1 : index
    %c0_12 = arith.constant 0 : index
    %14 = vector.load %arg11[%c0_10, %c1, %c1_11, %c0_12] : memref<1x10x10x128xbf16, #tpu.memory_space<vmem>>, vector<1x8x8x128xbf16>
    tpu.vector_store %arg11[%c0_10, %c1, %c1_11, %c0_12], %11 {strides = array<i32>} : memref<1x10x10x128xbf16, #tpu.memory_space<vmem>>, vector<1x8x8x128xbf16>,
    %c0_13 = arith.constant 0 : index
    %c0_14 = arith.constant 0 : index
    %c0_15 = arith.constant 0 : index
    %c0_16 = arith.constant 0 : index
    %15 = vector.load %arg11[%c0_13, %c0_14, %c0_15, %c0_16] : memref<1x10x10x128xbf16, #tpu.memory_space<vmem>>, vector<1x8x8x128xbf16>
    %16 = vector.shape_cast %15 : vector<1x8x8x128xbf16> to vector<8x8x128xbf16>
    %17 = vector.shape_cast %16 : vector<8x8x128xbf16> to vector<64x128xbf16>
    %c0_17 = arith.constant 0 : index
    %c0_18 = arith.constant 0 : index
    %18 = vector.load %arg12[%c0_17, %c0_18] : memref<64x1152xbf16, #tpu.memory_space<vmem>>, vector<64x128xbf16>
    tpu.vector_store %arg12[%c0_17, %c0_18], %17 {strides = array<i32>} : memref<64x1152xbf16, #tpu.memory_space<vmem>>, vector<64x128xbf16>,
    %c0_19 = arith.constant 0 : index
    %c0_20 = arith.constant 0 : index
    %c1_21 = arith.constant 1 : index
    %c0_22 = arith.constant 0 : index
    %19 = vector.load %arg11[%c0_19, %c0_20, %c1_21, %c0_22] : memref<1x10x10x128xbf16, #tpu.memory_space<vmem>>, vector<1x8x8x128xbf16>
    %20 = vector.shape_cast %19 : vector<1x8x8x128xbf16> to vector<8x8x128xbf16>
    %21 = vector.shape_cast %20 : vector<8x8x128xbf16> to vector<64x128xbf16>
    %c0_23 = arith.constant 0 : index
    %c128 = arith.constant 128 : index
    %22 = vector.load %arg12[%c0_23, %c128] : memref<64x1152xbf16, #tpu.memory_space<vmem>>, vector<64x128xbf16>
    tpu.vector_store %arg12[%c0_23, %c128], %21 {strides = array<i32>} : memref<64x1152xbf16, #tpu.memory_space<vmem>>, vector<64x128xbf16>,
    %c0_24 = arith.constant 0 : index
    %c0_25 = arith.constant 0 : index
    %c2 = arith.constant 2 : index
    %c0_26 = arith.constant 0 : index
    %23 = vector.load %arg11[%c0_24, %c0_25, %c2, %c0_26] : memref<1x10x10x128xbf16, #tpu.memory_space<vmem>>, vector<1x8x8x128xbf16>
    %24 = vector.shape_cast %23 : vector<1x8x8x128xbf16> to vector<8x8x128xbf16>
    %25 = vector.shape_cast %24 : vector<8x8x128xbf16> to vector<64x128xbf16>
    %c0_27 = arith.constant 0 : index
    %c256 = arith.constant 256 : index
    %26 = vector.load %arg12[%c0_27, %c256] : memref<64x1152xbf16, #tpu.memory_space<vmem>>, vector<64x128xbf16>
    tpu.vector_store %arg12[%c0_27, %c256], %25 {strides = array<i32>} : memref<64x1152xbf16, #tpu.memory_space<vmem>>, vector<64x128xbf16>,
    %c0_28 = arith.constant 0 : index
    %c1_29 = arith.constant 1 : index
    %c0_30 = arith.constant 0 : index
    %c0_31 = arith.constant 0 : index
    %27 = vector.load %arg11[%c0_28, %c1_29, %c0_30, %c0_31] : memref<1x10x10x128xbf16, #tpu.memory_space<vmem>>, vector<1x8x8x128xbf16>
    %28 = vector.shape_cast %27 : vector<1x8x8x128xbf16> to vector<8x8x128xbf16>
    %29 = vector.shape_cast %28 : vector<8x8x128xbf16> to vector<64x128xbf16>
    %c0_32 = arith.constant 0 : index
    %c384 = arith.constant 384 : index
    %30 = vector.load %arg12[%c0_32, %c384] : memref<64x1152xbf16, #tpu.memory_space<vmem>>, vector<64x128xbf16>
    tpu.vector_store %arg12[%c0_32, %c384], %29 {strides = array<i32>} : memref<64x1152xbf16, #tpu.memory_space<vmem>>, vector<64x128xbf16>,
    %c0_33 = arith.constant 0 : index
    %c1_34 = arith.constant 1 : index
    %c1_35 = arith.constant 1 : index
    %c0_36 = arith.constant 0 : index
    %31 = vector.load %arg11[%c0_33, %c1_34, %c1_35, %c0_36] : memref<1x10x10x128xbf16, #tpu.memory_space<vmem>>, vector<1x8x8x128xbf16>
    %32 = vector.shape_cast %31 : vector<1x8x8x128xbf16> to vector<8x8x128xbf16>
    %33 = vector.shape_cast %32 : vector<8x8x128xbf16> to vector<64x128xbf16>
    %c0_37 = arith.constant 0 : index
    %c512 = arith.constant 512 : index
    %34 = vector.load %arg12[%c0_37, %c512] : memref<64x1152xbf16, #tpu.memory_space<vmem>>, vector<64x128xbf16>
    tpu.vector_store %arg12[%c0_37, %c512], %33 {strides = array<i32>} : memref<64x1152xbf16, #tpu.memory_space<vmem>>, vector<64x128xbf16>,
    %c0_38 = arith.constant 0 : index
    %c1_39 = arith.constant 1 : index
    %c2_40 = arith.constant 2 : index
    %c0_41 = arith.constant 0 : index
    %35 = vector.load %arg11[%c0_38, %c1_39, %c2_40, %c0_41] : memref<1x10x10x128xbf16, #tpu.memory_space<vmem>>, vector<1x8x8x128xbf16>
    %36 = vector.shape_cast %35 : vector<1x8x8x128xbf16> to vector<8x8x128xbf16>
    %37 = vector.shape_cast %36 : vector<8x8x128xbf16> to vector<64x128xbf16>
    %c0_42 = arith.constant 0 : index
    %c640 = arith.constant 640 : index
    %38 = vector.load %arg12[%c0_42, %c640] : memref<64x1152xbf16, #tpu.memory_space<vmem>>, vector<64x128xbf16>
    tpu.vector_store %arg12[%c0_42, %c640], %37 {strides = array<i32>} : memref<64x1152xbf16, #tpu.memory_space<vmem>>, vector<64x128xbf16>,
    %c0_43 = arith.constant 0 : index
    %c2_44 = arith.constant 2 : index
    %c0_45 = arith.constant 0 : index
    %c0_46 = arith.constant 0 : index
    %39 = vector.load %arg11[%c0_43, %c2_44, %c0_45, %c0_46] : memref<1x10x10x128xbf16, #tpu.memory_space<vmem>>, vector<1x8x8x128xbf16>
    %40 = vector.shape_cast %39 : vector<1x8x8x128xbf16> to vector<8x8x128xbf16>
    %41 = vector.shape_cast %40 : vector<8x8x128xbf16> to vector<64x128xbf16>
    %c0_47 = arith.constant 0 : index
    %c768 = arith.constant 768 : index
    %42 = vector.load %arg12[%c0_47, %c768] : memref<64x1152xbf16, #tpu.memory_space<vmem>>, vector<64x128xbf16>
    tpu.vector_store %arg12[%c0_47, %c768], %41 {strides = array<i32>} : memref<64x1152xbf16, #tpu.memory_space<vmem>>, vector<64x128xbf16>,
    %c0_48 = arith.constant 0 : index
    %c2_49 = arith.constant 2 : index
    %c1_50 = arith.constant 1 : index
    %c0_51 = arith.constant 0 : index
    %43 = vector.load %arg11[%c0_48, %c2_49, %c1_50, %c0_51] : memref<1x10x10x128xbf16, #tpu.memory_space<vmem>>, vector<1x8x8x128xbf16>
    %44 = vector.shape_cast %43 : vector<1x8x8x128xbf16> to vector<8x8x128xbf16>
    %45 = vector.shape_cast %44 : vector<8x8x128xbf16> to vector<64x128xbf16>
    %c0_52 = arith.constant 0 : index
    %c896 = arith.constant 896 : index
    %46 = vector.load %arg12[%c0_52, %c896] : memref<64x1152xbf16, #tpu.memory_space<vmem>>, vector<64x128xbf16>
    tpu.vector_store %arg12[%c0_52, %c896], %45 {strides = array<i32>} : memref<64x1152xbf16, #tpu.memory_space<vmem>>, vector<64x128xbf16>,
    %c0_53 = arith.constant 0 : index
    %c2_54 = arith.constant 2 : index
    %c2_55 = arith.constant 2 : index
    %c0_56 = arith.constant 0 : index
    %47 = vector.load %arg11[%c0_53, %c2_54, %c2_55, %c0_56] : memref<1x10x10x128xbf16, #tpu.memory_space<vmem>>, vector<1x8x8x128xbf16>
    %48 = vector.shape_cast %47 : vector<1x8x8x128xbf16> to vector<8x8x128xbf16>
    %49 = vector.shape_cast %48 : vector<8x8x128xbf16> to vector<64x128xbf16>
    %c0_57 = arith.constant 0 : index
    %c1024 = arith.constant 1024 : index
    %50 = vector.load %arg12[%c0_57, %c1024] : memref<64x1152xbf16, #tpu.memory_space<vmem>>, vector<64x128xbf16>
    tpu.vector_store %arg12[%c0_57, %c1024], %49 {strides = array<i32>} : memref<64x1152xbf16, #tpu.memory_space<vmem>>, vector<64x128xbf16>,
    %c0_58 = arith.constant 0 : index
    %c0_59 = arith.constant 0 : index
    %51 = vector.load %arg12[%c0_58, %c0_59] : memref<64x1152xbf16, #tpu.memory_space<vmem>>, vector<64x1152xbf16>
    %c0_60 = arith.constant 0 : index
    %c0_61 = arith.constant 0 : index
    %52 = vector.load %arg4[%c0_60, %c0_61] : memref<1152x128xbf16, #tpu.memory_space<vmem>>, vector<1152x128xbf16>
    %cst_62 = arith.constant dense<0.000000e+00> : vector<64x128xf32>
    %53 = tpu.matmul %51, %52, %cst_62 {dimension_numbers = #tpu.dot_dimension_numbers<[1], [0], [0], [1], [0, 0, 1, 1], [], []>} : vector<64x1152xbf16>, vector<1152x128xbf16>, vector<64x128xf32> -> vector<64x128xf32>
    %54 = arith.truncf %53 : vector<64x128xf32> to vector<64x128xbf16>
    %c0_63 = arith.constant 0 : index
    %c0_64 = arith.constant 0 : index
    %55 = vector.load %arg7[%c0_63, %c0_64] : memref<64x128xbf16, #tpu.memory_space<vmem>>, vector<64x128xbf16>
    tpu.vector_store %arg7[%c0_63, %c0_64], %54 {strides = array<i32>} : memref<64x128xbf16, #tpu.memory_space<vmem>>, vector<64x128xbf16>,
    %cst_65 = arith.constant dense<0.000000e+00> : vector<128xf32>
    %56 = vector.multi_reduction <add>, %53, %cst_65 [0] : vector<64x128xf32> to vector<128xf32>
    %57 = vector.shape_cast %56 : vector<128xf32> to vector<1x128xf32>
    %c0_66 = arith.constant 0 : index
    %c0_67 = arith.constant 0 : index
    %c0_68 = arith.constant 0 : index
    %58 = vector.load %arg8[%c0_66, %c0_67, %c0_68] : memref<1x2x128xf32, #tpu.memory_space<vmem>>, vector<1x1x128xf32>
    %59 = vector.shape_cast %58 : vector<1x1x128xf32> to vector<1x128xf32>
    %60 = vector.shape_cast %57 : vector<1x128xf32> to vector<1x1x128xf32>
    tpu.vector_store %arg8[%c0_66, %c0_67, %c0_68], %60 {strides = array<i32>} : memref<1x2x128xf32, #tpu.memory_space<vmem>>, vector<1x1x128xf32>,
    %61 = arith.mulf %53, %53 : vector<64x128xf32>
    %cst_69 = arith.constant dense<0.000000e+00> : vector<128xf32>
    %62 = vector.multi_reduction <add>, %61, %cst_69 [0] : vector<64x128xf32> to vector<128xf32>
    %63 = vector.shape_cast %62 : vector<128xf32> to vector<1x128xf32>
    %c0_70 = arith.constant 0 : index
    %c1_71 = arith.constant 1 : index
    %c0_72 = arith.constant 0 : index
    %64 = vector.load %arg8[%c0_70, %c1_71, %c0_72] : memref<1x2x128xf32, #tpu.memory_space<vmem>>, vector<1x1x128xf32>
    %65 = vector.shape_cast %64 : vector<1x1x128xf32> to vector<1x128xf32>
    %66 = vector.shape_cast %63 : vector<1x128xf32> to vector<1x1x128xf32>
    tpu.vector_store %arg8[%c0_70, %c1_71, %c0_72], %66 {strides = array<i32>} : memref<1x2x128xf32, #tpu.memory_space<vmem>>, vector<1x1x128xf32>,
    %c0_73 = arith.constant 0 : index
    %c0_74 = arith.constant 0 : index
    %c0_75 = arith.constant 0 : index
    %c0_76 = arith.constant 0 : index
    %67 = vector.load %arg5[%c0_73, %c0_74, %c0_75, %c0_76] : memref<1x8x8x8xbf16, #tpu.memory_space<vmem>>, vector<1x8x8x8xbf16>
    %68 = vector.shape_cast %67 : vector<1x8x8x8xbf16> to vector<64x8xbf16>
    %c0_77 = arith.constant 0 : index
    %c0_78 = arith.constant 0 : index
    %69 = vector.load %arg6[%c0_77, %c0_78] : memref<8x128xbf16, #tpu.memory_space<vmem>>, vector<8x128xbf16>
    %cst_79 = arith.constant dense<0.000000e+00> : vector<64x128xf32>
    %70 = tpu.matmul %68, %69, %cst_79 {dimension_numbers = #tpu.dot_dimension_numbers<[1], [0], [0], [1], [0, 0, 1, 1], [], []>} : vector<64x8xbf16>, vector<8x128xbf16>, vector<64x128xf32> -> vector<64x128xf32>
    %71 = arith.truncf %70 : vector<64x128xf32> to vector<64x128xbf16>
    %c0_80 = arith.constant 0 : index
    %c0_81 = arith.constant 0 : index
    %72 = vector.load %arg9[%c0_80, %c0_81] : memref<64x128xbf16, #tpu.memory_space<vmem>>, vector<64x128xbf16>
    tpu.vector_store %arg9[%c0_80, %c0_81], %71 {strides = array<i32>} : memref<64x128xbf16, #tpu.memory_space<vmem>>, vector<64x128xbf16>,
    %cst_82 = arith.constant dense<0.000000e+00> : vector<128xf32>
    %73 = vector.multi_reduction <add>, %70, %cst_82 [0] : vector<64x128xf32> to vector<128xf32>
    %74 = vector.shape_cast %73 : vector<128xf32> to vector<1x128xf32>
    %c0_83 = arith.constant 0 : index
    %c0_84 = arith.constant 0 : index
    %c0_85 = arith.constant 0 : index
    %75 = vector.load %arg10[%c0_83, %c0_84, %c0_85] : memref<1x2x128xf32, #tpu.memory_space<vmem>>, vector<1x1x128xf32>
    %76 = vector.shape_cast %75 : vector<1x1x128xf32> to vector<1x128xf32>
    %77 = vector.shape_cast %74 : vector<1x128xf32> to vector<1x1x128xf32>
    tpu.vector_store %arg10[%c0_83, %c0_84, %c0_85], %77 {strides = array<i32>} : memref<1x2x128xf32, #tpu.memory_space<vmem>>, vector<1x1x128xf32>,
    %78 = arith.mulf %70, %70 : vector<64x128xf32>
    %cst_86 = arith.constant dense<0.000000e+00> : vector<128xf32>
    %79 = vector.multi_reduction <add>, %78, %cst_86 [0] : vector<64x128xf32> to vector<128xf32>
    %80 = vector.shape_cast %79 : vector<128xf32> to vector<1x128xf32>
    %c0_87 = arith.constant 0 : index
    %c1_88 = arith.constant 1 : index
    %c0_89 = arith.constant 0 : index
    %81 = vector.load %arg10[%c0_87, %c1_88, %c0_89] : memref<1x2x128xf32, #tpu.memory_space<vmem>>, vector<1x1x128xf32>
    %82 = vector.shape_cast %81 : vector<1x1x128xf32> to vector<1x128xf32>
    %83 = vector.shape_cast %80 : vector<1x128xf32> to vector<1x1x128xf32>
    tpu.vector_store %arg10[%c0_87, %c1_88, %c0_89], %83 {strides = array<i32>} : memref<1x2x128xf32, #tpu.memory_space<vmem>>, vector<1x1x128xf32>,
    return
  }
  func.func @transform_0(%arg0: i32) -> (i32, i32) {
    %c0_i32 = arith.constant 0 : i32
    %c0_i32_0 = arith.constant 0 : i32
    return %arg0, %c0_i32 : i32, i32
  }
  func.func @transform_1(%arg0: i32) -> (i32, i32) {
    %c0_i32 = arith.constant 0 : i32
    %c0_i32_0 = arith.constant 0 : i32
    %c0_i32_1 = arith.constant 0 : i32
    return %c0_i32, %c0_i32_0 : i32, i32
  }
  func.func @transform_2(%arg0: i32) -> (i32, i32) {
    %c0_i32 = arith.constant 0 : i32
    %c0_i32_0 = arith.constant 0 : i32
    %c0_i32_1 = arith.constant 0 : i32
    return %c0_i32, %c0_i32_0 : i32, i32
  }
  func.func @transform_3(%arg0: i32) -> (i32, i32) {
    %c0_i32 = arith.constant 0 : i32
    %c0_i32_0 = arith.constant 0 : i32
    %c0_i32_1 = arith.constant 0 : i32
    return %c0_i32, %c0_i32_0 : i32, i32
  }
  func.func @transform_4(%arg0: i32) -> (i32, i32, i32, i32) {
    %c0_i32 = arith.constant 0 : i32
    %c0_i32_0 = arith.constant 0 : i32
    %c0_i32_1 = arith.constant 0 : i32
    %c0_i32_2 = arith.constant 0 : i32
    return %arg0, %c0_i32, %c0_i32_0, %c0_i32_1 : i32, i32, i32, i32
  }
  func.func @transform_5(%arg0: i32) -> (i32, i32) {
    %c0_i32 = arith.constant 0 : i32
    %c0_i32_0 = arith.constant 0 : i32
    %c0_i32_1 = arith.constant 0 : i32
    return %c0_i32, %c0_i32_0 : i32, i32
  }
  func.func @transform_6(%arg0: i32) -> (i32, i32) {
    %c0_i32 = arith.constant 0 : i32
    %c0_i32_0 = arith.constant 0 : i32
    return %arg0, %c0_i32 : i32, i32
  }
  func.func @transform_7(%arg0: i32) -> (i32, i32, i32) {
    %c0_i32 = arith.constant 0 : i32
    %c0_i32_0 = arith.constant 0 : i32
    %c0_i32_1 = arith.constant 0 : i32
    return %arg0, %c0_i32, %c0_i32_0 : i32, i32, i32
  }
  func.func @transform_8(%arg0: i32) -> (i32, i32) {
    %c0_i32 = arith.constant 0 : i32
    %c0_i32_0 = arith.constant 0 : i32
    return %arg0, %c0_i32 : i32, i32
  }
  func.func @transform_9(%arg0: i32) -> (i32, i32, i32) {
    %c0_i32 = arith.constant 0 : i32
    %c0_i32_0 = arith.constant 0 : i32
    %c0_i32_1 = arith.constant 0 : i32
    return %arg0, %c0_i32, %c0_i32_0 : i32, i32, i32
  }
}

module attributes {stable_mosaic.version = 11 : i64} {
  func.func @_bn_add_relu_kernel(%arg0: i32, %arg1: memref<64x128xbf16, #tpu.memory_space<vmem>>, %arg2: memref<1x128xf32, #tpu.memory_space<vmem>>, %arg3: memref<1x128xf32, #tpu.memory_space<vmem>>, %arg4: memref<64x128xbf16, #tpu.memory_space<vmem>>, %arg5: memref<1x128xf32, #tpu.memory_space<vmem>>, %arg6: memref<1x128xf32, #tpu.memory_space<vmem>>, %arg7: memref<64x128xf32, #tpu.memory_space<vmem>>) attributes {dimension_semantics = [#tpu.dimension_semantics<parallel>], iteration_bounds = array<i64: 2>, scalar_prefetch = 0 : i64, scratch_operands = 0 : i64, tpu.core_type = #tpu.core_type<tc>, window_params = [{transform_indices = @transform_0, window_bounds = array<i64: 64, 128>}, {pipeline_mode = #tpu.pipeline_mode<synchronous>, transform_indices = @transform_1, window_bounds = array<i64: 1, 128>}, {pipeline_mode = #tpu.pipeline_mode<synchronous>, transform_indices = @transform_2, window_bounds = array<i64: 1, 128>}, {transform_indices = @transform_3, window_bounds = array<i64: 64, 128>}, {pipeline_mode = #tpu.pipeline_mode<synchronous>, transform_indices = @transform_4, window_bounds = array<i64: 1, 128>}, {pipeline_mode = #tpu.pipeline_mode<synchronous>, transform_indices = @transform_5, window_bounds = array<i64: 1, 128>}, {transform_indices = @transform_6, window_bounds = array<i64: 64, 128>}]} {
    %c0 = arith.constant 0 : index
    %c0_0 = arith.constant 0 : index
    %0 = vector.load %arg1[%c0, %c0_0] : memref<64x128xbf16, #tpu.memory_space<vmem>>, vector<64x128xbf16>
    %1 = arith.extf %0 : vector<64x128xbf16> to vector<64x128xf32>
    %c0_1 = arith.constant 0 : index
    %c0_2 = arith.constant 0 : index
    %2 = vector.load %arg2[%c0_1, %c0_2] : memref<1x128xf32, #tpu.memory_space<vmem>>, vector<1x128xf32>
    %3 = vector.broadcast %2 : vector<1x128xf32> to vector<64x128xf32>
    %4 = arith.mulf %1, %3 : vector<64x128xf32>
    %c0_3 = arith.constant 0 : index
    %c0_4 = arith.constant 0 : index
    %5 = vector.load %arg3[%c0_3, %c0_4] : memref<1x128xf32, #tpu.memory_space<vmem>>, vector<1x128xf32>
    %6 = vector.broadcast %5 : vector<1x128xf32> to vector<64x128xf32>
    %7 = arith.addf %4, %6 : vector<64x128xf32>
    %c0_5 = arith.constant 0 : index
    %c0_6 = arith.constant 0 : index
    %8 = vector.load %arg4[%c0_5, %c0_6] : memref<64x128xbf16, #tpu.memory_space<vmem>>, vector<64x128xbf16>
    %9 = arith.extf %8 : vector<64x128xbf16> to vector<64x128xf32>
    %c0_7 = arith.constant 0 : index
    %c0_8 = arith.constant 0 : index
    %10 = vector.load %arg5[%c0_7, %c0_8] : memref<1x128xf32, #tpu.memory_space<vmem>>, vector<1x128xf32>
    %11 = vector.broadcast %10 : vector<1x128xf32> to vector<64x128xf32>
    %12 = arith.mulf %9, %11 : vector<64x128xf32>
    %c0_9 = arith.constant 0 : index
    %c0_10 = arith.constant 0 : index
    %13 = vector.load %arg6[%c0_9, %c0_10] : memref<1x128xf32, #tpu.memory_space<vmem>>, vector<1x128xf32>
    %14 = vector.broadcast %13 : vector<1x128xf32> to vector<64x128xf32>
    %15 = arith.addf %12, %14 : vector<64x128xf32>
    %16 = arith.addf %7, %15 : vector<64x128xf32>
    %cst = arith.constant 0.000000e+00 : f32
    %17 = vector.broadcast %cst : f32 to vector<64x128xf32>
    %18 = arith.maximumf %16, %17 : vector<64x128xf32>
    %c0_11 = arith.constant 0 : index
    %c0_12 = arith.constant 0 : index
    %19 = vector.load %arg7[%c0_11, %c0_12] : memref<64x128xf32, #tpu.memory_space<vmem>>, vector<64x128xf32>
    tpu.vector_store %arg7[%c0_11, %c0_12], %18 {strides = array<i32>} : memref<64x128xf32, #tpu.memory_space<vmem>>, vector<64x128xf32>,
    return
  }
  func.func @transform_0(%arg0: i32) -> (i32, i32) {
    %c0_i32 = arith.constant 0 : i32
    %c0_i32_0 = arith.constant 0 : i32
    return %arg0, %c0_i32 : i32, i32
  }
  func.func @transform_1(%arg0: i32) -> (i32, i32) {
    %c0_i32 = arith.constant 0 : i32
    %c0_i32_0 = arith.constant 0 : i32
    %c0_i32_1 = arith.constant 0 : i32
    return %c0_i32, %c0_i32_0 : i32, i32
  }
  func.func @transform_2(%arg0: i32) -> (i32, i32) {
    %c0_i32 = arith.constant 0 : i32
    %c0_i32_0 = arith.constant 0 : i32
    %c0_i32_1 = arith.constant 0 : i32
    return %c0_i32, %c0_i32_0 : i32, i32
  }
  func.func @transform_3(%arg0: i32) -> (i32, i32) {
    %c0_i32 = arith.constant 0 : i32
    %c0_i32_0 = arith.constant 0 : i32
    return %arg0, %c0_i32 : i32, i32
  }
  func.func @transform_4(%arg0: i32) -> (i32, i32) {
    %c0_i32 = arith.constant 0 : i32
    %c0_i32_0 = arith.constant 0 : i32
    %c0_i32_1 = arith.constant 0 : i32
    return %c0_i32, %c0_i32_0 : i32, i32
  }
  func.func @transform_5(%arg0: i32) -> (i32, i32) {
    %c0_i32 = arith.constant 0 : i32
    %c0_i32_0 = arith.constant 0 : i32
    %c0_i32_1 = arith.constant 0 : i32
    return %c0_i32, %c0_i32_0 : i32, i32
  }
  func.func @transform_6(%arg0: i32) -> (i32, i32) {
    %c0_i32 = arith.constant 0 : i32
    %c0_i32_0 = arith.constant 0 : i32
    return %arg0, %c0_i32 : i32, i32
  }
}

</mosaic_0001>

<llo_original>
// kernel: basic_block_forward.5
$region0: #{basic_block_forward.5}
  #allocation0 [shape = 'u32[]', space=smem, size = 0x4, offset = 0x4, fixed_abs, tag = 'smem constant byte address 0x4 - core index']
  #allocation1 [shape = 'u32[144,128]{1,0:T(1,128)}', space=vmem, size = 0x12000, scoped, tag = 'internal scratch']
  %s0 = inlined_call_operand.hbm [shape: bf16[128,128], index: 0, kind: input, shape index: {}]
  %s1 = inlined_call_operand.hbm [shape: f32[1,128], index: 1, kind: input, shape index: {}]
  %s2 = inlined_call_operand.hbm [shape: f32[1,128], index: 2, kind: input, shape index: {}]
  %s3 = inlined_call_operand.hbm [shape: bf16[128,128], index: 3, kind: input, shape index: {}]
  %s4 = inlined_call_operand.hbm [shape: f32[1,128], index: 4, kind: input, shape index: {}]
  %s5 = inlined_call_operand.hbm [shape: f32[1,128], index: 5, kind: input, shape index: {}]
  %s6 = inlined_call_operand.hbm [shape: f32[128,128], index: 6, kind: output, shape index: {}]
  %s7 = sld [smem:[#allocation0]]
  $region81: #{basic_block_forward.5} parent=0
    _
  %s9 = ssub.s32 1, %s7
  %s10 = scalar_select 0, %s9, %s7
  $region1: #{basic_block_forward.5} parent=0
    #allocation2 [shape = 'u8[32768]{0}', space=vmem, size = 0x8000, scoped, tag = 'input window, operand 0']
    #allocation3 [shape = 's32[2]{0}', space=sflag, size = 0x8, scoped, tag = 'scoped memory for basic_block_forward.5']
    #allocation4 [shape = 's32[2]{0}', space=sflag, size = 0x8, scoped, tag = 'scoped memory for basic_block_forward.5']
    #allocation5 [shape = 'u8[512]{0}', space=vmem, size = 0x400, scoped, tag = 'input window, operand 1, single buffered']
    #allocation6 [shape = 's32[1]{0}', space=sflag, size = 0x4, scoped, tag = 'scoped memory for basic_block_forward.5']
    #allocation7 [shape = 'u8[512]{0}', space=vmem, size = 0x400, scoped, tag = 'input window, operand 2, single buffered']
    #allocation8 [shape = 'u8[32768]{0}', space=vmem, size = 0x8000, scoped, tag = 'input window, operand 3']
    #allocation9 [shape = 's32[2]{0}', space=sflag, size = 0x8, scoped, tag = 'scoped memory for basic_block_forward.5']
    #allocation10 [shape = 'u8[512]{0}', space=vmem, size = 0x400, scoped, tag = 'input window, operand 4, single buffered']
    #allocation11 [shape = 'u8[512]{0}', space=vmem, size = 0x400, scoped, tag = 'input window, operand 5, single buffered']
    #allocation12 [shape = 's32[1]{0}', space=sflag, size = 0x4, scoped, tag = 'scoped memory for basic_block_forward.5']
    #allocation13 [shape = 'u8[65536]{0}', space=vmem, size = 0x10000, scoped, tag = 'output window, operand 0']
    %11 = vsyncpa [#allocation3], 0
    %s12 = scalar_lea.sflag [#allocation3], 1
    %13 = vsyncpa %s12, 0
    %14 = vsyncpa [#allocation6], 0
    %15 = vsyncpa [#allocation9], 0
    %s16 = scalar_lea.sflag [#allocation9], 1
    %17 = vsyncpa %s16, 0
    %18 = vsyncpa [#allocation12], 0
    %19 = vsyncpa [#allocation4], 0
    %s20 = scalar_lea.sflag [#allocation4], 1
    %21 = vsyncpa %s20, 0
    loop: start=0, step=1, limit=4
    $region2: #{basic_block_forward.5} parent=1 // loop_pre_header
      _
    $region3: #{basic_block_forward.5} parent=1 // loop_header
      %s23 = sphi 0, %s27
      %p24 = scmp.ge.s32.totalorder %s23, 4
      %s33 = sphi 0, %s35
      %s36 = sphi 0, %s33
      %s37 = sphi 0, %s36
      %s53 = sphi 0, %s37
      %s57 = sphi 0, %s57
      %s59 = sphi 0, %s57
      %s60 = sphi 0, %s59
      %s74 = sphi 0, %s60
      %s78 = sphi 0, %s78
      %s80 = sphi 0, %s78
      %s81 = sphi 0, %s80
      %s95 = sphi 0, %s81
      %s101 = sphi 0, %s103
      %s104 = sphi 0, %s101
      %s105 = sphi 0, %s104
      %s121 = sphi 0, %s105
      %s125 = sphi 0, %s125
      %s127 = sphi 0, %s125
      %s128 = sphi 0, %s127
      %s142 = sphi 0, %s128
      %s146 = sphi 0, %s146
      %s148 = sphi 0, %s146
      %s149 = sphi 0, %s148
      %s163 = sphi 0, %s149
      %s169 = sphi 0, %s171
      %s172 = sphi 0, %s169
      %s173 = sphi 0, %s172
      %s189 = sphi 0, %s173
    $region4: #{basic_block_forward.5} parent=1 // loop_header_branch
      %26 = sbr.rel (%p24) target = $region8
    $region5: #{basic_block_forward.5} parent=1 // loop_body
      %s28 = ssub.s32 %s23, 1
      %s29 = ssub.s32 %s23, 2
      %s30 = sadd.s32 %s23, 1
      %s31 = ssub.s32 %s23, %s30
      %p32 = scmp.eq.s32.totalorder %s31, 0
      %s34 = sadd.s32 %s33, 1
      %s35 = scalar_select %p32, %s33, %s34
      %p38 = pneg %p32
      %p39 = scmp.eq.s32.totalorder %s23, 1
      %p40 = por %p38, %p39
      %p41 = scmp.ne.s32.totalorder %s33, %s36
      %p42 = scmp.eq.s32.totalorder %s23, 0
      %p43 = por %p41, %p42
      %p44 = scmp.ne.s32.totalorder %s33, %s36
      %p45 = scmp.eq.s32.totalorder %s28, 1
      %p46 = por %p44, %p45
      %p47 = scmp.ne.s32.totalorder %s36, %s37
      %p48 = scmp.eq.s32.totalorder %s28, 0
      %p49 = por %p47, %p48
      %p50 = scmp.ne.s32.totalorder %s36, %s37
      %p51 = scmp.eq.s32.totalorder %s29, 1
      %p52 = por %p50, %p51
      %p54 = scmp.ne.s32.totalorder %s37, %s53
      %p55 = scmp.eq.s32.totalorder %s29, 0
      %p56 = por %p54, %p55
      %s58 = sadd.s32 %s57, 1
      %p61 = scmp.eq.s32.totalorder %s23, 1
      %p62 = scmp.ne.s32.totalorder %s57, %s59
      %p63 = scmp.eq.s32.totalorder %s23, 0
      %p64 = por %p62, %p63
      %p65 = scmp.ne.s32.totalorder %s57, %s59
      %p66 = scmp.eq.s32.totalorder %s28, 1
      %p67 = por %p65, %p66
      %p68 = scmp.ne.s32.totalorder %s59, %s60
      %p69 = scmp.eq.s32.totalorder %s28, 0
      %p70 = por %p68, %p69
      %p71 = scmp.ne.s32.totalorder %s59, %s60
      %p72 = scmp.eq.s32.totalorder %s29, 1
      %p73 = por %p71, %p72
      %p75 = scmp.ne.s32.totalorder %s60, %s74
      %p76 = scmp.eq.s32.totalorder %s29, 0
      %p77 = por %p75, %p76
      %s79 = sadd.s32 %s78, 1
      %p82 = scmp.eq.s32.totalorder %s23, 1
      %p83 = scmp.ne.s32.totalorder %s78, %s80
      %p84 = scmp.eq.s32.totalorder %s23, 0
      %p85 = por %p83, %p84
      %p86 = scmp.ne.s32.totalorder %s78, %s80
      %p87 = scmp.eq.s32.totalorder %s28, 1
      %p88 = por %p86, %p87
      %p89 = scmp.ne.s32.totalorder %s80, %s81
      %p90 = scmp.eq.s32.totalorder %s28, 0
      %p91 = por %p89, %p90
      %p92 = scmp.ne.s32.totalorder %s80, %s81
      %p93 = scmp.eq.s32.totalorder %s29, 1
      %p94 = por %p92, %p93
      %p96 = scmp.ne.s32.totalorder %s81, %s95
      %p97 = scmp.eq.s32.totalorder %s29, 0
      %p98 = por %p96, %p97
      %s99 = ssub.s32 %s23, %s30
      %p100 = scmp.eq.s32.totalorder %s99, 0
      %s102 = sadd.s32 %s101, 1
      %s103 = scalar_select %p100, %s101, %s102
      %p106 = pneg %p100
      %p107 = scmp.eq.s32.totalorder %s23, 1
      %p108 = por %p106, %p107
      %p109 = scmp.ne.s32.totalorder %s101, %s104
      %p110 = scmp.eq.s32.totalorder %s23, 0
      %p111 = por %p109, %p110
      %p112 = scmp.ne.s32.totalorder %s101, %s104
      %p113 = scmp.eq.s32.totalorder %s28, 1
      %p114 = por %p112, %p113
      %p115 = scmp.ne.s32.totalorder %s104, %s105
      %p116 = scmp.eq.s32.totalorder %s28, 0
      %p117 = por %p115, %p116
      %p118 = scmp.ne.s32.totalorder %s104, %s105
      %p119 = scmp.eq.s32.totalorder %s29, 1
      %p120 = por %p118, %p119
      %p122 = scmp.ne.s32.totalorder %s105, %s121
      %p123 = scmp.eq.s32.totalorder %s29, 0
      %p124 = por %p122, %p123
      %s126 = sadd.s32 %s125, 1
      %p129 = scmp.eq.s32.totalorder %s23, 1
      %p130 = scmp.ne.s32.totalorder %s125, %s127
      %p131 = scmp.eq.s32.totalorder %s23, 0
      %p132 = por %p130, %p131
      %p133 = scmp.ne.s32.totalorder %s125, %s127
      %p134 = scmp.eq.s32.totalorder %s28, 1
      %p135 = por %p133, %p134
      %p136 = scmp.ne.s32.totalorder %s127, %s128
      %p137 = scmp.eq.s32.totalorder %s28, 0
      %p138 = por %p136, %p137
      %p139 = scmp.ne.s32.totalorder %s127, %s128
      %p140 = scmp.eq.s32.totalorder %s29, 1
      %p141 = por %p139, %p140
      %p143 = scmp.ne.s32.totalorder %s128, %s142
      %p144 = scmp.eq.s32.totalorder %s29, 0
      %p145 = por %p143, %p144
      %s147 = sadd.s32 %s146, 1
      %p150 = scmp.eq.s32.totalorder %s23, 1
      %p151 = scmp.ne.s32.totalorder %s146, %s148
      %p152 = scmp.eq.s32.totalorder %s23, 0
      %p153 = por %p151, %p152
      %p154 = scmp.ne.s32.totalorder %s146, %s148
      %p155 = scmp.eq.s32.totalorder %s28, 1
      %p156 = por %p154, %p155
      %p157 = scmp.ne.s32.totalorder %s148, %s149
      %p158 = scmp.eq.s32.totalorder %s28, 0
      %p159 = por %p157, %p158
      %p160 = scmp.ne.s32.totalorder %s148, %s149
      %p161 = scmp.eq.s32.totalorder %s29, 1
      %p162 = por %p160, %p161
      %p164 = scmp.ne.s32.totalorder %s149, %s163
      %p165 = scmp.eq.s32.totalorder %s29, 0
      %p166 = por %p164, %p165
      %s167 = ssub.s32 %s23, %s30
      %p168 = scmp.eq.s32.totalorder %s167, 0
      %s170 = sadd.s32 %s169, 1
      %s171 = scalar_select %p168, %s169, %s170
      %p174 = pneg %p168
      %p175 = scmp.eq.s32.totalorder %s23, 1
      %p176 = por %p174, %p175
      %p177 = scmp.ne.s32.totalorder %s169, %s172
      %p178 = scmp.eq.s32.totalorder %s23, 0
      %p179 = por %p177, %p178
      %p180 = scmp.ne.s32.totalorder %s169, %s172
      %p181 = scmp.eq.s32.totalorder %s28, 1
      %p182 = por %p180, %p181
      %p183 = scmp.ne.s32.totalorder %s172, %s173
      %p184 = scmp.eq.s32.totalorder %s28, 0
      %p185 = por %p183, %p184
      %p186 = scmp.ne.s32.totalorder %s172, %s173
      %p187 = scmp.eq.s32.totalorder %s29, 1
      %p188 = por %p186, %p187
      %p190 = scmp.ne.s32.totalorder %s173, %s189
      %p191 = scmp.eq.s32.totalorder %s29, 0
      %p192 = por %p190, %p191
      %p193 = scmp.le.s32.totalorder 1, %s23
      %p194 = scmp.lt.s32.totalorder %s23, 3
      %p195 = pnand %p193, %p194
      %p196 = pneg %p195
      // Predicated region
      $region9: #{basic_block_forward.5} parent=5 // pred_check
        _
      $region10: #{basic_block_forward.5} parent=5 // pred_check_branch
        %198 = sbr.rel (%p195) target = $region12
      $region11: #{basic_block_forward.5} parent=5 // pred_region
        %s199 = ssub.s32 %s23, 1
        // Predicated region
        $region13: #{basic_block_forward.5} parent=11 // pred_check
          %p200 = pneg %p70
        $region14: #{basic_block_forward.5} parent=11 // pred_check_branch
          %202 = sbr.rel (%p200) target = $region16
        $region15: #{basic_block_forward.5} parent=11 // pred_region
          %s204 = ssub.s32 16, 16
          %205 = vsyncadd [#allocation6], %s204
          %s207 = sshll.u32 [#allocation5], 4
          %s208 = int_to_ptr.vmem [resolvable:$true] %s207
          %210 = dma.hbm_to_vmem [thread:$0]  %s1, 16, %s208, [#allocation6]
        $region16: #{basic_block_forward.5} parent=11 // pred_fallthru
          _
        // Predicated region
        $region17: #{basic_block_forward.5} parent=11 // pred_check
          %p211 = pneg %p91
        $region18: #{basic_block_forward.5} parent=11 // pred_check_branch
          %213 = sbr.rel (%p211) target = $region20
        $region19: #{basic_block_forward.5} parent=11 // pred_region
          %s215 = ssub.s32 16, 16
          %216 = vsyncadd [#allocation6], %s215
          %s218 = sshll.u32 [#allocation7], 4
          %s219 = int_to_ptr.vmem [resolvable:$true] %s218
          %221 = dma.hbm_to_vmem [thread:$0]  %s2, 16, %s219, [#allocation6]
        $region20: #{basic_block_forward.5} parent=11 // pred_fallthru
          _
        // Predicated region
        $region21: #{basic_block_forward.5} parent=11 // pred_check
          %p222 = pneg %p138
        $region22: #{basic_block_forward.5} parent=11 // pred_check_branch
          %224 = sbr.rel (%p222) target = $region24
        $region23: #{basic_block_forward.5} parent=11 // pred_region
          %s226 = ssub.s32 16, 16
          %227 = vsyncadd [#allocation9], %s226
          %s229 = sshll.u32 [#allocation10], 4
          %s230 = int_to_ptr.vmem [resolvable:$true] %s229
          %232 = dma.hbm_to_vmem [thread:$0]  %s4, 16, %s230, [#allocation9]
        $region24: #{basic_block_forward.5} parent=11 // pred_fallthru
          _
        // Predicated region
        $region25: #{basic_block_forward.5} parent=11 // pred_check
          %p233 = pneg %p159
        $region26: #{basic_block_forward.5} parent=11 // pred_check_branch
          %235 = sbr.rel (%p233) target = $region28
        $region27: #{basic_block_forward.5} parent=11 // pred_region
          %s237 = ssub.s32 16, 16
          %238 = vsyncadd [#allocation12], %s237
          %s240 = sshll.u32 [#allocation11], 4
          %s241 = int_to_ptr.vmem [resolvable:$true] %s240
          %243 = dma.hbm_to_vmem [thread:$0]  %s5, 16, %s241, [#allocation12]
        $region28: #{basic_block_forward.5} parent=11 // pred_fallthru
          _
      $region12: #{basic_block_forward.5} parent=5 // pred_fallthru
        _
      %p244 = scmp.lt.s32.totalorder %s23, 2
      // Predicated region
      $region29: #{basic_block_forward.5} parent=5 // pred_check
        %p245 = pneg %p244
      $region30: #{basic_block_forward.5} parent=5 // pred_check_branch
        %247 = sbr.rel (%p245) target = $region32
      $region31: #{basic_block_forward.5} parent=5 // pred_region
        // Predicated region
        $region33: #{basic_block_forward.5} parent=31 // pred_check
          %p248 = pneg %p43
        $region34: #{basic_block_forward.5} parent=31 // pred_check_branch
          %250 = sbr.rel (%p248) target = $region36
        $region35: #{basic_block_forward.5} parent=31 // pred_region
          %s251 = sand.u32 %s33, 1
          %s252 = scalar_lea.sflag [#allocation3], %s251
          %s253 = sand.u32 %s33, 1
          %s254 = smul.addr %s253, 32
          %s255 = scalar_lea.vmem [#allocation2], %s254
          %s256 = smul.u32 8, %s23
          %s258 = ssub.s32 512, 512
          %259 = vsyncadd %s252, %s258
          %s260 = smul.addr %s256, 64
          %s261 = scalar_lea.hbm %s0, %s260
          %s262 = sshll.u32 %s255, 4
          %s263 = int_to_ptr.vmem [resolvable:$true] %s262
          %268 = dma.hbm_to_vmem [thread:$0]  %s261, 512, %s263, %s252, 64, 64, 4
        $region36: #{basic_block_forward.5} parent=31 // pred_fallthru
          _
        // Predicated region
        $region37: #{basic_block_forward.5} parent=31 // pred_check
          %p269 = pneg %p111
        $region38: #{basic_block_forward.5} parent=31 // pred_check_branch
          %271 = sbr.rel (%p269) target = $region40
        $region39: #{basic_block_forward.5} parent=31 // pred_region
          %s272 = sand.u32 %s23, 1
          %s273 = scalar_lea.sflag [#allocation9], %s272
          %s274 = sand.u32 %s101, 1
          %s275 = smul.addr %s274, 32
          %s276 = scalar_lea.vmem [#allocation8], %s275
          %s277 = smul.u32 8, %s23
          %s279 = ssub.s32 512, 512
          %280 = vsyncadd %s273, %s279
          %s281 = smul.addr %s277, 64
          %s282 = scalar_lea.hbm %s3, %s281
          %s283 = sshll.u32 %s276, 4
          %s284 = int_to_ptr.vmem [resolvable:$true] %s283
          %289 = dma.hbm_to_vmem [thread:$0]  %s282, 512, %s284, %s273, 64, 64, 4
        $region40: #{basic_block_forward.5} parent=31 // pred_fallthru
          _
      $region32: #{basic_block_forward.5} parent=5 // pred_fallthru
        _
      %p290 = scmp.le.s32.totalorder 1, %s23
      %p291 = scmp.lt.s32.totalorder %s23, 3
      %p292 = pnand %p290, %p291
      %p293 = pneg %p292
      // Predicated region
      $region41: #{basic_block_forward.5} parent=5 // pred_check
        _
      $region42: #{basic_block_forward.5} parent=5 // pred_check_branch
        %295 = sbr.rel (%p292) target = $region44
      $region43: #{basic_block_forward.5} parent=5 // pred_region
        %s296 = ssub.s32 %s23, 1
        %s297 = sand.u32 %s36, 1
        %s298 = scalar_lea.sflag [#allocation3], %s297
        %s299 = sand.u32 %s36, 1
        %s300 = smul.addr %s299, 32
        %s301 = scalar_lea.vmem [#allocation2], %s300
        // Predicated region
        $region45: #{basic_block_forward.5} parent=43 // pred_check
          %p302 = pneg %p49
        $region46: #{basic_block_forward.5} parent=43 // pred_check_branch
          %304 = sbr.rel (%p302) target = $region48
        $region47: #{basic_block_forward.5} parent=43 // pred_region
          %305 = dma.done %s298, 512
        $region48: #{basic_block_forward.5} parent=43 // pred_fallthru
          _
        // Predicated region
        $region49: #{basic_block_forward.5} parent=43 // pred_check
          %p306 = pneg %p70
        $region50: #{basic_block_forward.5} parent=43 // pred_check_branch
          %308 = sbr.rel (%p306) target = $region52
        $region51: #{basic_block_forward.5} parent=43 // pred_region
          %309 = dma.done [#allocation6], 16
        $region52: #{basic_block_forward.5} parent=43 // pred_fallthru
          _
        // Predicated region
        $region53: #{basic_block_forward.5} parent=43 // pred_check
          %p310 = pneg %p91
        $region54: #{basic_block_forward.5} parent=43 // pred_check_branch
          %312 = sbr.rel (%p310) target = $region56
        $region55: #{basic_block_forward.5} parent=43 // pred_region
          %313 = dma.done [#allocation6], 16
        $region56: #{basic_block_forward.5} parent=43 // pred_fallthru
          _
        %s314 = sand.u32 %s28, 1
        %s315 = scalar_lea.sflag [#allocation9], %s314
        %s316 = sand.u32 %s104, 1
        %s317 = smul.addr %s316, 32
        %s318 = scalar_lea.vmem [#allocation8], %s317
        // Predicated region
        $region57: #{basic_block_forward.5} parent=43 // pred_check
          %p319 = pneg %p117
        $region58: #{basic_block_forward.5} parent=43 // pred_check_branch
          %321 = sbr.rel (%p319) target = $region60
        $region59: #{basic_block_forward.5} parent=43 // pred_region
          %322 = dma.done %s315, 512
        $region60: #{basic_block_forward.5} parent=43 // pred_fallthru
          _
        // Predicated region
        $region61: #{basic_block_forward.5} parent=43 // pred_check
          %p323 = pneg %p138
        $region62: #{basic_block_forward.5} parent=43 // pred_check_branch
          %325 = sbr.rel (%p323) target = $region64
        $region63: #{basic_block_forward.5} parent=43 // pred_region
          %326 = dma.done [#allocation9], 16
        $region64: #{basic_block_forward.5} parent=43 // pred_fallthru
          _
        // Predicated region
        $region65: #{basic_block_forward.5} parent=43 // pred_check
          %p327 = pneg %p159
        $region66: #{basic_block_forward.5} parent=43 // pred_check_branch
          %329 = sbr.rel (%p327) target = $region68
        $region67: #{basic_block_forward.5} parent=43 // pred_region
          %330 = dma.done [#allocation12], 16
        $region68: #{basic_block_forward.5} parent=43 // pred_fallthru
          _
        %s331 = sand.u32 %s36, 1
        %s332 = scalar_lea.sflag [#allocation3], %s331
        %s333 = sand.u32 %s36, 1
        %s334 = smul.addr %s333, 32
        %s335 = scalar_lea.vmem [#allocation2], %s334
        %p336 = pneg %p49
        %p337 = pneg %p46
        %p338 = pneg %p70
        %p339 = pneg %p67
        %p340 = pneg %p91
        %p341 = pneg %p88
        %s342 = sand.u32 %s28, 1
        %s343 = scalar_lea.sflag [#allocation9], %s342
        %s344 = sand.u32 %s104, 1
        %s345 = smul.addr %s344, 32
        %s346 = scalar_lea.vmem [#allocation8], %s345
        %p347 = pneg %p117
        %p348 = pneg %p114
        %p349 = pneg %p138
        %p350 = pneg %p135
        %p351 = pneg %p159
        %p352 = pneg %p156
        %p353 = pneg %p185
        %p354 = pneg %p182
        %s355 = sand.u32 %s172, 1
        %s356 = scalar_lea.sflag [#allocation4], %s355
        %s357 = sand.u32 %s172, 1
        %s358 = smul.addr %s357, 64
        %s359 = scalar_lea.vmem [#allocation13], %s358
        %s360 = smul.u32 8, %s28
        %s361 = smul.u32 8, %s28
        %s362 = smul.u32 8, %s28
        %v363 = vld [vmem:[%s301] sm:$0xf]
        %v364 = vld [vmem:[%s301 + $0x4] sm:$0xf]
        %v365 = vld [vmem:[%s301 + $0x8] sm:$0xf]
        %v366 = vld [vmem:[%s301 + $0xc] sm:$0xf]
        %v367 = vld [vmem:[%s301 + $0x10] sm:$0xf]
        %v368 = vld [vmem:[%s301 + $0x14] sm:$0xf]
        %v369 = vld [vmem:[%s301 + $0x18] sm:$0xf]
        %v370 = vld [vmem:[%s301 + $0x1c] sm:$0xf]
        %v371 = vunpack.c.l.bf16 %v363
        %v372 = vunpack.c.l.bf16 %v364
        %v373 = vunpack.c.l.bf16 %v365
        %v374 = vunpack.c.l.bf16 %v366
        %v375 = vunpack.c.l.bf16 %v367
        %v376 = vunpack.c.l.bf16 %v368
        %v377 = vunpack.c.l.bf16 %v369
        %v378 = vunpack.c.l.bf16 %v370
        %v379 = vld [vmem:[#allocation5] sm:$0x1]
        %v381 = vlaneseq
        %v382 = vshrl.u32 %v381, 7
        %v383 = vsub.s32 0, %v382
        %v384 = vrot.slane %v379, %v383
        %v386 = vmul.f32 %v371, %v384
        %v387 = vmul.f32 %v372, %v384
        %v388 = vmul.f32 %v373, %v384
        %v389 = vmul.f32 %v374, %v384
        %v390 = vmul.f32 %v375, %v384
        %v391 = vmul.f32 %v376, %v384
        %v392 = vmul.f32 %v377, %v384
        %v393 = vmul.f32 %v378, %v384
        %v394 = vld [vmem:[#allocation7] sm:$0x1]
        %v396 = vlaneseq
        %v397 = vshrl.u32 %v396, 7
        %v398 = vsub.s32 0, %v397
        %v399 = vrot.slane %v394, %v398
        %v401 = vadd.f32 %v386, %v399
        %v402 = vadd.f32 %v387, %v399
        %v403 = vadd.f32 %v388, %v399
        %v404 = vadd.f32 %v389, %v399
        %v405 = vadd.f32 %v390, %v399
        %v406 = vadd.f32 %v391, %v399
        %v407 = vadd.f32 %v392, %v399
        %v408 = vadd.f32 %v393, %v399
        %v409 = vld [vmem:[%s318] sm:$0xf]
        %v410 = vld [vmem:[%s318 + $0x4] sm:$0xf]
        %v411 = vld [vmem:[%s318 + $0x8] sm:$0xf]
        %v412 = vld [vmem:[%s318 + $0xc] sm:$0xf]
        %v413 = vld [vmem:[%s318 + $0x10] sm:$0xf]
        %v414 = vld [vmem:[%s318 + $0x14] sm:$0xf]
        %v415 = vld [vmem:[%s318 + $0x18] sm:$0xf]
        %v416 = vld [vmem:[%s318 + $0x1c] sm:$0xf]
        %v417 = vunpack.c.l.bf16 %v409
        %v418 = vunpack.c.l.bf16 %v410
        %v419 = vunpack.c.l.bf16 %v411
        %v420 = vunpack.c.l.bf16 %v412
        %v421 = vunpack.c.l.bf16 %v413
        %v422 = vunpack.c.l.bf16 %v414
        %v423 = vunpack.c.l.bf16 %v415
        %v424 = vunpack.c.l.bf16 %v416
        %v425 = vld [vmem:[#allocation10] sm:$0x1]
        %v427 = vlaneseq
        %v428 = vshrl.u32 %v427, 7
        %v429 = vsub.s32 0, %v428
        %v430 = vrot.slane %v425, %v429
        %v432 = vmul.f32 %v417, %v430
        %v433 = vmul.f32 %v418, %v430
        %v434 = vmul.f32 %v419, %v430
        %v435 = vmul.f32 %v420, %v430
        %v436 = vmul.f32 %v421, %v430
        %v437 = vmul.f32 %v422, %v430
        %v438 = vmul.f32 %v423, %v430
        %v439 = vmul.f32 %v424, %v430
        %v440 = vld [vmem:[#allocation11] sm:$0x1]
        %v442 = vlaneseq
        %v443 = vshrl.u32 %v442, 7
        %v444 = vsub.s32 0, %v443
        %v445 = vrot.slane %v440, %v444
        %v447 = vadd.f32 %v432, %v445
        %v448 = vadd.f32 %v433, %v445
        %v449 = vadd.f32 %v434, %v445
        %v450 = vadd.f32 %v435, %v445
        %v451 = vadd.f32 %v436, %v445
        %v452 = vadd.f32 %v437, %v445
        %v453 = vadd.f32 %v438, %v445
        %v454 = vadd.f32 %v439, %v445
        %v455 = vadd.f32 %v401, %v447
        %v456 = vadd.f32 %v402, %v448
        %v457 = vadd.f32 %v403, %v449
        %v458 = vadd.f32 %v404, %v450
        %v459 = vadd.f32 %v405, %v451
        %v460 = vadd.f32 %v406, %v452
        %v461 = vadd.f32 %v407, %v453
        %v462 = vadd.f32 %v408, %v454
        %v463 = vmax.f32 %v455, 0.0
        %v464 = vmax.f32 %v456, 0.0
        %v465 = vmax.f32 %v457, 0.0
        %v466 = vmax.f32 %v458, 0.0
        %v467 = vmax.f32 %v459, 0.0
        %v468 = vmax.f32 %v460, 0.0
        %v469 = vmax.f32 %v461, 0.0
        %v470 = vmax.f32 %v462, 0.0
        %471 = vst [vmem:[%s359] sm:$0xff] %v463
        %472 = vst [vmem:[%s359 + $0x8] sm:$0xff] %v464
        %473 = vst [vmem:[%s359 + $0x10] sm:$0xff] %v465
        %474 = vst [vmem:[%s359 + $0x18] sm:$0xff] %v466
        %475 = vst [vmem:[%s359 + $0x20] sm:$0xff] %v467
        %476 = vst [vmem:[%s359 + $0x28] sm:$0xff] %v468
        %477 = vst [vmem:[%s359 + $0x30] sm:$0xff] %v469
        %478 = vst [vmem:[%s359 + $0x38] sm:$0xff] %v470
        %s479 = sand.u32 %s172, 1
        %s480 = scalar_lea.sflag [#allocation4], %s479
        %s481 = sand.u32 %s172, 1
        %s482 = smul.addr %s481, 64
        %s483 = scalar_lea.vmem [#allocation13], %s482
        // Predicated region
        $region69: #{basic_block_forward.5} parent=43 // pred_check
          %p484 = pneg %p182
        $region70: #{basic_block_forward.5} parent=43 // pred_check_branch
          %486 = sbr.rel (%p484) target = $region72
        $region71: #{basic_block_forward.5} parent=43 // pred_region
          %s487 = smul.u32 8, %s28
          %s489 = ssub.s32 1024, 1024
          %490 = vsyncadd %s480, %s489
          %s491 = smul.addr %s487, 128
          %s492 = scalar_lea.hbm %s6, %s491
          %s493 = sshll.u32 %s483, 4
          %s494 = int_to_ptr.vmem [resolvable:$true] %s493
          %499 = dma.vmem_to_hbm [thread:$0]  %s494, 1024, %s492, %s480, 128, 128, 8
        $region72: #{basic_block_forward.5} parent=43 // pred_fallthru
          _
      $region44: #{basic_block_forward.5} parent=5 // pred_fallthru
        _
      %p500 = scmp.le.s32.totalorder 2, %s23
      // Predicated region
      $region73: #{basic_block_forward.5} parent=5 // pred_check
        %p501 = pneg %p500
      $region74: #{basic_block_forward.5} parent=5 // pred_check_branch
        %503 = sbr.rel (%p501) target = $region76
      $region75: #{basic_block_forward.5} parent=5 // pred_region
        %s504 = ssub.s32 %s23, 2
        // Predicated region
        $region77: #{basic_block_forward.5} parent=75 // pred_check
          %p505 = pneg %p188
        $region78: #{basic_block_forward.5} parent=75 // pred_check_branch
          %507 = sbr.rel (%p505) target = $region80
        $region79: #{basic_block_forward.5} parent=75 // pred_region
          %s508 = sand.u32 %s173, 1
          %s509 = scalar_lea.sflag [#allocation4], %s508
          %s510 = sand.u32 %s173, 1
          %s511 = smul.addr %s510, 64
          %s512 = scalar_lea.vmem [#allocation13], %s511
          %513 = dma.done %s509, 1024
        $region80: #{basic_block_forward.5} parent=75 // pred_fallthru
          _
      $region76: #{basic_block_forward.5} parent=5 // pred_fallthru
        _
    $region6: #{basic_block_forward.5} parent=1 // loop_footer
      %s27 = sadd.s32 1, %s23
    $region7: #{basic_block_forward.5} parent=1 // loop_footer_branch
      %22 = sbr.rel target = $region3
    $region8: #{basic_block_forward.5} parent=1 // loop_exit
      _
    %514 = vsyncpa [#allocation3], 1
    %s515 = scalar_lea.sflag [#allocation3], 1
    %516 = vsyncpa %s515, 1
    %517 = vsyncpa [#allocation6], 1
    %518 = vsyncpa [#allocation9], 1
    %s519 = scalar_lea.sflag [#allocation9], 1
    %520 = vsyncpa %s519, 1
    %521 = vsyncpa [#allocation12], 1
    %522 = vsyncpa [#allocation4], 1
    %s523 = scalar_lea.sflag [#allocation4], 1
    %524 = vsyncpa %s523, 1

// kernel: basic_block_forward.3
$region0: #{basic_block_forward.3}
  #allocation0 [shape = 'u32[]', space=smem, size = 0x4, offset = 0x4, fixed_abs, tag = 'smem constant byte address 0x4 - core index']
  #allocation1 [shape = 'u32[144,128]{1,0:T(1,128)}', space=vmem, size = 0x12000, scoped, tag = 'internal scratch']
  #allocation2 [shape = 'bf16[64,72]{1,0:T(16,128)(2,1)}', space=vmem, size = 0x4000, scoped, tag = 'scratch operand']
  %s0 = inlined_call_operand.hbm [shape: bf16[2,9,9,8], index: 0, kind: input, shape index: {}]
  %s1 = inlined_call_operand.hbm [shape: bf16[2,9,9,8], index: 1, kind: input, shape index: {}]
  %s2 = inlined_call_operand.hbm [shape: bf16[2,9,9,8], index: 2, kind: input, shape index: {}]
  %s3 = inlined_call_operand.hbm [shape: bf16[2,9,9,8], index: 3, kind: input, shape index: {}]
  %s4 = inlined_call_operand.hbm [shape: bf16[72,128], index: 4, kind: input, shape index: {}]
  %s5 = inlined_call_operand.hbm [shape: bf16[128,128], index: 5, kind: output, shape index: {0}]
  %s6 = inlined_call_operand.hbm [shape: f32[2,2,128], index: 6, kind: output, shape index: {1}]
  %7 = xla_tuple %s5, %s6
  %s8 = sld [smem:[#allocation0]]
  $region81: #{basic_block_forward.3} parent=0
    _
  %s10 = ssub.s32 1, %s8
  %s11 = scalar_select 0, %s10, %s8
  $region1: #{basic_block_forward.3} parent=0
    #allocation3 [shape = 'u8[73728]{0}', space=vmem, size = 0x12000, scoped, tag = 'input window, operand 0']
    #allocation4 [shape = 's32[2]{0}', space=sflag, size = 0x8, scoped, tag = 'scoped memory for basic_block_forward.3']
    #allocation5 [shape = 's32[2]{0}', space=sflag, size = 0x8, scoped, tag = 'scoped memory for basic_block_forward.3']
    #allocation6 [shape = 'u8[73728]{0}', space=vmem, size = 0x12000, scoped, tag = 'input window, operand 1']
    #allocation7 [shape = 's32[2]{0}', space=sflag, size = 0x8, scoped, tag = 'scoped memory for basic_block_forward.3']
    #allocation8 [shape = 'u8[73728]{0}', space=vmem, size = 0x12000, scoped, tag = 'input window, operand 2']
    #allocation9 [shape = 'u8[73728]{0}', space=vmem, size = 0x12000, scoped, tag = 'input window, operand 3']
    #allocation10 [shape = 's32[2]{0}', space=sflag, size = 0x8, scoped, tag = 'scoped memory for basic_block_forward.3']
    #allocation11 [shape = 'u8[18432]{0}', space=vmem, size = 0x4800, scoped, tag = 'input window, operand 4, single buffered']
    #allocation12 [shape = 'u8[32768]{0}', space=vmem, size = 0x8000, scoped, tag = 'output window, operand 0']
    #allocation13 [shape = 'u8[2048]{0}', space=vmem, size = 0x800, scoped, tag = 'output window, operand 1']
    #allocation14 [shape = 's32[2]{0}', space=sflag, size = 0x8, scoped, tag = 'scoped memory for basic_block_forward.3']
    %12 = vsyncpa [#allocation4], 0
    %s13 = scalar_lea.sflag [#allocation4], 1
    %14 = vsyncpa %s13, 0
    %15 = vsyncpa [#allocation7], 0
    %s16 = scalar_lea.sflag [#allocation7], 1
    %17 = vsyncpa %s16, 0
    %18 = vsyncpa [#allocation10], 0
    %s19 = scalar_lea.sflag [#allocation10], 1
    %20 = vsyncpa %s19, 0
    %21 = vsyncpa [#allocation5], 0
    %s22 = scalar_lea.sflag [#allocation5], 1
    %23 = vsyncpa %s22, 0
    %24 = vsyncpa [#allocation14], 0
    %s25 = scalar_lea.sflag [#allocation14], 1
    %26 = vsyncpa %s25, 0
    loop: start=0, step=1, limit=4
    $region2: #{basic_block_forward.3} parent=1 // loop_pre_header
      _
    $region3: #{basic_block_forward.3} parent=1 // loop_header
      %s28 = sphi 0, %s32
      %p29 = scmp.ge.s32.totalorder %s28, 4
      %s38 = sphi 0, %s40
      %s41 = sphi 0, %s38
      %s42 = sphi 0, %s41
      %s58 = sphi 0, %s42
      %s64 = sphi 0, %s66
      %s67 = sphi 0, %s64
      %s68 = sphi 0, %s67
      %s84 = sphi 0, %s68
      %s90 = sphi 0, %s92
      %s93 = sphi 0, %s90
      %s94 = sphi 0, %s93
      %s110 = sphi 0, %s94
      %s116 = sphi 0, %s118
      %s119 = sphi 0, %s116
      %s120 = sphi 0, %s119
      %s136 = sphi 0, %s120
      %s140 = sphi 0, %s140
      %s142 = sphi 0, %s140
      %s143 = sphi 0, %s142
      %s157 = sphi 0, %s143
      %s163 = sphi 0, %s165
      %s166 = sphi 0, %s163
      %s167 = sphi 0, %s166
      %s183 = sphi 0, %s167
      %s189 = sphi 0, %s191
      %s192 = sphi 0, %s189
      %s193 = sphi 0, %s192
      %s209 = sphi 0, %s193
    $region4: #{basic_block_forward.3} parent=1 // loop_header_branch
      %31 = sbr.rel (%p29) target = $region8
    $region5: #{basic_block_forward.3} parent=1 // loop_body
      %s33 = ssub.s32 %s28, 1
      %s34 = ssub.s32 %s28, 2
      %s35 = sadd.s32 %s28, 1
      %s36 = ssub.s32 %s28, %s35
      %p37 = scmp.eq.s32.totalorder %s36, 0
      %s39 = sadd.s32 %s38, 1
      %s40 = scalar_select %p37, %s38, %s39
      %p43 = pneg %p37
      %p44 = scmp.eq.s32.totalorder %s28, 1
      %p45 = por %p43, %p44
      %p46 = scmp.ne.s32.totalorder %s38, %s41
      %p47 = scmp.eq.s32.totalorder %s28, 0
      %p48 = por %p46, %p47
      %p49 = scmp.ne.s32.totalorder %s38, %s41
      %p50 = scmp.eq.s32.totalorder %s33, 1
      %p51 = por %p49, %p50
      %p52 = scmp.ne.s32.totalorder %s41, %s42
      %p53 = scmp.eq.s32.totalorder %s33, 0
      %p54 = por %p52, %p53
      %p55 = scmp.ne.s32.totalorder %s41, %s42
      %p56 = scmp.eq.s32.totalorder %s34, 1
      %p57 = por %p55, %p56
      %p59 = scmp.ne.s32.totalorder %s42, %s58
      %p60 = scmp.eq.s32.totalorder %s34, 0
      %p61 = por %p59, %p60
      %s62 = ssub.s32 %s28, %s35
      %p63 = scmp.eq.s32.totalorder %s62, 0
      %s65 = sadd.s32 %s64, 1
      %s66 = scalar_select %p63, %s64, %s65
      %p69 = pneg %p63
      %p70 = scmp.eq.s32.totalorder %s28, 1
      %p71 = por %p69, %p70
      %p72 = scmp.ne.s32.totalorder %s64, %s67
      %p73 = scmp.eq.s32.totalorder %s28, 0
      %p74 = por %p72, %p73
      %p75 = scmp.ne.s32.totalorder %s64, %s67
      %p76 = scmp.eq.s32.totalorder %s33, 1
      %p77 = por %p75, %p76
      %p78 = scmp.ne.s32.totalorder %s67, %s68
      %p79 = scmp.eq.s32.totalorder %s33, 0
      %p80 = por %p78, %p79
      %p81 = scmp.ne.s32.totalorder %s67, %s68
      %p82 = scmp.eq.s32.totalorder %s34, 1
      %p83 = por %p81, %p82
      %p85 = scmp.ne.s32.totalorder %s68, %s84
      %p86 = scmp.eq.s32.totalorder %s34, 0
      %p87 = por %p85, %p86
      %s88 = ssub.s32 %s28, %s35
      %p89 = scmp.eq.s32.totalorder %s88, 0
      %s91 = sadd.s32 %s90, 1
      %s92 = scalar_select %p89, %s90, %s91
      %p95 = pneg %p89
      %p96 = scmp.eq.s32.totalorder %s28, 1
      %p97 = por %p95, %p96
      %p98 = scmp.ne.s32.totalorder %s90, %s93
      %p99 = scmp.eq.s32.totalorder %s28, 0
      %p100 = por %p98, %p99
      %p101 = scmp.ne.s32.totalorder %s90, %s93
      %p102 = scmp.eq.s32.totalorder %s33, 1
      %p103 = por %p101, %p102
      %p104 = scmp.ne.s32.totalorder %s93, %s94
      %p105 = scmp.eq.s32.totalorder %s33, 0
      %p106 = por %p104, %p105
      %p107 = scmp.ne.s32.totalorder %s93, %s94
      %p108 = scmp.eq.s32.totalorder %s34, 1
      %p109 = por %p107, %p108
      %p111 = scmp.ne.s32.totalorder %s94, %s110
      %p112 = scmp.eq.s32.totalorder %s34, 0
      %p113 = por %p111, %p112
      %s114 = ssub.s32 %s28, %s35
      %p115 = scmp.eq.s32.totalorder %s114, 0
      %s117 = sadd.s32 %s116, 1
      %s118 = scalar_select %p115, %s116, %s117
      %p121 = pneg %p115
      %p122 = scmp.eq.s32.totalorder %s28, 1
      %p123 = por %p121, %p122
      %p124 = scmp.ne.s32.totalorder %s116, %s119
      %p125 = scmp.eq.s32.totalorder %s28, 0
      %p126 = por %p124, %p125
      %p127 = scmp.ne.s32.totalorder %s116, %s119
      %p128 = scmp.eq.s32.totalorder %s33, 1
      %p129 = por %p127, %p128
      %p130 = scmp.ne.s32.totalorder %s119, %s120
      %p131 = scmp.eq.s32.totalorder %s33, 0
      %p132 = por %p130, %p131
      %p133 = scmp.ne.s32.totalorder %s119, %s120
      %p134 = scmp.eq.s32.totalorder %s34, 1
      %p135 = por %p133, %p134
      %p137 = scmp.ne.s32.totalorder %s120, %s136
      %p138 = scmp.eq.s32.totalorder %s34, 0
      %p139 = por %p137, %p138
      %s141 = sadd.s32 %s140, 1
      %p144 = scmp.eq.s32.totalorder %s28, 1
      %p145 = scmp.ne.s32.totalorder %s140, %s142
      %p146 = scmp.eq.s32.totalorder %s28, 0
      %p147 = por %p145, %p146
      %p148 = scmp.ne.s32.totalorder %s140, %s142
      %p149 = scmp.eq.s32.totalorder %s33, 1
      %p150 = por %p148, %p149
      %p151 = scmp.ne.s32.totalorder %s142, %s143
      %p152 = scmp.eq.s32.totalorder %s33, 0
      %p153 = por %p151, %p152
      %p154 = scmp.ne.s32.totalorder %s142, %s143
      %p155 = scmp.eq.s32.totalorder %s34, 1
      %p156 = por %p154, %p155
      %p158 = scmp.ne.s32.totalorder %s143, %s157
      %p159 = scmp.eq.s32.totalorder %s34, 0
      %p160 = por %p158, %p159
      %s161 = ssub.s32 %s28, %s35
      %p162 = scmp.eq.s32.totalorder %s161, 0
      %s164 = sadd.s32 %s163, 1
      %s165 = scalar_select %p162, %s163, %s164
      %p168 = pneg %p162
      %p169 = scmp.eq.s32.totalorder %s28, 1
      %p170 = por %p168, %p169
      %p171 = scmp.ne.s32.totalorder %s163, %s166
      %p172 = scmp.eq.s32.totalorder %s28, 0
      %p173 = por %p171, %p172
      %p174 = scmp.ne.s32.totalorder %s163, %s166
      %p175 = scmp.eq.s32.totalorder %s33, 1
      %p176 = por %p174, %p175
      %p177 = scmp.ne.s32.totalorder %s166, %s167
      %p178 = scmp.eq.s32.totalorder %s33, 0
      %p179 = por %p177, %p178
      %p180 = scmp.ne.s32.totalorder %s166, %s167
      %p181 = scmp.eq.s32.totalorder %s34, 1
      %p182 = por %p180, %p181
      %p184 = scmp.ne.s32.totalorder %s167, %s183
      %p185 = scmp.eq.s32.totalorder %s34, 0
      %p186 = por %p184, %p185
      %s187 = ssub.s32 %s28, %s35
      %p188 = scmp.eq.s32.totalorder %s187, 0
      %s190 = sadd.s32 %s189, 1
      %s191 = scalar_select %p188, %s189, %s190
      %p194 = pneg %p188
      %p195 = scmp.eq.s32.totalorder %s28, 1
      %p196 = por %p194, %p195
      %p197 = scmp.ne.s32.totalorder %s189, %s192
      %p198 = scmp.eq.s32.totalorder %s28, 0
      %p199 = por %p197, %p198
      %p200 = scmp.ne.s32.totalorder %s189, %s192
      %p201 = scmp.eq.s32.totalorder %s33, 1
      %p202 = por %p200, %p201
      %p203 = scmp.ne.s32.totalorder %s192, %s193
      %p204 = scmp.eq.s32.totalorder %s33, 0
      %p205 = por %p203, %p204
      %p206 = scmp.ne.s32.totalorder %s192, %s193
      %p207 = scmp.eq.s32.totalorder %s34, 1
      %p208 = por %p206, %p207
      %p210 = scmp.ne.s32.totalorder %s193, %s209
      %p211 = scmp.eq.s32.totalorder %s34, 0
      %p212 = por %p210, %p211
      %p213 = scmp.le.s32.totalorder 1, %s28
      %p214 = scmp.lt.s32.totalorder %s28, 3
      %p215 = pnand %p213, %p214
      %p216 = pneg %p215
      // Predicated region
      $region9: #{basic_block_forward.3} parent=5 // pred_check
        _
      $region10: #{basic_block_forward.3} parent=5 // pred_check_branch
        %218 = sbr.rel (%p215) target = $region12
      $region11: #{basic_block_forward.3} parent=5 // pred_region
        %s219 = ssub.s32 %s28, 1
        // Predicated region
        $region13: #{basic_block_forward.3} parent=11 // pred_check
          %p220 = pneg %p153
        $region14: #{basic_block_forward.3} parent=11 // pred_check_branch
          %222 = sbr.rel (%p220) target = $region16
        $region15: #{basic_block_forward.3} parent=11 // pred_region
          %s224 = ssub.s32 576, 576
          %225 = vsyncadd [#allocation10], %s224
          %s226 = sshll.u32 [#allocation11], 4
          %s227 = int_to_ptr.vmem [resolvable:$true] %s226
          %232 = dma.hbm_to_vmem [thread:$0]  %s4, 576, %s227, [#allocation10], 64, 64, 4
        $region16: #{basic_block_forward.3} parent=11 // pred_fallthru
          _
      $region12: #{basic_block_forward.3} parent=5 // pred_fallthru
        _
      %p233 = scmp.lt.s32.totalorder %s28, 2
      // Predicated region
      $region17: #{basic_block_forward.3} parent=5 // pred_check
        %p234 = pneg %p233
      $region18: #{basic_block_forward.3} parent=5 // pred_check_branch
        %236 = sbr.rel (%p234) target = $region20
      $region19: #{basic_block_forward.3} parent=5 // pred_region
        // Predicated region
        $region21: #{basic_block_forward.3} parent=19 // pred_check
          %p237 = pneg %p48
        $region22: #{basic_block_forward.3} parent=19 // pred_check_branch
          %239 = sbr.rel (%p237) target = $region24
        $region23: #{basic_block_forward.3} parent=19 // pred_region
          %s240 = sand.u32 %s38, 1
          %s241 = scalar_lea.sflag [#allocation4], %s240
          %s242 = sand.u32 %s38, 1
          %s243 = smul.addr %s242, 72
          %s244 = scalar_lea.vmem [#allocation3], %s243
          %s246 = ssub.s32 1152, 1152
          %247 = vsyncadd %s241, %s246
          %s248 = smul.addr %s28, 18
          %s249 = smul.addr %s248, 64
          %s250 = scalar_lea.hbm %s0, %s249
          %s251 = sshll.u32 %s244, 4
          %s252 = int_to_ptr.vmem [resolvable:$true] %s251
          %257 = dma.hbm_to_vmem [thread:$0]  %s250, 1152, %s252, %s241, 64, 64, 4
        $region24: #{basic_block_forward.3} parent=19 // pred_fallthru
          _
        // Predicated region
        $region25: #{basic_block_forward.3} parent=19 // pred_check
          %p258 = pneg %p74
        $region26: #{basic_block_forward.3} parent=19 // pred_check_branch
          %260 = sbr.rel (%p258) target = $region28
        $region27: #{basic_block_forward.3} parent=19 // pred_region
          %s261 = sand.u32 %s28, 1
          %s262 = scalar_lea.sflag [#allocation7], %s261
          %s263 = sand.u32 %s64, 1
          %s264 = smul.addr %s263, 72
          %s265 = scalar_lea.vmem [#allocation6], %s264
          %s267 = ssub.s32 1152, 1152
          %268 = vsyncadd %s262, %s267
          %s269 = smul.addr %s28, 18
          %s270 = smul.addr %s269, 64
          %s271 = scalar_lea.hbm %s1, %s270
          %s272 = sshll.u32 %s265, 4
          %s273 = int_to_ptr.vmem [resolvable:$true] %s272
          %278 = dma.hbm_to_vmem [thread:$0]  %s271, 1152, %s273, %s262, 64, 64, 4
        $region28: #{basic_block_forward.3} parent=19 // pred_fallthru
          _
        // Predicated region
        $region29: #{basic_block_forward.3} parent=19 // pred_check
          %p279 = pneg %p100
        $region30: #{basic_block_forward.3} parent=19 // pred_check_branch
          %281 = sbr.rel (%p279) target = $region32
        $region31: #{basic_block_forward.3} parent=19 // pred_region
          %s282 = sand.u32 %s28, 1
          %s283 = scalar_lea.sflag [#allocation7], %s282
          %s284 = sand.u32 %s90, 1
          %s285 = smul.addr %s284, 72
          %s286 = scalar_lea.vmem [#allocation8], %s285
          %s288 = ssub.s32 1152, 1152
          %289 = vsyncadd %s283, %s288
          %s290 = smul.addr %s28, 18
          %s291 = smul.addr %s290, 64
          %s292 = scalar_lea.hbm %s2, %s291
          %s293 = sshll.u32 %s286, 4
          %s294 = int_to_ptr.vmem [resolvable:$true] %s293
          %299 = dma.hbm_to_vmem [thread:$0]  %s292, 1152, %s294, %s283, 64, 64, 4
        $region32: #{basic_block_forward.3} parent=19 // pred_fallthru
          _
        // Predicated region
        $region33: #{basic_block_forward.3} parent=19 // pred_check
          %p300 = pneg %p126
        $region34: #{basic_block_forward.3} parent=19 // pred_check_branch
          %302 = sbr.rel (%p300) target = $region36
        $region35: #{basic_block_forward.3} parent=19 // pred_region
          %s303 = sand.u32 %s28, 1
          %s304 = scalar_lea.sflag [#allocation10], %s303
          %s305 = sand.u32 %s116, 1
          %s306 = smul.addr %s305, 72
          %s307 = scalar_lea.vmem [#allocation9], %s306
          %s309 = ssub.s32 1152, 1152
          %310 = vsyncadd %s304, %s309
          %s311 = smul.addr %s28, 18
          %s312 = smul.addr %s311, 64
          %s313 = scalar_lea.hbm %s3, %s312
          %s314 = sshll.u32 %s307, 4
          %s315 = int_to_ptr.vmem [resolvable:$true] %s314
          %320 = dma.hbm_to_vmem [thread:$0]  %s313, 1152, %s315, %s304, 64, 64, 4
        $region36: #{basic_block_forward.3} parent=19 // pred_fallthru
          _
      $region20: #{basic_block_forward.3} parent=5 // pred_fallthru
        _
      %p321 = scmp.le.s32.totalorder 1, %s28
      %p322 = scmp.lt.s32.totalorder %s28, 3
      %p323 = pnand %p321, %p322
      %p324 = pneg %p323
      // Predicated region
      $region37: #{basic_block_forward.3} parent=5 // pred_check
        _
      $region38: #{basic_block_forward.3} parent=5 // pred_check_branch
        %326 = sbr.rel (%p323) target = $region40
      $region39: #{basic_block_forward.3} parent=5 // pred_region
        %s327 = ssub.s32 %s28, 1
        %s328 = sand.u32 %s41, 1
        %s329 = scalar_lea.sflag [#allocation4], %s328
        %s330 = sand.u32 %s41, 1
        %s331 = smul.addr %s330, 72
        %s332 = scalar_lea.vmem [#allocation3], %s331
        // Predicated region
        $region41: #{basic_block_forward.3} parent=39 // pred_check
          %p333 = pneg %p54
        $region42: #{basic_block_forward.3} parent=39 // pred_check_branch
          %335 = sbr.rel (%p333) target = $region44
        $region43: #{basic_block_forward.3} parent=39 // pred_region
          %336 = dma.done %s329, 1152
        $region44: #{basic_block_forward.3} parent=39 // pred_fallthru
          _
        %s337 = sand.u32 %s33, 1
        %s338 = scalar_lea.sflag [#allocation7], %s337
        %s339 = sand.u32 %s67, 1
        %s340 = smul.addr %s339, 72
        %s341 = scalar_lea.vmem [#allocation6], %s340
        // Predicated region
        $region45: #{basic_block_forward.3} parent=39 // pred_check
          %p342 = pneg %p80
        $region46: #{basic_block_forward.3} parent=39 // pred_check_branch
          %344 = sbr.rel (%p342) target = $region48
        $region47: #{basic_block_forward.3} parent=39 // pred_region
          %345 = dma.done %s338, 1152
        $region48: #{basic_block_forward.3} parent=39 // pred_fallthru
          _
        %s346 = sand.u32 %s33, 1
        %s347 = scalar_lea.sflag [#allocation7], %s346
        %s348 = sand.u32 %s93, 1
        %s349 = smul.addr %s348, 72
        %s350 = scalar_lea.vmem [#allocation8], %s349
        // Predicated region
        $region49: #{basic_block_forward.3} parent=39 // pred_check
          %p351 = pneg %p106
        $region50: #{basic_block_forward.3} parent=39 // pred_check_branch
          %353 = sbr.rel (%p351) target = $region52
        $region51: #{basic_block_forward.3} parent=39 // pred_region
          %354 = dma.done %s347, 1152
        $region52: #{basic_block_forward.3} parent=39 // pred_fallthru
          _
        %s355 = sand.u32 %s33, 1
        %s356 = scalar_lea.sflag [#allocation10], %s355
        %s357 = sand.u32 %s119, 1
        %s358 = smul.addr %s357, 72
        %s359 = scalar_lea.vmem [#allocation9], %s358
        // Predicated region
        $region53: #{basic_block_forward.3} parent=39 // pred_check
          %p360 = pneg %p132
        $region54: #{basic_block_forward.3} parent=39 // pred_check_branch
          %362 = sbr.rel (%p360) target = $region56
        $region55: #{basic_block_forward.3} parent=39 // pred_region
          %363 = dma.done %s356, 1152
        $region56: #{basic_block_forward.3} parent=39 // pred_fallthru
          _
        // Predicated region
        $region57: #{basic_block_forward.3} parent=39 // pred_check
          %p364 = pneg %p153
        $region58: #{basic_block_forward.3} parent=39 // pred_check_branch
          %366 = sbr.rel (%p364) target = $region60
        $region59: #{basic_block_forward.3} parent=39 // pred_region
          %367 = dma.done [#allocation10], 576
        $region60: #{basic_block_forward.3} parent=39 // pred_fallthru
          _
        %s368 = sand.u32 %s41, 1
        %s369 = scalar_lea.sflag [#allocation4], %s368
        %s370 = sand.u32 %s41, 1
        %s371 = smul.addr %s370, 72
        %s372 = scalar_lea.vmem [#allocation3], %s371
        %p373 = pneg %p54
        %p374 = pneg %p51
        %s375 = sand.u32 %s33, 1
        %s376 = scalar_lea.sflag [#allocation7], %s375
        %s377 = sand.u32 %s67, 1
        %s378 = smul.addr %s377, 72
        %s379 = scalar_lea.vmem [#allocation6], %s378
        %p380 = pneg %p80
        %p381 = pneg %p77
        %s382 = sand.u32 %s33, 1
        %s383 = scalar_lea.sflag [#allocation7], %s382
        %s384 = sand.u32 %s93, 1
        %s385 = smul.addr %s384, 72
        %s386 = scalar_lea.vmem [#allocation8], %s385
        %p387 = pneg %p106
        %p388 = pneg %p103
        %s389 = sand.u32 %s33, 1
        %s390 = scalar_lea.sflag [#allocation10], %s389
        %s391 = sand.u32 %s119, 1
        %s392 = smul.addr %s391, 72
        %s393 = scalar_lea.vmem [#allocation9], %s392
        %p394 = pneg %p132
        %p395 = pneg %p129
        %p396 = pneg %p153
        %p397 = pneg %p150
        %p398 = pneg %p179
        %p399 = pneg %p176
        %s400 = sand.u32 %s166, 1
        %s401 = scalar_lea.sflag [#allocation5], %s400
        %s402 = sand.u32 %s166, 1
        %s403 = smul.addr %s402, 32
        %s404 = scalar_lea.vmem [#allocation12], %s403
        %p405 = pneg %p205
        %p406 = pneg %p202
        %s407 = sand.u32 %s192, 1
        %s408 = scalar_lea.sflag [#allocation14], %s407
        %s409 = sand.u32 %s192, 1
        %s410 = smul.addr %s409, 2
        %s411 = scalar_lea.vmem [#allocation13], %s410
        %s412 = smul.u32 8, %s33
        %v414 = vld [vmem:[%s332] sm:$0xf]
        %v415 = vld [vmem:[%s332 + $0x8] sm:$0xf]
        %v416 = vld [vmem:[%s332 + $0x10] sm:$0xf]
        %v417 = vld [vmem:[%s332 + $0x18] sm:$0xf]
        %v418 = vld [vmem:[%s332 + $0x20] sm:$0xf]
        %v419 = vld [vmem:[%s332 + $0x28] sm:$0xf]
        %v420 = vld [vmem:[%s332 + $0x30] sm:$0xf]
        %v421 = vld [vmem:[%s332 + $0x38] sm:$0xf]
        %v430 = vunpack.c.l.b16 %v414
        %v431 = vunpack.c.l.b16 %v415
        %v432 = vunpack.c.l.b16 %v416
        %v433 = vunpack.c.l.b16 %v417
        %v434 = vunpack.c.l.b16 %v418
        %v435 = vunpack.c.l.b16 %v419
        %v436 = vunpack.c.l.b16 %v420
        %v437 = vunpack.c.l.b16 %v421
        %v438 = vpack.c.b16 %v431, %v430
        %v439 = vpack.c.b16 %v433, %v432
        %v440 = vpack.c.b16 %v435, %v434
        %v441 = vpack.c.b16 %v437, %v436
        %vm446 = vcmask 64512
        %447 = vst.msk [vmem:[#allocation2] sm:$0xff] %vm446, %v438
        %448 = vst.msk [vmem:[#allocation2 + $0x8] sm:$0xff] %vm446, %v439
        %449 = vst.msk [vmem:[#allocation2 + $0x10] sm:$0xff] %vm446, %v440
        %450 = vst.msk [vmem:[#allocation2 + $0x18] sm:$0xff] %vm446, %v441
        %v451 = vld [vmem:[%s341] sm:$0xf]
        %v452 = vld [vmem:[%s341 + $0x8] sm:$0xf]
        %v453 = vld [vmem:[%s341 + $0x10] sm:$0xf]
        %v454 = vld [vmem:[%s341 + $0x18] sm:$0xf]
        %v455 = vld [vmem:[%s341 + $0x20] sm:$0xf]
        %v456 = vld [vmem:[%s341 + $0x28] sm:$0xf]
        %v457 = vld [vmem:[%s341 + $0x30] sm:$0xf]
        %v458 = vld [vmem:[%s341 + $0x38] sm:$0xf]
        %v467 = vunpack.c.l.b16 %v451
        %v468 = vunpack.c.l.b16 %v452
        %v469 = vunpack.c.l.b16 %v453
        %v470 = vunpack.c.l.b16 %v454
        %v471 = vunpack.c.l.b16 %v455
        %v472 = vunpack.c.l.b16 %v456
        %v473 = vunpack.c.l.b16 %v457
        %v474 = vunpack.c.l.b16 %v458
        %v475 = vpack.c.b16 %v468, %v467
        %v476 = vpack.c.b16 %v470, %v469
        %v477 = vpack.c.b16 %v472, %v471
        %v478 = vpack.c.b16 %v474, %v473
        %479 = vrot.lane.b32.xlu0 %v475, 8
        %v480 = vpop.permute.xlu0 %479
        %481 = vrot.lane.b32.xlu0 %v476, 8
        %v482 = vpop.permute.xlu0 %481
        %483 = vrot.lane.b32.xlu0 %v477, 8
        %v484 = vpop.permute.xlu0 %483
        %485 = vrot.lane.b32.xlu0 %v478, 8
        %v486 = vpop.permute.xlu0 %485
        %vm491 = vcmask 130112
        %492 = vst.msk [vmem:[#allocation2] sm:$0xff] %vm491, %v480
        %493 = vst.msk [vmem:[#allocation2 + $0x8] sm:$0xff] %vm491, %v482
        %494 = vst.msk [vmem:[#allocation2 + $0x10] sm:$0xff] %vm491, %v484
        %495 = vst.msk [vmem:[#allocation2 + $0x18] sm:$0xff] %vm491, %v486
        %v496 = vld [vmem:[%s332] sm:$0xf]
        %v497 = vld [vmem:[%s332 + $0x4] sm:$0x1]
        %v498 = vld [vmem:[%s332 + $0x8] sm:$0xf]
        %v499 = vld [vmem:[%s332 + $0xc] sm:$0x1]
        %v500 = vld [vmem:[%s332 + $0x10] sm:$0xf]
        %v501 = vld [vmem:[%s332 + $0x14] sm:$0x1]
        %v502 = vld [vmem:[%s332 + $0x18] sm:$0xf]
        %v503 = vld [vmem:[%s332 + $0x1c] sm:$0x1]
        %v504 = vld [vmem:[%s332 + $0x20] sm:$0xf]
        %v505 = vld [vmem:[%s332 + $0x24] sm:$0x1]
        %v506 = vld [vmem:[%s332 + $0x28] sm:$0xf]
        %v507 = vld [vmem:[%s332 + $0x2c] sm:$0x1]
        %v508 = vld [vmem:[%s332 + $0x30] sm:$0xf]
        %v509 = vld [vmem:[%s332 + $0x34] sm:$0x1]
        %v510 = vld [vmem:[%s332 + $0x38] sm:$0xf]
        %v511 = vld [vmem:[%s332 + $0x3c] sm:$0x1]
        %vm512 = vsmask.f32 3328
        %vm513 = vsmask.f32 7440
        %vm514 = vmor %vm512, %vm513
        %v516 = vshrl.u32 %v496, 16
        %v518 = vrot.slane %v516, 4
        %v519 = vshll.u32 %v496, 16
        %v521 = vrot.slane %v519, 5
        %v522 = vor.u32 %v518, %v521
        %v523 = vrot.slane %v522, 4
        %v525 = vshll.u32 %v497, 16
        %v527 = vrot.slane %v525, 5
        %v528 = vsel %vm514, %v523, %v527
        %v530 = vshrl.u32 %v498, 16
        %v532 = vrot.slane %v530, 4
        %v533 = vshll.u32 %v498, 16
        %v535 = vrot.slane %v533, 5
        %v536 = vor.u32 %v532, %v535
        %v537 = vrot.slane %v536, 4
        %v539 = vshll.u32 %v499, 16
        %v541 = vrot.slane %v539, 5
        %v542 = vsel %vm514, %v537, %v541
        %v544 = vshrl.u32 %v500, 16
        %v546 = vrot.slane %v544, 4
        %v547 = vshll.u32 %v500, 16
        %v549 = vrot.slane %v547, 5
        %v550 = vor.u32 %v546, %v549
        %v551 = vrot.slane %v550, 4
        %v553 = vshll.u32 %v501, 16
        %v555 = vrot.slane %v553, 5
        %v556 = vsel %vm514, %v551, %v555
        %v558 = vshrl.u32 %v502, 16
        %v560 = vrot.slane %v558, 4
        %v561 = vshll.u32 %v502, 16
        %v563 = vrot.slane %v561, 5
        %v564 = vor.u32 %v560, %v563
        %v565 = vrot.slane %v564, 4
        %v567 = vshll.u32 %v503, 16
        %v569 = vrot.slane %v567, 5
        %v570 = vsel %vm514, %v565, %v569
        %v572 = vshrl.u32 %v504, 16
        %v574 = vrot.slane %v572, 4
        %v575 = vshll.u32 %v504, 16
        %v577 = vrot.slane %v575, 5
        %v578 = vor.u32 %v574, %v577
        %v579 = vrot.slane %v578, 4
        %v581 = vshll.u32 %v505, 16
        %v583 = vrot.slane %v581, 5
        %v584 = vsel %vm514, %v579, %v583
        %v586 = vshrl.u32 %v506, 16
        %v588 = vrot.slane %v586, 4
        %v589 = vshll.u32 %v506, 16
        %v591 = vrot.slane %v589, 5
        %v592 = vor.u32 %v588, %v591
        %v593 = vrot.slane %v592, 4
        %v595 = vshll.u32 %v507, 16
        %v597 = vrot.slane %v595, 5
        %v598 = vsel %vm514, %v593, %v597
        %v600 = vshrl.u32 %v508, 16
        %v602 = vrot.slane %v600, 4
        %v603 = vshll.u32 %v508, 16
        %v605 = vrot.slane %v603, 5
        %v606 = vor.u32 %v602, %v605
        %v607 = vrot.slane %v606, 4
        %v609 = vshll.u32 %v509, 16
        %v611 = vrot.slane %v609, 5
        %v612 = vsel %vm514, %v607, %v611
        %v614 = vshrl.u32 %v510, 16
        %v616 = vrot.slane %v614, 4
        %v617 = vshll.u32 %v510, 16
        %v619 = vrot.slane %v617, 5
        %v620 = vor.u32 %v616, %v619
        %v621 = vrot.slane %v620, 4
        %v623 = vshll.u32 %v511, 16
        %v625 = vrot.slane %v623, 5
        %v626 = vsel %vm514, %v621, %v625
        %v627 = vunpack.c.l.b16 %v528
        %v628 = vunpack.c.l.b16 %v542
        %v629 = vunpack.c.l.b16 %v556
        %v630 = vunpack.c.l.b16 %v570
        %v631 = vunpack.c.l.b16 %v584
        %v632 = vunpack.c.l.b16 %v598
        %v633 = vunpack.c.l.b16 %v612
        %v634 = vunpack.c.l.b16 %v626
        %v635 = vpack.c.b16 %v628, %v627
        %v636 = vpack.c.b16 %v630, %v629
        %v637 = vpack.c.b16 %v632, %v631
        %v638 = vpack.c.b16 %v634, %v633
        %639 = vrot.lane.b32.xlu0 %v635, 16
        %v640 = vpop.permute.xlu0 %639
        %641 = vrot.lane.b32.xlu0 %v636, 16
        %v642 = vpop.permute.xlu0 %641
        %643 = vrot.lane.b32.xlu0 %v637, 16
        %v644 = vpop.permute.xlu0 %643
        %645 = vrot.lane.b32.xlu0 %v638, 16
        %v646 = vpop.permute.xlu0 %645
        %vm651 = vcmask 195712
        %652 = vst.msk [vmem:[#allocation2] sm:$0xff] %vm651, %v640
        %653 = vst.msk [vmem:[#allocation2 + $0x8] sm:$0xff] %vm651, %v642
        %654 = vst.msk [vmem:[#allocation2 + $0x10] sm:$0xff] %vm651, %v644
        %655 = vst.msk [vmem:[#allocation2 + $0x18] sm:$0xff] %vm651, %v646
        %v656 = vld [vmem:[%s350] sm:$0xf]
        %v657 = vld [vmem:[%s350 + $0x8] sm:$0xf]
        %v658 = vld [vmem:[%s350 + $0x10] sm:$0xf]
        %v659 = vld [vmem:[%s350 + $0x18] sm:$0xf]
        %v660 = vld [vmem:[%s350 + $0x20] sm:$0xf]
        %v661 = vld [vmem:[%s350 + $0x28] sm:$0xf]
        %v662 = vld [vmem:[%s350 + $0x30] sm:$0xf]
        %v663 = vld [vmem:[%s350 + $0x38] sm:$0xf]
        %v672 = vunpack.c.l.b16 %v656
        %v673 = vunpack.c.l.b16 %v657
        %v674 = vunpack.c.l.b16 %v658
        %v675 = vunpack.c.l.b16 %v659
        %v676 = vunpack.c.l.b16 %v660
        %v677 = vunpack.c.l.b16 %v661
        %v678 = vunpack.c.l.b16 %v662
        %v679 = vunpack.c.l.b16 %v663
        %v680 = vpack.c.b16 %v673, %v672
        %v681 = vpack.c.b16 %v675, %v674
        %v682 = vpack.c.b16 %v677, %v676
        %v683 = vpack.c.b16 %v679, %v678
        %684 = vrot.lane.b32.xlu0 %v680, 24
        %v685 = vpop.permute.xlu0 %684
        %686 = vrot.lane.b32.xlu0 %v681, 24
        %v687 = vpop.permute.xlu0 %686
        %688 = vrot.lane.b32.xlu0 %v682, 24
        %v689 = vpop.permute.xlu0 %688
        %690 = vrot.lane.b32.xlu0 %v683, 24
        %v691 = vpop.permute.xlu0 %690
        %vm696 = vcmask 261312
        %697 = vst.msk [vmem:[#allocation2] sm:$0xff] %vm696, %v685
        %698 = vst.msk [vmem:[#allocation2 + $0x8] sm:$0xff] %vm696, %v687
        %699 = vst.msk [vmem:[#allocation2 + $0x10] sm:$0xff] %vm696, %v689
        %700 = vst.msk [vmem:[#allocation2 + $0x18] sm:$0xff] %vm696, %v691
        %v701 = vld [vmem:[%s359] sm:$0xf]
        %v702 = vld [vmem:[%s359 + $0x8] sm:$0xf]
        %v703 = vld [vmem:[%s359 + $0x10] sm:$0xf]
        %v704 = vld [vmem:[%s359 + $0x18] sm:$0xf]
        %v705 = vld [vmem:[%s359 + $0x20] sm:$0xf]
        %v706 = vld [vmem:[%s359 + $0x28] sm:$0xf]
        %v707 = vld [vmem:[%s359 + $0x30] sm:$0xf]
        %v708 = vld [vmem:[%s359 + $0x38] sm:$0xf]
        %v717 = vunpack.c.l.b16 %v701
        %v718 = vunpack.c.l.b16 %v702
        %v719 = vunpack.c.l.b16 %v703
        %v720 = vunpack.c.l.b16 %v704
        %v721 = vunpack.c.l.b16 %v705
        %v722 = vunpack.c.l.b16 %v706
        %v723 = vunpack.c.l.b16 %v707
        %v724 = vunpack.c.l.b16 %v708
        %v725 = vpack.c.b16 %v718, %v717
        %v726 = vpack.c.b16 %v720, %v719
        %v727 = vpack.c.b16 %v722, %v721
        %v728 = vpack.c.b16 %v724, %v723
        %729 = vrot.lane.b32.xlu0 %v725, 32
        %v730 = vpop.permute.xlu0 %729
        %731 = vrot.lane.b32.xlu0 %v726, 32
        %v732 = vpop.permute.xlu0 %731
        %733 = vrot.lane.b32.xlu0 %v727, 32
        %v734 = vpop.permute.xlu0 %733
        %735 = vrot.lane.b32.xlu0 %v728, 32
        %v736 = vpop.permute.xlu0 %735
        %vm741 = vcmask 326912
        %742 = vst.msk [vmem:[#allocation2] sm:$0xff] %vm741, %v730
        %743 = vst.msk [vmem:[#allocation2 + $0x8] sm:$0xff] %vm741, %v732
        %744 = vst.msk [vmem:[#allocation2 + $0x10] sm:$0xff] %vm741, %v734
        %745 = vst.msk [vmem:[#allocation2 + $0x18] sm:$0xff] %vm741, %v736
        %v746 = vld [vmem:[%s350] sm:$0xf]
        %v747 = vld [vmem:[%s350 + $0x4] sm:$0x1]
        %v748 = vld [vmem:[%s350 + $0x8] sm:$0xf]
        %v749 = vld [vmem:[%s350 + $0xc] sm:$0x1]
        %v750 = vld [vmem:[%s350 + $0x10] sm:$0xf]
        %v751 = vld [vmem:[%s350 + $0x14] sm:$0x1]
        %v752 = vld [vmem:[%s350 + $0x18] sm:$0xf]
        %v753 = vld [vmem:[%s350 + $0x1c] sm:$0x1]
        %v754 = vld [vmem:[%s350 + $0x20] sm:$0xf]
        %v755 = vld [vmem:[%s350 + $0x24] sm:$0x1]
        %v756 = vld [vmem:[%s350 + $0x28] sm:$0xf]
        %v757 = vld [vmem:[%s350 + $0x2c] sm:$0x1]
        %v758 = vld [vmem:[%s350 + $0x30] sm:$0xf]
        %v759 = vld [vmem:[%s350 + $0x34] sm:$0x1]
        %v760 = vld [vmem:[%s350 + $0x38] sm:$0xf]
        %v761 = vld [vmem:[%s350 + $0x3c] sm:$0x1]
        %v763 = vshrl.u32 %v746, 16
        %v765 = vrot.slane %v763, 4
        %v766 = vshll.u32 %v746, 16
        %v768 = vrot.slane %v766, 5
        %v769 = vor.u32 %v765, %v768
        %v770 = vrot.slane %v769, 4
        %v772 = vshll.u32 %v747, 16
        %v774 = vrot.slane %v772, 5
        %v775 = vsel %vm514, %v770, %v774
        %v777 = vshrl.u32 %v748, 16
        %v779 = vrot.slane %v777, 4
        %v780 = vshll.u32 %v748, 16
        %v782 = vrot.slane %v780, 5
        %v783 = vor.u32 %v779, %v782
        %v784 = vrot.slane %v783, 4
        %v786 = vshll.u32 %v749, 16
        %v788 = vrot.slane %v786, 5
        %v789 = vsel %vm514, %v784, %v788
        %v791 = vshrl.u32 %v750, 16
        %v793 = vrot.slane %v791, 4
        %v794 = vshll.u32 %v750, 16
        %v796 = vrot.slane %v794, 5
        %v797 = vor.u32 %v793, %v796
        %v798 = vrot.slane %v797, 4
        %v800 = vshll.u32 %v751, 16
        %v802 = vrot.slane %v800, 5
        %v803 = vsel %vm514, %v798, %v802
        %v805 = vshrl.u32 %v752, 16
        %v807 = vrot.slane %v805, 4
        %v808 = vshll.u32 %v752, 16
        %v810 = vrot.slane %v808, 5
        %v811 = vor.u32 %v807, %v810
        %v812 = vrot.slane %v811, 4
        %v814 = vshll.u32 %v753, 16
        %v816 = vrot.slane %v814, 5
        %v817 = vsel %vm514, %v812, %v816
        %v819 = vshrl.u32 %v754, 16
        %v821 = vrot.slane %v819, 4
        %v822 = vshll.u32 %v754, 16
        %v824 = vrot.slane %v822, 5
        %v825 = vor.u32 %v821, %v824
        %v826 = vrot.slane %v825, 4
        %v828 = vshll.u32 %v755, 16
        %v830 = vrot.slane %v828, 5
        %v831 = vsel %vm514, %v826, %v830
        %v833 = vshrl.u32 %v756, 16
        %v835 = vrot.slane %v833, 4
        %v836 = vshll.u32 %v756, 16
        %v838 = vrot.slane %v836, 5
        %v839 = vor.u32 %v835, %v838
        %v840 = vrot.slane %v839, 4
        %v842 = vshll.u32 %v757, 16
        %v844 = vrot.slane %v842, 5
        %v845 = vsel %vm514, %v840, %v844
        %v847 = vshrl.u32 %v758, 16
        %v849 = vrot.slane %v847, 4
        %v850 = vshll.u32 %v758, 16
        %v852 = vrot.slane %v850, 5
        %v853 = vor.u32 %v849, %v852
        %v854 = vrot.slane %v853, 4
        %v856 = vshll.u32 %v759, 16
        %v858 = vrot.slane %v856, 5
        %v859 = vsel %vm514, %v854, %v858
        %v861 = vshrl.u32 %v760, 16
        %v863 = vrot.slane %v861, 4
        %v864 = vshll.u32 %v760, 16
        %v866 = vrot.slane %v864, 5
        %v867 = vor.u32 %v863, %v866
        %v868 = vrot.slane %v867, 4
        %v870 = vshll.u32 %v761, 16
        %v872 = vrot.slane %v870, 5
        %v873 = vsel %vm514, %v868, %v872
        %v874 = vunpack.c.l.b16 %v775
        %v875 = vunpack.c.l.b16 %v789
        %v876 = vunpack.c.l.b16 %v803
        %v877 = vunpack.c.l.b16 %v817
        %v878 = vunpack.c.l.b16 %v831
        %v879 = vunpack.c.l.b16 %v845
        %v880 = vunpack.c.l.b16 %v859
        %v881 = vunpack.c.l.b16 %v873
        %v882 = vpack.c.b16 %v875, %v874
        %v883 = vpack.c.b16 %v877, %v876
        %v884 = vpack.c.b16 %v879, %v878
        %v885 = vpack.c.b16 %v881, %v880
        %886 = vrot.lane.b32.xlu0 %v882, 40
        %v887 = vpop.permute.xlu0 %886
        %888 = vrot.lane.b32.xlu0 %v883, 40
        %v889 = vpop.permute.xlu0 %888
        %890 = vrot.lane.b32.xlu0 %v884, 40
        %v891 = vpop.permute.xlu0 %890
        %892 = vrot.lane.b32.xlu0 %v885, 40
        %v893 = vpop.permute.xlu0 %892
        %vm898 = vcmask 392512
        %899 = vst.msk [vmem:[#allocation2] sm:$0xff] %vm898, %v887
        %900 = vst.msk [vmem:[#allocation2 + $0x8] sm:$0xff] %vm898, %v889
        %901 = vst.msk [vmem:[#allocation2 + $0x10] sm:$0xff] %vm898, %v891
        %902 = vst.msk [vmem:[#allocation2 + $0x18] sm:$0xff] %vm898, %v893
        %s903 = scalar_lea.vmem %s332, 8 [#allocation3]
        %v904 = vld [vmem:[%s903] sm:$0xf]
        %v905 = vld [vmem:[%s903 + $0x8] sm:$0xf]
        %v906 = vld [vmem:[%s903 + $0x10] sm:$0xf]
        %v907 = vld [vmem:[%s903 + $0x18] sm:$0xf]
        %v908 = vld [vmem:[%s903 + $0x20] sm:$0xf]
        %v909 = vld [vmem:[%s903 + $0x28] sm:$0xf]
        %v910 = vld [vmem:[%s903 + $0x30] sm:$0xf]
        %v911 = vld [vmem:[%s903 + $0x38] sm:$0xf]
        %v920 = vunpack.c.l.b16 %v904
        %v921 = vunpack.c.l.b16 %v905
        %v922 = vunpack.c.l.b16 %v906
        %v923 = vunpack.c.l.b16 %v907
        %v924 = vunpack.c.l.b16 %v908
        %v925 = vunpack.c.l.b16 %v909
        %v926 = vunpack.c.l.b16 %v910
        %v927 = vunpack.c.l.b16 %v911
        %v928 = vpack.c.b16 %v921, %v920
        %v929 = vpack.c.b16 %v923, %v922
        %v930 = vpack.c.b16 %v925, %v924
        %v931 = vpack.c.b16 %v927, %v926
        %932 = vrot.lane.b32.xlu0 %v928, 48
        %v933 = vpop.permute.xlu0 %932
        %934 = vrot.lane.b32.xlu0 %v929, 48
        %v935 = vpop.permute.xlu0 %934
        %936 = vrot.lane.b32.xlu0 %v930, 48
        %v937 = vpop.permute.xlu0 %936
        %938 = vrot.lane.b32.xlu0 %v931, 48
        %v939 = vpop.permute.xlu0 %938
        %vm944 = vcmask 458112
        %945 = vst.msk [vmem:[#allocation2] sm:$0xff] %vm944, %v933
        %946 = vst.msk [vmem:[#allocation2 + $0x8] sm:$0xff] %vm944, %v935
        %947 = vst.msk [vmem:[#allocation2 + $0x10] sm:$0xff] %vm944, %v937
        %948 = vst.msk [vmem:[#allocation2 + $0x18] sm:$0xff] %vm944, %v939
        %s949 = scalar_lea.vmem %s341, 8 [#allocation6]
        %v950 = vld [vmem:[%s949] sm:$0xf]
        %v951 = vld [vmem:[%s949 + $0x8] sm:$0xf]
        %v952 = vld [vmem:[%s949 + $0x10] sm:$0xf]
        %v953 = vld [vmem:[%s949 + $0x18] sm:$0xf]
        %v954 = vld [vmem:[%s949 + $0x20] sm:$0xf]
        %v955 = vld [vmem:[%s949 + $0x28] sm:$0xf]
        %v956 = vld [vmem:[%s949 + $0x30] sm:$0xf]
        %v957 = vld [vmem:[%s949 + $0x38] sm:$0xf]
        %v966 = vunpack.c.l.b16 %v950
        %v967 = vunpack.c.l.b16 %v951
        %v968 = vunpack.c.l.b16 %v952
        %v969 = vunpack.c.l.b16 %v953
        %v970 = vunpack.c.l.b16 %v954
        %v971 = vunpack.c.l.b16 %v955
        %v972 = vunpack.c.l.b16 %v956
        %v973 = vunpack.c.l.b16 %v957
        %v974 = vpack.c.b16 %v967, %v966
        %v975 = vpack.c.b16 %v969, %v968
        %v976 = vpack.c.b16 %v971, %v970
        %v977 = vpack.c.b16 %v973, %v972
        %978 = vrot.lane.b32.xlu0 %v974, 56
        %v979 = vpop.permute.xlu0 %978
        %980 = vrot.lane.b32.xlu0 %v975, 56
        %v981 = vpop.permute.xlu0 %980
        %982 = vrot.lane.b32.xlu0 %v976, 56
        %v983 = vpop.permute.xlu0 %982
        %984 = vrot.lane.b32.xlu0 %v977, 56
        %v985 = vpop.permute.xlu0 %984
        %vm990 = vcmask 523712
        %991 = vst.msk [vmem:[#allocation2] sm:$0xff] %vm990, %v979
        %992 = vst.msk [vmem:[#allocation2 + $0x8] sm:$0xff] %vm990, %v981
        %993 = vst.msk [vmem:[#allocation2 + $0x10] sm:$0xff] %vm990, %v983
        %994 = vst.msk [vmem:[#allocation2 + $0x18] sm:$0xff] %vm990, %v985
        %v995 = vld [vmem:[%s903] sm:$0xf]
        %v996 = vld [vmem:[%s903 + $0x4] sm:$0x1]
        %v997 = vld [vmem:[%s903 + $0x8] sm:$0xf]
        %v998 = vld [vmem:[%s903 + $0xc] sm:$0x1]
        %v999 = vld [vmem:[%s903 + $0x10] sm:$0xf]
        %v1000 = vld [vmem:[%s903 + $0x14] sm:$0x1]
        %v1001 = vld [vmem:[%s903 + $0x18] sm:$0xf]
        %v1002 = vld [vmem:[%s903 + $0x1c] sm:$0x1]
        %v1003 = vld [vmem:[%s903 + $0x20] sm:$0xf]
        %v1004 = vld [vmem:[%s903 + $0x24] sm:$0x1]
        %v1005 = vld [vmem:[%s903 + $0x28] sm:$0xf]
        %v1006 = vld [vmem:[%s903 + $0x2c] sm:$0x1]
        %v1007 = vld [vmem:[%s903 + $0x30] sm:$0xf]
        %v1008 = vld [vmem:[%s903 + $0x34] sm:$0x1]
        %v1009 = vld [vmem:[%s903 + $0x38] sm:$0xf]
        %v1010 = vld [vmem:[%s903 + $0x3c] sm:$0x1]
        %v1012 = vshrl.u32 %v995, 16
        %v1014 = vrot.slane %v1012, 4
        %v1015 = vshll.u32 %v995, 16
        %v1017 = vrot.slane %v1015, 5
        %v1018 = vor.u32 %v1014, %v1017
        %v1019 = vrot.slane %v1018, 4
        %v1021 = vshll.u32 %v996, 16
        %v1023 = vrot.slane %v1021, 5
        %v1024 = vsel %vm514, %v1019, %v1023
        %v1026 = vshrl.u32 %v997, 16
        %v1028 = vrot.slane %v1026, 4
        %v1029 = vshll.u32 %v997, 16
        %v1031 = vrot.slane %v1029, 5
        %v1032 = vor.u32 %v1028, %v1031
        %v1033 = vrot.slane %v1032, 4
        %v1035 = vshll.u32 %v998, 16
        %v1037 = vrot.slane %v1035, 5
        %v1038 = vsel %vm514, %v1033, %v1037
        %v1040 = vshrl.u32 %v999, 16
        %v1042 = vrot.slane %v1040, 4
        %v1043 = vshll.u32 %v999, 16
        %v1045 = vrot.slane %v1043, 5
        %v1046 = vor.u32 %v1042, %v1045
        %v1047 = vrot.slane %v1046, 4
        %v1049 = vshll.u32 %v1000, 16
        %v1051 = vrot.slane %v1049, 5
        %v1052 = vsel %vm514, %v1047, %v1051
        %v1054 = vshrl.u32 %v1001, 16
        %v1056 = vrot.slane %v1054, 4
        %v1057 = vshll.u32 %v1001, 16
        %v1059 = vrot.slane %v1057, 5
        %v1060 = vor.u32 %v1056, %v1059
        %v1061 = vrot.slane %v1060, 4
        %v1063 = vshll.u32 %v1002, 16
        %v1065 = vrot.slane %v1063, 5
        %v1066 = vsel %vm514, %v1061, %v1065
        %v1068 = vshrl.u32 %v1003, 16
        %v1070 = vrot.slane %v1068, 4
        %v1071 = vshll.u32 %v1003, 16
        %v1073 = vrot.slane %v1071, 5
        %v1074 = vor.u32 %v1070, %v1073
        %v1075 = vrot.slane %v1074, 4
        %v1077 = vshll.u32 %v1004, 16
        %v1079 = vrot.slane %v1077, 5
        %v1080 = vsel %vm514, %v1075, %v1079
        %v1082 = vshrl.u32 %v1005, 16
        %v1084 = vrot.slane %v1082, 4
        %v1085 = vshll.u32 %v1005, 16
        %v1087 = vrot.slane %v1085, 5
        %v1088 = vor.u32 %v1084, %v1087
        %v1089 = vrot.slane %v1088, 4
        %v1091 = vshll.u32 %v1006, 16
        %v1093 = vrot.slane %v1091, 5
        %v1094 = vsel %vm514, %v1089, %v1093
        %v1096 = vshrl.u32 %v1007, 16
        %v1098 = vrot.slane %v1096, 4
        %v1099 = vshll.u32 %v1007, 16
        %v1101 = vrot.slane %v1099, 5
        %v1102 = vor.u32 %v1098, %v1101
        %v1103 = vrot.slane %v1102, 4
        %v1105 = vshll.u32 %v1008, 16
        %v1107 = vrot.slane %v1105, 5
        %v1108 = vsel %vm514, %v1103, %v1107
        %v1110 = vshrl.u32 %v1009, 16
        %v1112 = vrot.slane %v1110, 4
        %v1113 = vshll.u32 %v1009, 16
        %v1115 = vrot.slane %v1113, 5
        %v1116 = vor.u32 %v1112, %v1115
        %v1117 = vrot.slane %v1116, 4
        %v1119 = vshll.u32 %v1010, 16
        %v1121 = vrot.slane %v1119, 5
        %v1122 = vsel %vm514, %v1117, %v1121
        %v1123 = vunpack.c.l.b16 %v1024
        %v1124 = vunpack.c.l.b16 %v1038
        %v1125 = vunpack.c.l.b16 %v1052
        %v1126 = vunpack.c.l.b16 %v1066
        %v1127 = vunpack.c.l.b16 %v1080
        %v1128 = vunpack.c.l.b16 %v1094
        %v1129 = vunpack.c.l.b16 %v1108
        %v1130 = vunpack.c.l.b16 %v1122
        %v1131 = vpack.c.b16 %v1124, %v1123
        %v1132 = vpack.c.b16 %v1126, %v1125
        %v1133 = vpack.c.b16 %v1128, %v1127
        %v1134 = vpack.c.b16 %v1130, %v1129
        %1135 = vrot.lane.b32.xlu0 %v1131, 64
        %v1136 = vpop.permute.xlu0 %1135
        %1137 = vrot.lane.b32.xlu0 %v1132, 64
        %v1138 = vpop.permute.xlu0 %1137
        %1139 = vrot.lane.b32.xlu0 %v1133, 64
        %v1140 = vpop.permute.xlu0 %1139
        %1141 = vrot.lane.b32.xlu0 %v1134, 64
        %v1142 = vpop.permute.xlu0 %1141
        %vm1147 = vcmask 589312
        %1148 = vst.msk [vmem:[#allocation2] sm:$0xff] %vm1147, %v1136
        %1149 = vst.msk [vmem:[#allocation2 + $0x8] sm:$0xff] %vm1147, %v1138
        %1150 = vst.msk [vmem:[#allocation2 + $0x10] sm:$0xff] %vm1147, %v1140
        %1151 = vst.msk [vmem:[#allocation2 + $0x18] sm:$0xff] %vm1147, %v1142
        %v1152 = vld [vmem:[#allocation2] sm:$0xff]
        %v1153 = vld [vmem:[#allocation2 + $0x8] sm:$0xff]
        %v1154 = vld [vmem:[#allocation2 + $0x10] sm:$0xff]
        %v1155 = vld [vmem:[#allocation2 + $0x18] sm:$0xff]
        %v1156 = vld [vmem:[#allocation11] sm:$0xf]
        %v1157 = vld [vmem:[#allocation11 + $0x4] sm:$0xf]
        %v1158 = vld [vmem:[#allocation11 + $0x8] sm:$0xf]
        %v1159 = vld [vmem:[#allocation11 + $0xc] sm:$0xf]
        %v1160 = vld [vmem:[#allocation11 + $0x10] sm:$0xf]
        %v1161 = vld [vmem:[#allocation11 + $0x14] sm:$0xf]
        %v1162 = vld [vmem:[#allocation11 + $0x18] sm:$0xf]
        %v1163 = vld [vmem:[#allocation11 + $0x1c] sm:$0xf]
        %v1164 = vld [vmem:[#allocation11 + $0x20] sm:$0xf]
        %v1174 = vunpack.c.l.b16 %v1156
        %v1175 = vunpack.c.l.b16 %v1157
        %v1176 = vunpack.c.l.b16 %v1158
        %v1177 = vunpack.c.l.b16 %v1159
        %v1178 = vunpack.c.l.b16 %v1160
        %v1179 = vunpack.c.l.b16 %v1161
        %v1180 = vunpack.c.l.b16 %v1162
        %v1181 = vunpack.c.l.b16 %v1163
        %v1182 = vunpack.c.l.b16 %v1164
        %v1183 = vpack.c.b16 %v1175, %v1174
        %v1184 = vpack.c.b16 %v1177, %v1176
        %v1185 = vpack.c.b16 %v1179, %v1178
        %v1186 = vpack.c.b16 %v1181, %v1180
        %v1187 = vpack.c.b16 %v1182, %v1182
        %vm1192 = vcmask 588800
        %v1194 = vsel %vm1192, %v1152, 0
        %v1197 = vsel %vm1192, %v1153, 0
        %v1200 = vsel %vm1192, %v1154, 0
        %v1203 = vsel %vm1192, %v1155, 0
        %vm1205 = vcmask 1043456
        %v1207 = vsel %vm1205, %v1187, 0
        %1209 = vmatprep.subr.bf16.mxu0 0
        %1210 = vmatpush1.bf16.msra.mxu0 %v1183
        %1211 = vmatprep.subr.bf16.mxu0 0
        %1212 = vmatpush1.bf16.msra.mxu0 %v1184
        %1213 = vmatprep.subr.bf16.mxu0 0
        %1214 = vmatpush1.bf16.msra.mxu0 %v1185
        %1215 = vmatprep.subr.bf16.mxu0 0
        %1216 = vmatpush1.bf16.msra.mxu0 %v1186
        %1217 = vmatprep.subr.bf16.mxu0 0
        %1218 = vmatpush1.bf16.msra.mxu0 %v1207
        %1219 = vmatprep.subr.bf16.mxu0 0
        %1220 = vmatpush1.bf16.msra.mxu0 0
        %1221 = vmatprep.subr.bf16.mxu0 0
        %1222 = vmatpush1.bf16.msra.mxu0 0
        %1223 = vmatprep.subr.bf16.mxu0 0
        %1224 = vmatpush1.bf16.msra.mxu0 0
        %1225 = vmatprep.subr.bf16.mxu0 0
        %1226 = vmatpush1.bf16.msra.mxu0 0
        %1227 = vmatprep.subr.bf16.mxu0 0
        %1228 = vmatpush1.bf16.msra.mxu0 0
        %1229 = vmatprep.subr.bf16.mxu0 0
        %1230 = vmatpush1.bf16.msra.mxu0 0
        %1231 = vmatprep.subr.bf16.mxu0 0
        %1232 = vmatpush1.bf16.msra.mxu0 0
        %1233 = vmatprep.subr.bf16.mxu0 0
        %1234 = vmatpush1.bf16.msra.mxu0 0
        %1235 = vmatprep.subr.bf16.mxu0 0
        %1236 = vmatpush1.bf16.msra.mxu0 0
        %1237 = vmatprep.subr.bf16.mxu0 0
        %1238 = vmatpush1.bf16.msra.mxu0 0
        %1239 = vmatprep.subr.bf16.mxu0 0
        %1240 = vmatpush1.bf16.msra.mxu0 0
        %1241 = vmatprep.mubr.bf16.mxu0 0
        %1242 = vmatmul.mubr.bf16.gmra.mrb[0].mxu0 %v1194
        %v1243 = vpop.f32.mrb[0].mxu0
        %v1244 = vadd.f32 0.0, %v1243
        %v1245 = vpop.f32.mrb[0].mxu0
        %v1246 = vpop.f32.mrb[0].mxu0
        %v1247 = vadd.f32 0.0, %v1246
        %v1248 = vpop.f32.mrb[0].mxu0
        %1249 = vmatprep.mubr.bf16.mxu0 0
        %1250 = vmatmul.mubr.bf16.gmra.mrb[0].mxu0 %v1197
        %v1251 = vpop.f32.mrb[0].mxu0
        %v1252 = vadd.f32 0.0, %v1251
        %v1253 = vpop.f32.mrb[0].mxu0
        %v1254 = vpop.f32.mrb[0].mxu0
        %v1255 = vadd.f32 0.0, %v1254
        %v1256 = vpop.f32.mrb[0].mxu0
        %1257 = vmatprep.mubr.bf16.mxu0 0
        %1258 = vmatmul.mubr.bf16.gmra.mrb[0].mxu0 %v1200
        %v1259 = vpop.f32.mrb[0].mxu0
        %v1260 = vadd.f32 0.0, %v1259
        %v1261 = vpop.f32.mrb[0].mxu0
        %v1262 = vpop.f32.mrb[0].mxu0
        %v1263 = vadd.f32 0.0, %v1262
        %v1264 = vpop.f32.mrb[0].mxu0
        %1265 = vmatprep.mubr.bf16.mxu0 0
        %1266 = vmatmul.mubr.bf16.gmra.mrb[0].mxu0 %v1203
        %v1267 = vpop.f32.mrb[0].mxu0
        %v1268 = vadd.f32 0.0, %v1267
        %v1269 = vpop.f32.mrb[0].mxu0
        %v1270 = vpop.f32.mrb[0].mxu0
        %v1271 = vadd.f32 0.0, %v1270
        %v1272 = vpop.f32.mrb[0].mxu0
        %1273 = vdwg.mxu0
        %v1274 = vpack.c.bf16 %v1247, %v1244
        %v1275 = vpack.c.bf16 %v1255, %v1252
        %v1276 = vpack.c.bf16 %v1263, %v1260
        %v1277 = vpack.c.bf16 %v1271, %v1268
        %v1282 = vunpack.c.l.b16 %v1274
        %v1283 = vunpack.c.h.b16 %v1274
        %v1284 = vunpack.c.l.b16 %v1275
        %v1285 = vunpack.c.h.b16 %v1275
        %v1286 = vunpack.c.l.b16 %v1276
        %v1287 = vunpack.c.h.b16 %v1276
        %v1288 = vunpack.c.l.b16 %v1277
        %v1289 = vunpack.c.h.b16 %v1277
        %v1290 = vpack.c.b16 %v1282, %v1282
        %v1291 = vpack.c.b16 %v1283, %v1283
        %v1292 = vpack.c.b16 %v1284, %v1284
        %v1293 = vpack.c.b16 %v1285, %v1285
        %v1294 = vpack.c.b16 %v1286, %v1286
        %v1295 = vpack.c.b16 %v1287, %v1287
        %v1296 = vpack.c.b16 %v1288, %v1288
        %v1297 = vpack.c.b16 %v1289, %v1289
        %1306 = vst [vmem:[%s404] sm:$0xf] %v1290
        %1307 = vst [vmem:[%s404 + $0x4] sm:$0xf] %v1291
        %1308 = vst [vmem:[%s404 + $0x8] sm:$0xf] %v1292
        %1309 = vst [vmem:[%s404 + $0xc] sm:$0xf] %v1293
        %1310 = vst [vmem:[%s404 + $0x10] sm:$0xf] %v1294
        %1311 = vst [vmem:[%s404 + $0x14] sm:$0xf] %v1295
        %1312 = vst [vmem:[%s404 + $0x18] sm:$0xf] %v1296
        %1313 = vst [vmem:[%s404 + $0x1c] sm:$0xf] %v1297
        %v1314 = vadd.f32 %v1244, %v1247
        %v1315 = vadd.f32 %v1314, %v1252
        %v1316 = vadd.f32 %v1315, %v1255
        %v1317 = vadd.f32 %v1316, %v1260
        %v1318 = vadd.f32 %v1317, %v1263
        %v1319 = vadd.f32 %v1318, %v1268
        %v1320 = vadd.f32 %v1319, %v1271
        %v1321 = vrot.slane %v1320, 4
        %v1322 = vadd.f32 %v1320, %v1321
        %v1323 = vrot.slane %v1322, 2
        %v1324 = vadd.f32 %v1322, %v1323
        %v1325 = vrot.slane %v1324, 1
        %v1326 = vadd.f32 %v1324, %v1325
        %1327 = vst [vmem:[%s411] sm:$0x1] %v1326
        %v1328 = vmul.f32 %v1244, %v1244
        %v1329 = vmul.f32 %v1247, %v1247
        %v1330 = vmul.f32 %v1252, %v1252
        %v1331 = vmul.f32 %v1255, %v1255
        %v1332 = vmul.f32 %v1260, %v1260
        %v1333 = vmul.f32 %v1263, %v1263
        %v1334 = vmul.f32 %v1268, %v1268
        %v1335 = vmul.f32 %v1271, %v1271
        %v1336 = vadd.f32 %v1328, %v1329
        %v1337 = vadd.f32 %v1336, %v1330
        %v1338 = vadd.f32 %v1337, %v1331
        %v1339 = vadd.f32 %v1338, %v1332
        %v1340 = vadd.f32 %v1339, %v1333
        %v1341 = vadd.f32 %v1340, %v1334
        %v1342 = vadd.f32 %v1341, %v1335
        %v1343 = vrot.slane %v1342, 4
        %v1344 = vadd.f32 %v1342, %v1343
        %v1345 = vrot.slane %v1344, 2
        %v1346 = vadd.f32 %v1344, %v1345
        %v1347 = vrot.slane %v1346, 1
        %v1348 = vadd.f32 %v1346, %v1347
        %1349 = vst [vmem:[%s411 + $0x1] sm:$0x1] %v1348
        %s1350 = sand.u32 %s166, 1
        %s1351 = scalar_lea.sflag [#allocation5], %s1350
        %s1352 = sand.u32 %s166, 1
        %s1353 = smul.addr %s1352, 32
        %s1354 = scalar_lea.vmem [#allocation12], %s1353
        %s1355 = sand.u32 %s192, 1
        %s1356 = scalar_lea.sflag [#allocation14], %s1355
        %s1357 = sand.u32 %s192, 1
        %s1358 = smul.addr %s1357, 2
        %s1359 = scalar_lea.vmem [#allocation13], %s1358
        // Predicated region
        $region61: #{basic_block_forward.3} parent=39 // pred_check
          %p1360 = pneg %p176
        $region62: #{basic_block_forward.3} parent=39 // pred_check_branch
          %1362 = sbr.rel (%p1360) target = $region64
        $region63: #{basic_block_forward.3} parent=39 // pred_region
          %s1363 = smul.u32 8, %s33
          %s1365 = ssub.s32 512, 512
          %1366 = vsyncadd %s1351, %s1365
          %s1367 = smul.addr %s1363, 64
          %s1368 = scalar_lea.hbm %s5, %s1367
          %s1369 = sshll.u32 %s1354, 4
          %s1370 = int_to_ptr.vmem [resolvable:$true] %s1369
          %1375 = dma.vmem_to_hbm [thread:$0]  %s1370, 512, %s1368, %s1351, 64, 64, 4
        $region64: #{basic_block_forward.3} parent=39 // pred_fallthru
          _
        // Predicated region
        $region65: #{basic_block_forward.3} parent=39 // pred_check
          %p1376 = pneg %p202
        $region66: #{basic_block_forward.3} parent=39 // pred_check_branch
          %1378 = sbr.rel (%p1376) target = $region68
        $region67: #{basic_block_forward.3} parent=39 // pred_region
          %s1380 = ssub.s32 32, 32
          %1381 = vsyncadd %s1356, %s1380
          %s1382 = smul.addr %s33, 32
          %s1383 = scalar_lea.hbm %s6, %s1382
          %s1385 = sshll.u32 %s1359, 4
          %s1386 = int_to_ptr.vmem [resolvable:$true] %s1385
          %1388 = dma.vmem_to_hbm [thread:$0]  %s1386, 32, %s1383, %s1356
        $region68: #{basic_block_forward.3} parent=39 // pred_fallthru
          _
      $region40: #{basic_block_forward.3} parent=5 // pred_fallthru
        _
      %p1389 = scmp.le.s32.totalorder 2, %s28
      // Predicated region
      $region69: #{basic_block_forward.3} parent=5 // pred_check
        %p1390 = pneg %p1389
      $region70: #{basic_block_forward.3} parent=5 // pred_check_branch
        %1392 = sbr.rel (%p1390) target = $region72
      $region71: #{basic_block_forward.3} parent=5 // pred_region
        %s1393 = ssub.s32 %s28, 2
        // Predicated region
        $region73: #{basic_block_forward.3} parent=71 // pred_check
          %p1394 = pneg %p182
        $region74: #{basic_block_forward.3} parent=71 // pred_check_branch
          %1396 = sbr.rel (%p1394) target = $region76
        $region75: #{basic_block_forward.3} parent=71 // pred_region
          %s1397 = sand.u32 %s167, 1
          %s1398 = scalar_lea.sflag [#allocation5], %s1397
          %s1399 = sand.u32 %s167, 1
          %s1400 = smul.addr %s1399, 32
          %s1401 = scalar_lea.vmem [#allocation12], %s1400
          %1402 = dma.done %s1398, 512
        $region76: #{basic_block_forward.3} parent=71 // pred_fallthru
          _
        // Predicated region
        $region77: #{basic_block_forward.3} parent=71 // pred_check
          %p1403 = pneg %p208
        $region78: #{basic_block_forward.3} parent=71 // pred_check_branch
          %1405 = sbr.rel (%p1403) target = $region80
        $region79: #{basic_block_forward.3} parent=71 // pred_region
          %s1406 = sand.u32 %s193, 1
          %s1407 = scalar_lea.sflag [#allocation14], %s1406
          %s1408 = sand.u32 %s193, 1
          %s1409 = smul.addr %s1408, 2
          %s1410 = scalar_lea.vmem [#allocation13], %s1409
          %1411 = dma.done %s1407, 32
        $region80: #{basic_block_forward.3} parent=71 // pred_fallthru
          _
      $region72: #{basic_block_forward.3} parent=5 // pred_fallthru
        _
    $region6: #{basic_block_forward.3} parent=1 // loop_footer
      %s32 = sadd.s32 1, %s28
    $region7: #{basic_block_forward.3} parent=1 // loop_footer_branch
      %27 = sbr.rel target = $region3
    $region8: #{basic_block_forward.3} parent=1 // loop_exit
      _
    %1412 = vsyncpa [#allocation4], 1
    %s1413 = scalar_lea.sflag [#allocation4], 1
    %1414 = vsyncpa %s1413, 1
    %1415 = vsyncpa [#allocation7], 1
    %s1416 = scalar_lea.sflag [#allocation7], 1
    %1417 = vsyncpa %s1416, 1
    %1418 = vsyncpa [#allocation10], 1
    %s1419 = scalar_lea.sflag [#allocation10], 1
    %1420 = vsyncpa %s1419, 1
    %1421 = vsyncpa [#allocation5], 1
    %s1422 = scalar_lea.sflag [#allocation5], 1
    %1423 = vsyncpa %s1422, 1
    %1424 = vsyncpa [#allocation14], 1
    %s1425 = scalar_lea.sflag [#allocation14], 1
    %1426 = vsyncpa %s1425, 1

// kernel: basic_block_forward.4
$region0: #{basic_block_forward.4}
  #allocation0 [shape = 'u32[]', space=smem, size = 0x4, offset = 0x4, fixed_abs, tag = 'smem constant byte address 0x4 - core index']
  #allocation1 [shape = 'u32[144,128]{1,0:T(1,128)}', space=vmem, size = 0x12000, scoped, tag = 'internal scratch']
  #allocation2 [shape = 'bf16[1,10,10,128]{3,2,1,0:T(8,128)(2,1)}', space=vmem, size = 0xa000, scoped, tag = 'scratch operand']
  #allocation3 [shape = 'bf16[64,1152]{1,0:T(16,128)(2,1)}', space=vmem, size = 0x24000, scoped, tag = 'scratch operand']
  %s0 = inlined_call_operand.hbm [shape: bf16[128,128], index: 0, kind: input, shape index: {}]
  %s1 = inlined_call_operand.hbm [shape: f32[1,128], index: 1, kind: input, shape index: {}]
  %s2 = inlined_call_operand.hbm [shape: f32[1,128], index: 2, kind: input, shape index: {}]
  %s3 = inlined_call_operand.hbm [shape: bf16[1152,128], index: 3, kind: input, shape index: {}]
  %s4 = inlined_call_operand.hbm [shape: bf16[2,8,8,8], index: 4, kind: input, shape index: {}]
  %s5 = inlined_call_operand.hbm [shape: bf16[8,128], index: 5, kind: input, shape index: {}]
  %s6 = inlined_call_operand.hbm [shape: bf16[128,128], index: 6, kind: output, shape index: {0}]
  %s7 = inlined_call_operand.hbm [shape: f32[2,2,128], index: 7, kind: output, shape index: {1}]
  %s8 = inlined_call_operand.hbm [shape: bf16[128,128], index: 8, kind: output, shape index: {2}]
  %s9 = inlined_call_operand.hbm [shape: f32[2,2,128], index: 9, kind: output, shape index: {3}]
  %10 = xla_tuple %s6, %s7, %s8, %s9
  %s11 = sld [smem:[#allocation0]]
  $region105: #{basic_block_forward.4} parent=0
    _
  %s13 = ssub.s32 1, %s11
  %s14 = scalar_select 0, %s13, %s11
  $region1: #{basic_block_forward.4} parent=0
    #allocation4 [shape = 'u8[32768]{0}', space=vmem, size = 0x8000, scoped, tag = 'input window, operand 0']
    #allocation5 [shape = 's32[2]{0}', space=sflag, size = 0x8, scoped, tag = 'scoped memory for basic_block_forward.4']
    #allocation6 [shape = 's32[2]{0}', space=sflag, size = 0x8, scoped, tag = 'scoped memory for basic_block_forward.4']
    #allocation7 [shape = 'u8[512]{0}', space=vmem, size = 0x400, scoped, tag = 'input window, operand 1, single buffered']
    #allocation8 [shape = 's32[1]{0}', space=sflag, size = 0x4, scoped, tag = 'scoped memory for basic_block_forward.4']
    #allocation9 [shape = 'u8[512]{0}', space=vmem, size = 0x400, scoped, tag = 'input window, operand 2, single buffered']
    #allocation10 [shape = 'u8[294912]{0}', space=vmem, size = 0x48000, scoped, tag = 'input window, operand 3, single buffered']
    #allocation11 [shape = 's32[1]{0}', space=sflag, size = 0x4, scoped, tag = 'scoped memory for basic_block_forward.4']
    #allocation12 [shape = 'u8[32768]{0}', space=vmem, size = 0x8000, scoped, tag = 'input window, operand 4']
    #allocation13 [shape = 'u8[2048]{0}', space=vmem, size = 0x800, scoped, tag = 'input window, operand 5, single buffered']
    #allocation14 [shape = 'u8[32768]{0}', space=vmem, size = 0x8000, scoped, tag = 'output window, operand 0']
    #allocation15 [shape = 'u8[2048]{0}', space=vmem, size = 0x800, scoped, tag = 'output window, operand 1']
    #allocation16 [shape = 's32[2]{0}', space=sflag, size = 0x8, scoped, tag = 'scoped memory for basic_block_forward.4']
    #allocation17 [shape = 'u8[32768]{0}', space=vmem, size = 0x8000, scoped, tag = 'output window, operand 2']
    #allocation18 [shape = 'u8[2048]{0}', space=vmem, size = 0x800, scoped, tag = 'output window, operand 3']
    #allocation19 [shape = 's32[2]{0}', space=sflag, size = 0x8, scoped, tag = 'scoped memory for basic_block_forward.4']
    %15 = vsyncpa [#allocation5], 0
    %s16 = scalar_lea.sflag [#allocation5], 1
    %17 = vsyncpa %s16, 0
    %18 = vsyncpa [#allocation8], 0
    %19 = vsyncpa [#allocation11], 0
    %20 = vsyncpa [#allocation6], 0
    %s21 = scalar_lea.sflag [#allocation6], 1
    %22 = vsyncpa %s21, 0
    %23 = vsyncpa [#allocation16], 0
    %s24 = scalar_lea.sflag [#allocation16], 1
    %25 = vsyncpa %s24, 0
    %26 = vsyncpa [#allocation19], 0
    %s27 = scalar_lea.sflag [#allocation19], 1
    %28 = vsyncpa %s27, 0
    loop: start=0, step=1, limit=4
    $region2: #{basic_block_forward.4} parent=1 // loop_pre_header
      _
    $region3: #{basic_block_forward.4} parent=1 // loop_header
      %s30 = sphi 0, %s34
      %p31 = scmp.ge.s32.totalorder %s30, 4
      %s40 = sphi 0, %s42
      %s43 = sphi 0, %s40
      %s44 = sphi 0, %s43
      %s60 = sphi 0, %s44
      %s64 = sphi 0, %s64
      %s66 = sphi 0, %s64
      %s67 = sphi 0, %s66
      %s81 = sphi 0, %s67
      %s85 = sphi 0, %s85
      %s87 = sphi 0, %s85
      %s88 = sphi 0, %s87
      %s102 = sphi 0, %s88
      %s106 = sphi 0, %s106
      %s108 = sphi 0, %s106
      %s109 = sphi 0, %s108
      %s123 = sphi 0, %s109
      %s129 = sphi 0, %s131
      %s132 = sphi 0, %s129
      %s133 = sphi 0, %s132
      %s149 = sphi 0, %s133
      %s153 = sphi 0, %s153
      %s155 = sphi 0, %s153
      %s156 = sphi 0, %s155
      %s170 = sphi 0, %s156
      %s176 = sphi 0, %s178
      %s179 = sphi 0, %s176
      %s180 = sphi 0, %s179
      %s196 = sphi 0, %s180
      %s202 = sphi 0, %s204
      %s205 = sphi 0, %s202
      %s206 = sphi 0, %s205
      %s222 = sphi 0, %s206
      %s228 = sphi 0, %s230
      %s231 = sphi 0, %s228
      %s232 = sphi 0, %s231
      %s248 = sphi 0, %s232
      %s254 = sphi 0, %s256
      %s257 = sphi 0, %s254
      %s258 = sphi 0, %s257
      %s274 = sphi 0, %s258
    $region4: #{basic_block_forward.4} parent=1 // loop_header_branch
      %33 = sbr.rel (%p31) target = $region8
    $region5: #{basic_block_forward.4} parent=1 // loop_body
      %s35 = ssub.s32 %s30, 1
      %s36 = ssub.s32 %s30, 2
      %s37 = sadd.s32 %s30, 1
      %s38 = ssub.s32 %s30, %s37
      %p39 = scmp.eq.s32.totalorder %s38, 0
      %s41 = sadd.s32 %s40, 1
      %s42 = scalar_select %p39, %s40, %s41
      %p45 = pneg %p39
      %p46 = scmp.eq.s32.totalorder %s30, 1
      %p47 = por %p45, %p46
      %p48 = scmp.ne.s32.totalorder %s40, %s43
      %p49 = scmp.eq.s32.totalorder %s30, 0
      %p50 = por %p48, %p49
      %p51 = scmp.ne.s32.totalorder %s40, %s43
      %p52 = scmp.eq.s32.totalorder %s35, 1
      %p53 = por %p51, %p52
      %p54 = scmp.ne.s32.totalorder %s43, %s44
      %p55 = scmp.eq.s32.totalorder %s35, 0
      %p56 = por %p54, %p55
      %p57 = scmp.ne.s32.totalorder %s43, %s44
      %p58 = scmp.eq.s32.totalorder %s36, 1
      %p59 = por %p57, %p58
      %p61 = scmp.ne.s32.totalorder %s44, %s60
      %p62 = scmp.eq.s32.totalorder %s36, 0
      %p63 = por %p61, %p62
      %s65 = sadd.s32 %s64, 1
      %p68 = scmp.eq.s32.totalorder %s30, 1
      %p69 = scmp.ne.s32.totalorder %s64, %s66
      %p70 = scmp.eq.s32.totalorder %s30, 0
      %p71 = por %p69, %p70
      %p72 = scmp.ne.s32.totalorder %s64, %s66
      %p73 = scmp.eq.s32.totalorder %s35, 1
      %p74 = por %p72, %p73
      %p75 = scmp.ne.s32.totalorder %s66, %s67
      %p76 = scmp.eq.s32.totalorder %s35, 0
      %p77 = por %p75, %p76
      %p78 = scmp.ne.s32.totalorder %s66, %s67
      %p79 = scmp.eq.s32.totalorder %s36, 1
      %p80 = por %p78, %p79
      %p82 = scmp.ne.s32.totalorder %s67, %s81
      %p83 = scmp.eq.s32.totalorder %s36, 0
      %p84 = por %p82, %p83
      %s86 = sadd.s32 %s85, 1
      %p89 = scmp.eq.s32.totalorder %s30, 1
      %p90 = scmp.ne.s32.totalorder %s85, %s87
      %p91 = scmp.eq.s32.totalorder %s30, 0
      %p92 = por %p90, %p91
      %p93 = scmp.ne.s32.totalorder %s85, %s87
      %p94 = scmp.eq.s32.totalorder %s35, 1
      %p95 = por %p93, %p94
      %p96 = scmp.ne.s32.totalorder %s87, %s88
      %p97 = scmp.eq.s32.totalorder %s35, 0
      %p98 = por %p96, %p97
      %p99 = scmp.ne.s32.totalorder %s87, %s88
      %p100 = scmp.eq.s32.totalorder %s36, 1
      %p101 = por %p99, %p100
      %p103 = scmp.ne.s32.totalorder %s88, %s102
      %p104 = scmp.eq.s32.totalorder %s36, 0
      %p105 = por %p103, %p104
      %s107 = sadd.s32 %s106, 1
      %p110 = scmp.eq.s32.totalorder %s30, 1
      %p111 = scmp.ne.s32.totalorder %s106, %s108
      %p112 = scmp.eq.s32.totalorder %s30, 0
      %p113 = por %p111, %p112
      %p114 = scmp.ne.s32.totalorder %s106, %s108
      %p115 = scmp.eq.s32.totalorder %s35, 1
      %p116 = por %p114, %p115
      %p117 = scmp.ne.s32.totalorder %s108, %s109
      %p118 = scmp.eq.s32.totalorder %s35, 0
      %p119 = por %p117, %p118
      %p120 = scmp.ne.s32.totalorder %s108, %s109
      %p121 = scmp.eq.s32.totalorder %s36, 1
      %p122 = por %p120, %p121
      %p124 = scmp.ne.s32.totalorder %s109, %s123
      %p125 = scmp.eq.s32.totalorder %s36, 0
      %p126 = por %p124, %p125
      %s127 = ssub.s32 %s30, %s37
      %p128 = scmp.eq.s32.totalorder %s127, 0
      %s130 = sadd.s32 %s129, 1
      %s131 = scalar_select %p128, %s129, %s130
      %p134 = pneg %p128
      %p135 = scmp.eq.s32.totalorder %s30, 1
      %p136 = por %p134, %p135
      %p137 = scmp.ne.s32.totalorder %s129, %s132
      %p138 = scmp.eq.s32.totalorder %s30, 0
      %p139 = por %p137, %p138
      %p140 = scmp.ne.s32.totalorder %s129, %s132
      %p141 = scmp.eq.s32.totalorder %s35, 1
      %p142 = por %p140, %p141
      %p143 = scmp.ne.s32.totalorder %s132, %s133
      %p144 = scmp.eq.s32.totalorder %s35, 0
      %p145 = por %p143, %p144
      %p146 = scmp.ne.s32.totalorder %s132, %s133
      %p147 = scmp.eq.s32.totalorder %s36, 1
      %p148 = por %p146, %p147
      %p150 = scmp.ne.s32.totalorder %s133, %s149
      %p151 = scmp.eq.s32.totalorder %s36, 0
      %p152 = por %p150, %p151
      %s154 = sadd.s32 %s153, 1
      %p157 = scmp.eq.s32.totalorder %s30, 1
      %p158 = scmp.ne.s32.totalorder %s153, %s155
      %p159 = scmp.eq.s32.totalorder %s30, 0
      %p160 = por %p158, %p159
      %p161 = scmp.ne.s32.totalorder %s153, %s155
      %p162 = scmp.eq.s32.totalorder %s35, 1
      %p163 = por %p161, %p162
      %p164 = scmp.ne.s32.totalorder %s155, %s156
      %p165 = scmp.eq.s32.totalorder %s35, 0
      %p166 = por %p164, %p165
      %p167 = scmp.ne.s32.totalorder %s155, %s156
      %p168 = scmp.eq.s32.totalorder %s36, 1
      %p169 = por %p167, %p168
      %p171 = scmp.ne.s32.totalorder %s156, %s170
      %p172 = scmp.eq.s32.totalorder %s36, 0
      %p173 = por %p171, %p172
      %s174 = ssub.s32 %s30, %s37
      %p175 = scmp.eq.s32.totalorder %s174, 0
      %s177 = sadd.s32 %s176, 1
      %s178 = scalar_select %p175, %s176, %s177
      %p181 = pneg %p175
      %p182 = scmp.eq.s32.totalorder %s30, 1
      %p183 = por %p181, %p182
      %p184 = scmp.ne.s32.totalorder %s176, %s179
      %p185 = scmp.eq.s32.totalorder %s30, 0
      %p186 = por %p184, %p185
      %p187 = scmp.ne.s32.totalorder %s176, %s179
      %p188 = scmp.eq.s32.totalorder %s35, 1
      %p189 = por %p187, %p188
      %p190 = scmp.ne.s32.totalorder %s179, %s180
      %p191 = scmp.eq.s32.totalorder %s35, 0
      %p192 = por %p190, %p191
      %p193 = scmp.ne.s32.totalorder %s179, %s180
      %p194 = scmp.eq.s32.totalorder %s36, 1
      %p195 = por %p193, %p194
      %p197 = scmp.ne.s32.totalorder %s180, %s196
      %p198 = scmp.eq.s32.totalorder %s36, 0
      %p199 = por %p197, %p198
      %s200 = ssub.s32 %s30, %s37
      %p201 = scmp.eq.s32.totalorder %s200, 0
      %s203 = sadd.s32 %s202, 1
      %s204 = scalar_select %p201, %s202, %s203
      %p207 = pneg %p201
      %p208 = scmp.eq.s32.totalorder %s30, 1
      %p209 = por %p207, %p208
      %p210 = scmp.ne.s32.totalorder %s202, %s205
      %p211 = scmp.eq.s32.totalorder %s30, 0
      %p212 = por %p210, %p211
      %p213 = scmp.ne.s32.totalorder %s202, %s205
      %p214 = scmp.eq.s32.totalorder %s35, 1
      %p215 = por %p213, %p214
      %p216 = scmp.ne.s32.totalorder %s205, %s206
      %p217 = scmp.eq.s32.totalorder %s35, 0
      %p218 = por %p216, %p217
      %p219 = scmp.ne.s32.totalorder %s205, %s206
      %p220 = scmp.eq.s32.totalorder %s36, 1
      %p221 = por %p219, %p220
      %p223 = scmp.ne.s32.totalorder %s206, %s222
      %p224 = scmp.eq.s32.totalorder %s36, 0
      %p225 = por %p223, %p224
      %s226 = ssub.s32 %s30, %s37
      %p227 = scmp.eq.s32.totalorder %s226, 0
      %s229 = sadd.s32 %s228, 1
      %s230 = scalar_select %p227, %s228, %s229
      %p233 = pneg %p227
      %p234 = scmp.eq.s32.totalorder %s30, 1
      %p235 = por %p233, %p234
      %p236 = scmp.ne.s32.totalorder %s228, %s231
      %p237 = scmp.eq.s32.totalorder %s30, 0
      %p238 = por %p236, %p237
      %p239 = scmp.ne.s32.totalorder %s228, %s231
      %p240 = scmp.eq.s32.totalorder %s35, 1
      %p241 = por %p239, %p240
      %p242 = scmp.ne.s32.totalorder %s231, %s232
      %p243 = scmp.eq.s32.totalorder %s35, 0
      %p244 = por %p242, %p243
      %p245 = scmp.ne.s32.totalorder %s231, %s232
      %p246 = scmp.eq.s32.totalorder %s36, 1
      %p247 = por %p245, %p246
      %p249 = scmp.ne.s32.totalorder %s232, %s248
      %p250 = scmp.eq.s32.totalorder %s36, 0
      %p251 = por %p249, %p250
      %s252 = ssub.s32 %s30, %s37
      %p253 = scmp.eq.s32.totalorder %s252, 0
      %s255 = sadd.s32 %s254, 1
      %s256 = scalar_select %p253, %s254, %s255
      %p259 = pneg %p253
      %p260 = scmp.eq.s32.totalorder %s30, 1
      %p261 = por %p259, %p260
      %p262 = scmp.ne.s32.totalorder %s254, %s257
      %p263 = scmp.eq.s32.totalorder %s30, 0
      %p264 = por %p262, %p263
      %p265 = scmp.ne.s32.totalorder %s254, %s257
      %p266 = scmp.eq.s32.totalorder %s35, 1
      %p267 = por %p265, %p266
      %p268 = scmp.ne.s32.totalorder %s257, %s258
      %p269 = scmp.eq.s32.totalorder %s35, 0
      %p270 = por %p268, %p269
      %p271 = scmp.ne.s32.totalorder %s257, %s258
      %p272 = scmp.eq.s32.totalorder %s36, 1
      %p273 = por %p271, %p272
      %p275 = scmp.ne.s32.totalorder %s258, %s274
      %p276 = scmp.eq.s32.totalorder %s36, 0
      %p277 = por %p275, %p276
      %p278 = scmp.le.s32.totalorder 1, %s30
      %p279 = scmp.lt.s32.totalorder %s30, 3
      %p280 = pnand %p278, %p279
      %p281 = pneg %p280
      // Predicated region
      $region9: #{basic_block_forward.4} parent=5 // pred_check
        _
      $region10: #{basic_block_forward.4} parent=5 // pred_check_branch
        %283 = sbr.rel (%p280) target = $region12
      $region11: #{basic_block_forward.4} parent=5 // pred_region
        %s284 = ssub.s32 %s30, 1
        // Predicated region
        $region13: #{basic_block_forward.4} parent=11 // pred_check
          %p285 = pneg %p77
        $region14: #{basic_block_forward.4} parent=11 // pred_check_branch
          %287 = sbr.rel (%p285) target = $region16
        $region15: #{basic_block_forward.4} parent=11 // pred_region
          %s289 = ssub.s32 16, 16
          %290 = vsyncadd [#allocation8], %s289
          %s292 = sshll.u32 [#allocation7], 4
          %s293 = int_to_ptr.vmem [resolvable:$true] %s292
          %295 = dma.hbm_to_vmem [thread:$0]  %s1, 16, %s293, [#allocation8]
        $region16: #{basic_block_forward.4} parent=11 // pred_fallthru
          _
        // Predicated region
        $region17: #{basic_block_forward.4} parent=11 // pred_check
          %p296 = pneg %p98
        $region18: #{basic_block_forward.4} parent=11 // pred_check_branch
          %298 = sbr.rel (%p296) target = $region20
        $region19: #{basic_block_forward.4} parent=11 // pred_region
          %s300 = ssub.s32 16, 16
          %301 = vsyncadd [#allocation8], %s300
          %s303 = sshll.u32 [#allocation9], 4
          %s304 = int_to_ptr.vmem [resolvable:$true] %s303
          %306 = dma.hbm_to_vmem [thread:$0]  %s2, 16, %s304, [#allocation8]
        $region20: #{basic_block_forward.4} parent=11 // pred_fallthru
          _
        // Predicated region
        $region21: #{basic_block_forward.4} parent=11 // pred_check
          %p307 = pneg %p119
        $region22: #{basic_block_forward.4} parent=11 // pred_check_branch
          %309 = sbr.rel (%p307) target = $region24
        $region23: #{basic_block_forward.4} parent=11 // pred_region
          %s311 = ssub.s32 9216, 9216
          %312 = vsyncadd [#allocation11], %s311
          %s313 = sshll.u32 [#allocation10], 4
          %s314 = int_to_ptr.vmem [resolvable:$true] %s313
          %319 = dma.hbm_to_vmem [thread:$0]  %s3, 9216, %s314, [#allocation11], 64, 64, 4
        $region24: #{basic_block_forward.4} parent=11 // pred_fallthru
          _
        // Predicated region
        $region25: #{basic_block_forward.4} parent=11 // pred_check
          %p320 = pneg %p166
        $region26: #{basic_block_forward.4} parent=11 // pred_check_branch
          %322 = sbr.rel (%p320) target = $region28
        $region27: #{basic_block_forward.4} parent=11 // pred_region
          %s324 = ssub.s32 64, 64
          %325 = vsyncadd [#allocation8], %s324
          %s327 = sshll.u32 [#allocation13], 4
          %s328 = int_to_ptr.vmem [resolvable:$true] %s327
          %330 = dma.hbm_to_vmem [thread:$0]  %s5, 64, %s328, [#allocation8]
        $region28: #{basic_block_forward.4} parent=11 // pred_fallthru
          _
      $region12: #{basic_block_forward.4} parent=5 // pred_fallthru
        _
      %p331 = scmp.lt.s32.totalorder %s30, 2
      // Predicated region
      $region29: #{basic_block_forward.4} parent=5 // pred_check
        %p332 = pneg %p331
      $region30: #{basic_block_forward.4} parent=5 // pred_check_branch
        %334 = sbr.rel (%p332) target = $region32
      $region31: #{basic_block_forward.4} parent=5 // pred_region
        // Predicated region
        $region33: #{basic_block_forward.4} parent=31 // pred_check
          %p335 = pneg %p50
        $region34: #{basic_block_forward.4} parent=31 // pred_check_branch
          %337 = sbr.rel (%p335) target = $region36
        $region35: #{basic_block_forward.4} parent=31 // pred_region
          %s338 = sand.u32 %s30, 1
          %s339 = scalar_lea.sflag [#allocation5], %s338
          %s340 = sand.u32 %s40, 1
          %s341 = smul.addr %s340, 32
          %s342 = scalar_lea.vmem [#allocation4], %s341
          %s343 = smul.u32 8, %s30
          %s345 = ssub.s32 512, 512
          %346 = vsyncadd %s339, %s345
          %s347 = smul.addr %s343, 64
          %s348 = scalar_lea.hbm %s0, %s347
          %s349 = sshll.u32 %s342, 4
          %s350 = int_to_ptr.vmem [resolvable:$true] %s349
          %355 = dma.hbm_to_vmem [thread:$0]  %s348, 512, %s350, %s339, 64, 64, 4
        $region36: #{basic_block_forward.4} parent=31 // pred_fallthru
          _
        // Predicated region
        $region37: #{basic_block_forward.4} parent=31 // pred_check
          %p356 = pneg %p139
        $region38: #{basic_block_forward.4} parent=31 // pred_check_branch
          %358 = sbr.rel (%p356) target = $region40
        $region39: #{basic_block_forward.4} parent=31 // pred_region
          %s359 = sand.u32 %s30, 1
          %s360 = scalar_lea.sflag [#allocation5], %s359
          %s361 = sand.u32 %s129, 1
          %s362 = smul.addr %s361, 32
          %s363 = scalar_lea.vmem [#allocation12], %s362
          %s365 = ssub.s32 512, 512
          %366 = vsyncadd %s360, %s365
          %s367 = smul.addr %s30, 8
          %s368 = smul.addr %s367, 64
          %s369 = scalar_lea.hbm %s4, %s368
          %s370 = sshll.u32 %s363, 4
          %s371 = int_to_ptr.vmem [resolvable:$true] %s370
          %376 = dma.hbm_to_vmem [thread:$0]  %s369, 512, %s371, %s360, 64, 64, 4
        $region40: #{basic_block_forward.4} parent=31 // pred_fallthru
          _
      $region32: #{basic_block_forward.4} parent=5 // pred_fallthru
        _
      %p377 = scmp.le.s32.totalorder 1, %s30
      %p378 = scmp.lt.s32.totalorder %s30, 3
      %p379 = pnand %p377, %p378
      %p380 = pneg %p379
      // Predicated region
      $region41: #{basic_block_forward.4} parent=5 // pred_check
        _
      $region42: #{basic_block_forward.4} parent=5 // pred_check_branch
        %382 = sbr.rel (%p379) target = $region44
      $region43: #{basic_block_forward.4} parent=5 // pred_region
        %s383 = ssub.s32 %s30, 1
        %s384 = sand.u32 %s35, 1
        %s385 = scalar_lea.sflag [#allocation5], %s384
        %s386 = sand.u32 %s43, 1
        %s387 = smul.addr %s386, 32
        %s388 = scalar_lea.vmem [#allocation4], %s387
        // Predicated region
        $region45: #{basic_block_forward.4} parent=43 // pred_check
          %p389 = pneg %p56
        $region46: #{basic_block_forward.4} parent=43 // pred_check_branch
          %391 = sbr.rel (%p389) target = $region48
        $region47: #{basic_block_forward.4} parent=43 // pred_region
          %392 = dma.done %s385, 512
        $region48: #{basic_block_forward.4} parent=43 // pred_fallthru
          _
        // Predicated region
        $region49: #{basic_block_forward.4} parent=43 // pred_check
          %p393 = pneg %p77
        $region50: #{basic_block_forward.4} parent=43 // pred_check_branch
          %395 = sbr.rel (%p393) target = $region52
        $region51: #{basic_block_forward.4} parent=43 // pred_region
          %396 = dma.done [#allocation8], 16
        $region52: #{basic_block_forward.4} parent=43 // pred_fallthru
          _
        // Predicated region
        $region53: #{basic_block_forward.4} parent=43 // pred_check
          %p397 = pneg %p98
        $region54: #{basic_block_forward.4} parent=43 // pred_check_branch
          %399 = sbr.rel (%p397) target = $region56
        $region55: #{basic_block_forward.4} parent=43 // pred_region
          %400 = dma.done [#allocation8], 16
        $region56: #{basic_block_forward.4} parent=43 // pred_fallthru
          _
        // Predicated region
        $region57: #{basic_block_forward.4} parent=43 // pred_check
          %p401 = pneg %p119
        $region58: #{basic_block_forward.4} parent=43 // pred_check_branch
          %403 = sbr.rel (%p401) target = $region60
        $region59: #{basic_block_forward.4} parent=43 // pred_region
          %404 = dma.done [#allocation11], 9216
        $region60: #{basic_block_forward.4} parent=43 // pred_fallthru
          _
        %s405 = sand.u32 %s35, 1
        %s406 = scalar_lea.sflag [#allocation5], %s405
        %s407 = sand.u32 %s132, 1
        %s408 = smul.addr %s407, 32
        %s409 = scalar_lea.vmem [#allocation12], %s408
        // Predicated region
        $region61: #{basic_block_forward.4} parent=43 // pred_check
          %p410 = pneg %p145
        $region62: #{basic_block_forward.4} parent=43 // pred_check_branch
          %412 = sbr.rel (%p410) target = $region64
        $region63: #{basic_block_forward.4} parent=43 // pred_region
          %413 = dma.done %s406, 512
        $region64: #{basic_block_forward.4} parent=43 // pred_fallthru
          _
        // Predicated region
        $region65: #{basic_block_forward.4} parent=43 // pred_check
          %p414 = pneg %p166
        $region66: #{basic_block_forward.4} parent=43 // pred_check_branch
          %416 = sbr.rel (%p414) target = $region68
        $region67: #{basic_block_forward.4} parent=43 // pred_region
          %417 = dma.done [#allocation8], 64
        $region68: #{basic_block_forward.4} parent=43 // pred_fallthru
          _
        %s418 = sand.u32 %s35, 1
        %s419 = scalar_lea.sflag [#allocation5], %s418
        %s420 = sand.u32 %s43, 1
        %s421 = smul.addr %s420, 32
        %s422 = scalar_lea.vmem [#allocation4], %s421
        %p423 = pneg %p56
        %p424 = pneg %p53
        %p425 = pneg %p77
        %p426 = pneg %p74
        %p427 = pneg %p98
        %p428 = pneg %p95
        %p429 = pneg %p119
        %p430 = pneg %p116
        %s431 = sand.u32 %s35, 1
        %s432 = scalar_lea.sflag [#allocation5], %s431
        %s433 = sand.u32 %s132, 1
        %s434 = smul.addr %s433, 32
        %s435 = scalar_lea.vmem [#allocation12], %s434
        %p436 = pneg %p145
        %p437 = pneg %p142
        %p438 = pneg %p166
        %p439 = pneg %p163
        %p440 = pneg %p192
        %p441 = pneg %p189
        %s442 = sand.u32 %s179, 1
        %s443 = scalar_lea.sflag [#allocation6], %s442
        %s444 = sand.u32 %s179, 1
        %s445 = smul.addr %s444, 32
        %s446 = scalar_lea.vmem [#allocation14], %s445
        %p447 = pneg %p218
        %p448 = pneg %p215
        %s449 = sand.u32 %s35, 1
        %s450 = scalar_lea.sflag [#allocation16], %s449
        %s451 = sand.u32 %s205, 1
        %s452 = smul.addr %s451, 2
        %s453 = scalar_lea.vmem [#allocation15], %s452
        %p454 = pneg %p244
        %p455 = pneg %p241
        %s456 = sand.u32 %s35, 1
        %s457 = scalar_lea.sflag [#allocation16], %s456
        %s458 = sand.u32 %s231, 1
        %s459 = smul.addr %s458, 32
        %s460 = scalar_lea.vmem [#allocation17], %s459
        %p461 = pneg %p270
        %p462 = pneg %p267
        %s463 = sand.u32 %s257, 1
        %s464 = scalar_lea.sflag [#allocation19], %s463
        %s465 = sand.u32 %s257, 1
        %s466 = smul.addr %s465, 2
        %s467 = scalar_lea.vmem [#allocation18], %s466
        %s468 = smul.u32 8, %s35
        %s469 = smul.u32 8, %s35
        %s470 = smul.u32 8, %s35
        %v472 = vld [vmem:[%s388] sm:$0xf]
        %v473 = vld [vmem:[%s388 + $0x4] sm:$0xf]
        %v474 = vld [vmem:[%s388 + $0x8] sm:$0xf]
        %v475 = vld [vmem:[%s388 + $0xc] sm:$0xf]
        %v476 = vld [vmem:[%s388 + $0x10] sm:$0xf]
        %v477 = vld [vmem:[%s388 + $0x14] sm:$0xf]
        %v478 = vld [vmem:[%s388 + $0x18] sm:$0xf]
        %v479 = vld [vmem:[%s388 + $0x1c] sm:$0xf]
        %v480 = vunpack.c.l.bf16 %v472
        %v481 = vunpack.c.l.bf16 %v473
        %v482 = vunpack.c.l.bf16 %v474
        %v483 = vunpack.c.l.bf16 %v475
        %v484 = vunpack.c.l.bf16 %v476
        %v485 = vunpack.c.l.bf16 %v477
        %v486 = vunpack.c.l.bf16 %v478
        %v487 = vunpack.c.l.bf16 %v479
        %v488 = vld [vmem:[#allocation7] sm:$0x1]
        %v490 = vlaneseq
        %v491 = vshrl.u32 %v490, 7
        %v492 = vsub.s32 0, %v491
        %v493 = vrot.slane %v488, %v492
        %v495 = vmul.f32 %v480, %v493
        %v496 = vmul.f32 %v481, %v493
        %v497 = vmul.f32 %v482, %v493
        %v498 = vmul.f32 %v483, %v493
        %v499 = vmul.f32 %v484, %v493
        %v500 = vmul.f32 %v485, %v493
        %v501 = vmul.f32 %v486, %v493
        %v502 = vmul.f32 %v487, %v493
        %v503 = vld [vmem:[#allocation9] sm:$0x1]
        %v505 = vlaneseq
        %v506 = vshrl.u32 %v505, 7
        %v507 = vsub.s32 0, %v506
        %v508 = vrot.slane %v503, %v507
        %v510 = vadd.f32 %v495, %v508
        %v511 = vadd.f32 %v496, %v508
        %v512 = vadd.f32 %v497, %v508
        %v513 = vadd.f32 %v498, %v508
        %v514 = vadd.f32 %v499, %v508
        %v515 = vadd.f32 %v500, %v508
        %v516 = vadd.f32 %v501, %v508
        %v517 = vadd.f32 %v502, %v508
        %v518 = vmax.f32 %v510, 0.0
        %v519 = vmax.f32 %v511, 0.0
        %v520 = vmax.f32 %v512, 0.0
        %v521 = vmax.f32 %v513, 0.0
        %v522 = vmax.f32 %v514, 0.0
        %v523 = vmax.f32 %v515, 0.0
        %v524 = vmax.f32 %v516, 0.0
        %v525 = vmax.f32 %v517, 0.0
        %v526 = vpack.c.bf16 %v518, %v518
        %v527 = vpack.c.bf16 %v519, %v519
        %v528 = vpack.c.bf16 %v520, %v520
        %v529 = vpack.c.bf16 %v521, %v521
        %v530 = vpack.c.bf16 %v522, %v522
        %v531 = vpack.c.bf16 %v523, %v523
        %v532 = vpack.c.bf16 %v524, %v524
        %v533 = vpack.c.bf16 %v525, %v525
        %534 = vst [vmem:[#allocation2] sm:$0xf] 0
        %535 = vst [vmem:[#allocation2 + $0x4] sm:$0x1] 0
        %536 = vst [vmem:[#allocation2 + $0x8] sm:$0xf] 0
        %537 = vst [vmem:[#allocation2 + $0xc] sm:$0x1] 0
        %538 = vst [vmem:[#allocation2 + $0x10] sm:$0xf] 0
        %539 = vst [vmem:[#allocation2 + $0x14] sm:$0x1] 0
        %540 = vst [vmem:[#allocation2 + $0x18] sm:$0xf] 0
        %541 = vst [vmem:[#allocation2 + $0x1c] sm:$0x1] 0
        %542 = vst [vmem:[#allocation2 + $0x20] sm:$0xf] 0
        %543 = vst [vmem:[#allocation2 + $0x24] sm:$0x1] 0
        %544 = vst [vmem:[#allocation2 + $0x28] sm:$0xf] 0
        %545 = vst [vmem:[#allocation2 + $0x2c] sm:$0x1] 0
        %546 = vst [vmem:[#allocation2 + $0x30] sm:$0xf] 0
        %547 = vst [vmem:[#allocation2 + $0x34] sm:$0x1] 0
        %548 = vst [vmem:[#allocation2 + $0x38] sm:$0xf] 0
        %549 = vst [vmem:[#allocation2 + $0x3c] sm:$0x1] 0
        %550 = vst [vmem:[#allocation2 + $0x40] sm:$0xf] 0
        %551 = vst [vmem:[#allocation2 + $0x44] sm:$0x1] 0
        %552 = vst [vmem:[#allocation2 + $0x48] sm:$0xf] 0
        %553 = vst [vmem:[#allocation2 + $0x4c] sm:$0x1] 0
        %v562 = vunpack.c.l.b16 %v526
        %v563 = vunpack.c.l.b16 %v527
        %v564 = vunpack.c.l.b16 %v528
        %v565 = vunpack.c.l.b16 %v529
        %v566 = vunpack.c.l.b16 %v530
        %v567 = vunpack.c.l.b16 %v531
        %v568 = vunpack.c.l.b16 %v532
        %v569 = vunpack.c.l.b16 %v533
        %v570 = vpack.c.b16 %v562, %v562
        %v571 = vpack.c.b16 %v563, %v563
        %v572 = vpack.c.b16 %v564, %v564
        %v573 = vpack.c.b16 %v565, %v565
        %v574 = vpack.c.b16 %v566, %v566
        %v575 = vpack.c.b16 %v567, %v567
        %v576 = vpack.c.b16 %v568, %v568
        %v577 = vpack.c.b16 %v569, %v569
        %v579 = vshrl.u32 %v570, 16
        %v581 = vrot.slane %v579, 7
        %v582 = vshll.u32 %v570, 16
        %v584 = vor.u32 %v581, %v582
        %v585 = vrot.slane %v581, 4
        %v587 = vshrl.u32 %v571, 16
        %v589 = vrot.slane %v587, 7
        %v590 = vshll.u32 %v571, 16
        %v592 = vor.u32 %v589, %v590
        %v593 = vrot.slane %v589, 4
        %v595 = vshrl.u32 %v572, 16
        %v597 = vrot.slane %v595, 7
        %v598 = vshll.u32 %v572, 16
        %v600 = vor.u32 %v597, %v598
        %v601 = vrot.slane %v597, 4
        %v603 = vshrl.u32 %v573, 16
        %v605 = vrot.slane %v603, 7
        %v606 = vshll.u32 %v573, 16
        %v608 = vor.u32 %v605, %v606
        %v609 = vrot.slane %v605, 4
        %v611 = vshrl.u32 %v574, 16
        %v613 = vrot.slane %v611, 7
        %v614 = vshll.u32 %v574, 16
        %v616 = vor.u32 %v613, %v614
        %v617 = vrot.slane %v613, 4
        %v619 = vshrl.u32 %v575, 16
        %v621 = vrot.slane %v619, 7
        %v622 = vshll.u32 %v575, 16
        %v624 = vor.u32 %v621, %v622
        %v625 = vrot.slane %v621, 4
        %v627 = vshrl.u32 %v576, 16
        %v629 = vrot.slane %v627, 7
        %v630 = vshll.u32 %v576, 16
        %v632 = vor.u32 %v629, %v630
        %v633 = vrot.slane %v629, 4
        %v635 = vshrl.u32 %v577, 16
        %v637 = vrot.slane %v635, 7
        %v638 = vshll.u32 %v577, 16
        %v640 = vor.u32 %v637, %v638
        %v641 = vrot.slane %v637, 4
        %s658 = scalar_lea.vmem [#allocation2], 8
        %vm659 = vcmask 1043456
        %vm660 = vsmask.f32 7938
        %vm661 = vmand %vm659, %vm660
        %v662 = vld [vmem:[%s658] sm:$0xf]
        %v663 = vsel %vm661, %v584, %v662
        %664 = vst [vmem:[%s658] sm:$0xf] %v663
        %vm665 = vcmask 1040384
        %vm666 = vsmask.f32 256
        %vm667 = vmand %vm665, %vm666
        %v668 = vld [vmem:[%s658 + $0x4] sm:$0x1]
        %v669 = vsel %vm667, %v585, %v668
        %670 = vst [vmem:[%s658 + $0x4] sm:$0x1] %v669
        %v671 = vld [vmem:[%s658 + $0x8] sm:$0xf]
        %v672 = vsel %vm661, %v592, %v671
        %673 = vst [vmem:[%s658 + $0x8] sm:$0xf] %v672
        %v674 = vld [vmem:[%s658 + $0xc] sm:$0x1]
        %v675 = vsel %vm667, %v593, %v674
        %676 = vst [vmem:[%s658 + $0xc] sm:$0x1] %v675
        %v677 = vld [vmem:[%s658 + $0x10] sm:$0xf]
        %v678 = vsel %vm661, %v600, %v677
        %679 = vst [vmem:[%s658 + $0x10] sm:$0xf] %v678
        %v680 = vld [vmem:[%s658 + $0x14] sm:$0x1]
        %v681 = vsel %vm667, %v601, %v680
        %682 = vst [vmem:[%s658 + $0x14] sm:$0x1] %v681
        %v683 = vld [vmem:[%s658 + $0x18] sm:$0xf]
        %v684 = vsel %vm661, %v608, %v683
        %685 = vst [vmem:[%s658 + $0x18] sm:$0xf] %v684
        %v686 = vld [vmem:[%s658 + $0x1c] sm:$0x1]
        %v687 = vsel %vm667, %v609, %v686
        %688 = vst [vmem:[%s658 + $0x1c] sm:$0x1] %v687
        %v689 = vld [vmem:[%s658 + $0x20] sm:$0xf]
        %v690 = vsel %vm661, %v616, %v689
        %691 = vst [vmem:[%s658 + $0x20] sm:$0xf] %v690
        %v692 = vld [vmem:[%s658 + $0x24] sm:$0x1]
        %v693 = vsel %vm667, %v617, %v692
        %694 = vst [vmem:[%s658 + $0x24] sm:$0x1] %v693
        %v695 = vld [vmem:[%s658 + $0x28] sm:$0xf]
        %v696 = vsel %vm661, %v624, %v695
        %697 = vst [vmem:[%s658 + $0x28] sm:$0xf] %v696
        %v698 = vld [vmem:[%s658 + $0x2c] sm:$0x1]
        %v699 = vsel %vm667, %v625, %v698
        %700 = vst [vmem:[%s658 + $0x2c] sm:$0x1] %v699
        %v701 = vld [vmem:[%s658 + $0x30] sm:$0xf]
        %v702 = vsel %vm661, %v632, %v701
        %703 = vst [vmem:[%s658 + $0x30] sm:$0xf] %v702
        %v704 = vld [vmem:[%s658 + $0x34] sm:$0x1]
        %v705 = vsel %vm667, %v633, %v704
        %706 = vst [vmem:[%s658 + $0x34] sm:$0x1] %v705
        %v707 = vld [vmem:[%s658 + $0x38] sm:$0xf]
        %v708 = vsel %vm661, %v640, %v707
        %709 = vst [vmem:[%s658 + $0x38] sm:$0xf] %v708
        %v710 = vld [vmem:[%s658 + $0x3c] sm:$0x1]
        %v711 = vsel %vm667, %v641, %v710
        %712 = vst [vmem:[%s658 + $0x3c] sm:$0x1] %v711
        %v713 = vld [vmem:[#allocation2] sm:$0xf]
        %v714 = vld [vmem:[#allocation2 + $0x8] sm:$0xf]
        %v715 = vld [vmem:[#allocation2 + $0x10] sm:$0xf]
        %v716 = vld [vmem:[#allocation2 + $0x18] sm:$0xf]
        %v717 = vld [vmem:[#allocation2 + $0x20] sm:$0xf]
        %v718 = vld [vmem:[#allocation2 + $0x28] sm:$0xf]
        %v719 = vld [vmem:[#allocation2 + $0x30] sm:$0xf]
        %v720 = vld [vmem:[#allocation2 + $0x38] sm:$0xf]
        %v729 = vunpack.c.l.b16 %v713
        %v730 = vunpack.c.l.b16 %v714
        %v731 = vunpack.c.l.b16 %v715
        %v732 = vunpack.c.l.b16 %v716
        %v733 = vunpack.c.l.b16 %v717
        %v734 = vunpack.c.l.b16 %v718
        %v735 = vunpack.c.l.b16 %v719
        %v736 = vunpack.c.l.b16 %v720
        %v737 = vpack.c.b16 %v730, %v729
        %v738 = vpack.c.b16 %v732, %v731
        %v739 = vpack.c.b16 %v734, %v733
        %v740 = vpack.c.b16 %v736, %v735
        %745 = vst [vmem:[#allocation3] sm:$0xff] %v737
        %746 = vst [vmem:[#allocation3 + $0x48] sm:$0xff] %v738
        %747 = vst [vmem:[#allocation3 + $0x90] sm:$0xff] %v739
        %748 = vst [vmem:[#allocation3 + $0xd8] sm:$0xff] %v740
        %v749 = vld [vmem:[#allocation2] sm:$0xf]
        %v750 = vld [vmem:[#allocation2 + $0x4] sm:$0x1]
        %v751 = vld [vmem:[#allocation2 + $0x8] sm:$0xf]
        %v752 = vld [vmem:[#allocation2 + $0xc] sm:$0x1]
        %v753 = vld [vmem:[#allocation2 + $0x10] sm:$0xf]
        %v754 = vld [vmem:[#allocation2 + $0x14] sm:$0x1]
        %v755 = vld [vmem:[#allocation2 + $0x18] sm:$0xf]
        %v756 = vld [vmem:[#allocation2 + $0x1c] sm:$0x1]
        %v757 = vld [vmem:[#allocation2 + $0x20] sm:$0xf]
        %v758 = vld [vmem:[#allocation2 + $0x24] sm:$0x1]
        %v759 = vld [vmem:[#allocation2 + $0x28] sm:$0xf]
        %v760 = vld [vmem:[#allocation2 + $0x2c] sm:$0x1]
        %v761 = vld [vmem:[#allocation2 + $0x30] sm:$0xf]
        %v762 = vld [vmem:[#allocation2 + $0x34] sm:$0x1]
        %v763 = vld [vmem:[#allocation2 + $0x38] sm:$0xf]
        %v764 = vld [vmem:[#allocation2 + $0x3c] sm:$0x1]
        %vm765 = vsmask.f32 3328
        %vm766 = vsmask.f32 7440
        %vm767 = vmor %vm765, %vm766
        %v769 = vshrl.u32 %v749, 16
        %v771 = vrot.slane %v769, 4
        %v772 = vshll.u32 %v749, 16
        %v774 = vrot.slane %v772, 5
        %v775 = vor.u32 %v771, %v774
        %v776 = vrot.slane %v775, 4
        %v778 = vshll.u32 %v750, 16
        %v780 = vrot.slane %v778, 5
        %v781 = vsel %vm767, %v776, %v780
        %v783 = vshrl.u32 %v751, 16
        %v785 = vrot.slane %v783, 4
        %v786 = vshll.u32 %v751, 16
        %v788 = vrot.slane %v786, 5
        %v789 = vor.u32 %v785, %v788
        %v790 = vrot.slane %v789, 4
        %v792 = vshll.u32 %v752, 16
        %v794 = vrot.slane %v792, 5
        %v795 = vsel %vm767, %v790, %v794
        %v797 = vshrl.u32 %v753, 16
        %v799 = vrot.slane %v797, 4
        %v800 = vshll.u32 %v753, 16
        %v802 = vrot.slane %v800, 5
        %v803 = vor.u32 %v799, %v802
        %v804 = vrot.slane %v803, 4
        %v806 = vshll.u32 %v754, 16
        %v808 = vrot.slane %v806, 5
        %v809 = vsel %vm767, %v804, %v808
        %v811 = vshrl.u32 %v755, 16
        %v813 = vrot.slane %v811, 4
        %v814 = vshll.u32 %v755, 16
        %v816 = vrot.slane %v814, 5
        %v817 = vor.u32 %v813, %v816
        %v818 = vrot.slane %v817, 4
        %v820 = vshll.u32 %v756, 16
        %v822 = vrot.slane %v820, 5
        %v823 = vsel %vm767, %v818, %v822
        %v825 = vshrl.u32 %v757, 16
        %v827 = vrot.slane %v825, 4
        %v828 = vshll.u32 %v757, 16
        %v830 = vrot.slane %v828, 5
        %v831 = vor.u32 %v827, %v830
        %v832 = vrot.slane %v831, 4
        %v834 = vshll.u32 %v758, 16
        %v836 = vrot.slane %v834, 5
        %v837 = vsel %vm767, %v832, %v836
        %v839 = vshrl.u32 %v759, 16
        %v841 = vrot.slane %v839, 4
        %v842 = vshll.u32 %v759, 16
        %v844 = vrot.slane %v842, 5
        %v845 = vor.u32 %v841, %v844
        %v846 = vrot.slane %v845, 4
        %v848 = vshll.u32 %v760, 16
        %v850 = vrot.slane %v848, 5
        %v851 = vsel %vm767, %v846, %v850
        %v853 = vshrl.u32 %v761, 16
        %v855 = vrot.slane %v853, 4
        %v856 = vshll.u32 %v761, 16
        %v858 = vrot.slane %v856, 5
        %v859 = vor.u32 %v855, %v858
        %v860 = vrot.slane %v859, 4
        %v862 = vshll.u32 %v762, 16
        %v864 = vrot.slane %v862, 5
        %v865 = vsel %vm767, %v860, %v864
        %v867 = vshrl.u32 %v763, 16
        %v869 = vrot.slane %v867, 4
        %v870 = vshll.u32 %v763, 16
        %v872 = vrot.slane %v870, 5
        %v873 = vor.u32 %v869, %v872
        %v874 = vrot.slane %v873, 4
        %v876 = vshll.u32 %v764, 16
        %v878 = vrot.slane %v876, 5
        %v879 = vsel %vm767, %v874, %v878
        %v880 = vunpack.c.l.b16 %v781
        %v881 = vunpack.c.l.b16 %v795
        %v882 = vunpack.c.l.b16 %v809
        %v883 = vunpack.c.l.b16 %v823
        %v884 = vunpack.c.l.b16 %v837
        %v885 = vunpack.c.l.b16 %v851
        %v886 = vunpack.c.l.b16 %v865
        %v887 = vunpack.c.l.b16 %v879
        %v888 = vpack.c.b16 %v881, %v880
        %v889 = vpack.c.b16 %v883, %v882
        %v890 = vpack.c.b16 %v885, %v884
        %v891 = vpack.c.b16 %v887, %v886
        %896 = vst [vmem:[#allocation3 + $0x8] sm:$0xff] %v888
        %897 = vst [vmem:[#allocation3 + $0x50] sm:$0xff] %v889
        %898 = vst [vmem:[#allocation3 + $0x98] sm:$0xff] %v890
        %899 = vst [vmem:[#allocation3 + $0xe0] sm:$0xff] %v891
        %v900 = vld [vmem:[#allocation2] sm:$0xe]
        %v901 = vld [vmem:[#allocation2 + $0x4] sm:$0x1]
        %v902 = vld [vmem:[#allocation2 + $0x8] sm:$0xe]
        %v903 = vld [vmem:[#allocation2 + $0xc] sm:$0x1]
        %v904 = vld [vmem:[#allocation2 + $0x10] sm:$0xe]
        %v905 = vld [vmem:[#allocation2 + $0x14] sm:$0x1]
        %v906 = vld [vmem:[#allocation2 + $0x18] sm:$0xe]
        %v907 = vld [vmem:[#allocation2 + $0x1c] sm:$0x1]
        %v908 = vld [vmem:[#allocation2 + $0x20] sm:$0xe]
        %v909 = vld [vmem:[#allocation2 + $0x24] sm:$0x1]
        %v910 = vld [vmem:[#allocation2 + $0x28] sm:$0xe]
        %v911 = vld [vmem:[#allocation2 + $0x2c] sm:$0x1]
        %v912 = vld [vmem:[#allocation2 + $0x30] sm:$0xe]
        %v913 = vld [vmem:[#allocation2 + $0x34] sm:$0x1]
        %v914 = vld [vmem:[#allocation2 + $0x38] sm:$0xe]
        %v915 = vld [vmem:[#allocation2 + $0x3c] sm:$0x1]
        %vm932 = vcmask 1042432
        %vm933 = vcmask 1046532
        %vm934 = vmor %vm932, %vm933
        %v935 = vrot.slane %v900, 5
        %v936 = vrot.slane %v935, 4
        %v937 = vrot.slane %v901, 5
        %v938 = vsel %vm934, %v936, %v937
        %v939 = vrot.slane %v902, 5
        %v940 = vrot.slane %v939, 4
        %v941 = vrot.slane %v903, 5
        %v942 = vsel %vm934, %v940, %v941
        %v943 = vrot.slane %v904, 5
        %v944 = vrot.slane %v943, 4
        %v945 = vrot.slane %v905, 5
        %v946 = vsel %vm934, %v944, %v945
        %v947 = vrot.slane %v906, 5
        %v948 = vrot.slane %v947, 4
        %v949 = vrot.slane %v907, 5
        %v950 = vsel %vm934, %v948, %v949
        %v951 = vrot.slane %v908, 5
        %v952 = vrot.slane %v951, 4
        %v953 = vrot.slane %v909, 5
        %v954 = vsel %vm934, %v952, %v953
        %v955 = vrot.slane %v910, 5
        %v956 = vrot.slane %v955, 4
        %v957 = vrot.slane %v911, 5
        %v958 = vsel %vm934, %v956, %v957
        %v959 = vrot.slane %v912, 5
        %v960 = vrot.slane %v959, 4
        %v961 = vrot.slane %v913, 5
        %v962 = vsel %vm934, %v960, %v961
        %v963 = vrot.slane %v914, 5
        %v964 = vrot.slane %v963, 4
        %v965 = vrot.slane %v915, 5
        %v966 = vsel %vm934, %v964, %v965
        %v967 = vunpack.c.l.b16 %v938
        %v968 = vunpack.c.l.b16 %v942
        %v969 = vunpack.c.l.b16 %v946
        %v970 = vunpack.c.l.b16 %v950
        %v971 = vunpack.c.l.b16 %v954
        %v972 = vunpack.c.l.b16 %v958
        %v973 = vunpack.c.l.b16 %v962
        %v974 = vunpack.c.l.b16 %v966
        %v975 = vpack.c.b16 %v968, %v967
        %v976 = vpack.c.b16 %v970, %v969
        %v977 = vpack.c.b16 %v972, %v971
        %v978 = vpack.c.b16 %v974, %v973
        %983 = vst [vmem:[#allocation3 + $0x10] sm:$0xff] %v975
        %984 = vst [vmem:[#allocation3 + $0x58] sm:$0xff] %v976
        %985 = vst [vmem:[#allocation3 + $0xa0] sm:$0xff] %v977
        %986 = vst [vmem:[#allocation3 + $0xe8] sm:$0xff] %v978
        %v987 = vld [vmem:[%s658] sm:$0xf]
        %v988 = vld [vmem:[%s658 + $0x8] sm:$0xf]
        %v989 = vld [vmem:[%s658 + $0x10] sm:$0xf]
        %v990 = vld [vmem:[%s658 + $0x18] sm:$0xf]
        %v991 = vld [vmem:[%s658 + $0x20] sm:$0xf]
        %v992 = vld [vmem:[%s658 + $0x28] sm:$0xf]
        %v993 = vld [vmem:[%s658 + $0x30] sm:$0xf]
        %v994 = vld [vmem:[%s658 + $0x38] sm:$0xf]
        %v1003 = vunpack.c.l.b16 %v987
        %v1004 = vunpack.c.l.b16 %v988
        %v1005 = vunpack.c.l.b16 %v989
        %v1006 = vunpack.c.l.b16 %v990
        %v1007 = vunpack.c.l.b16 %v991
        %v1008 = vunpack.c.l.b16 %v992
        %v1009 = vunpack.c.l.b16 %v993
        %v1010 = vunpack.c.l.b16 %v994
        %v1011 = vpack.c.b16 %v1004, %v1003
        %v1012 = vpack.c.b16 %v1006, %v1005
        %v1013 = vpack.c.b16 %v1008, %v1007
        %v1014 = vpack.c.b16 %v1010, %v1009
        %1019 = vst [vmem:[#allocation3 + $0x18] sm:$0xff] %v1011
        %1020 = vst [vmem:[#allocation3 + $0x60] sm:$0xff] %v1012
        %1021 = vst [vmem:[#allocation3 + $0xa8] sm:$0xff] %v1013
        %1022 = vst [vmem:[#allocation3 + $0xf0] sm:$0xff] %v1014
        %v1023 = vld [vmem:[%s658] sm:$0xf]
        %v1024 = vld [vmem:[%s658 + $0x4] sm:$0x1]
        %v1025 = vld [vmem:[%s658 + $0x8] sm:$0xf]
        %v1026 = vld [vmem:[%s658 + $0xc] sm:$0x1]
        %v1027 = vld [vmem:[%s658 + $0x10] sm:$0xf]
        %v1028 = vld [vmem:[%s658 + $0x14] sm:$0x1]
        %v1029 = vld [vmem:[%s658 + $0x18] sm:$0xf]
        %v1030 = vld [vmem:[%s658 + $0x1c] sm:$0x1]
        %v1031 = vld [vmem:[%s658 + $0x20] sm:$0xf]
        %v1032 = vld [vmem:[%s658 + $0x24] sm:$0x1]
        %v1033 = vld [vmem:[%s658 + $0x28] sm:$0xf]
        %v1034 = vld [vmem:[%s658 + $0x2c] sm:$0x1]
        %v1035 = vld [vmem:[%s658 + $0x30] sm:$0xf]
        %v1036 = vld [vmem:[%s658 + $0x34] sm:$0x1]
        %v1037 = vld [vmem:[%s658 + $0x38] sm:$0xf]
        %v1038 = vld [vmem:[%s658 + $0x3c] sm:$0x1]
        %v1040 = vshrl.u32 %v1023, 16
        %v1042 = vrot.slane %v1040, 4
        %v1043 = vshll.u32 %v1023, 16
        %v1045 = vrot.slane %v1043, 5
        %v1046 = vor.u32 %v1042, %v1045
        %v1047 = vrot.slane %v1046, 4
        %v1049 = vshll.u32 %v1024, 16
        %v1051 = vrot.slane %v1049, 5
        %v1052 = vsel %vm767, %v1047, %v1051
        %v1054 = vshrl.u32 %v1025, 16
        %v1056 = vrot.slane %v1054, 4
        %v1057 = vshll.u32 %v1025, 16
        %v1059 = vrot.slane %v1057, 5
        %v1060 = vor.u32 %v1056, %v1059
        %v1061 = vrot.slane %v1060, 4
        %v1063 = vshll.u32 %v1026, 16
        %v1065 = vrot.slane %v1063, 5
        %v1066 = vsel %vm767, %v1061, %v1065
        %v1068 = vshrl.u32 %v1027, 16
        %v1070 = vrot.slane %v1068, 4
        %v1071 = vshll.u32 %v1027, 16
        %v1073 = vrot.slane %v1071, 5
        %v1074 = vor.u32 %v1070, %v1073
        %v1075 = vrot.slane %v1074, 4
        %v1077 = vshll.u32 %v1028, 16
        %v1079 = vrot.slane %v1077, 5
        %v1080 = vsel %vm767, %v1075, %v1079
        %v1082 = vshrl.u32 %v1029, 16
        %v1084 = vrot.slane %v1082, 4
        %v1085 = vshll.u32 %v1029, 16
        %v1087 = vrot.slane %v1085, 5
        %v1088 = vor.u32 %v1084, %v1087
        %v1089 = vrot.slane %v1088, 4
        %v1091 = vshll.u32 %v1030, 16
        %v1093 = vrot.slane %v1091, 5
        %v1094 = vsel %vm767, %v1089, %v1093
        %v1096 = vshrl.u32 %v1031, 16
        %v1098 = vrot.slane %v1096, 4
        %v1099 = vshll.u32 %v1031, 16
        %v1101 = vrot.slane %v1099, 5
        %v1102 = vor.u32 %v1098, %v1101
        %v1103 = vrot.slane %v1102, 4
        %v1105 = vshll.u32 %v1032, 16
        %v1107 = vrot.slane %v1105, 5
        %v1108 = vsel %vm767, %v1103, %v1107
        %v1110 = vshrl.u32 %v1033, 16
        %v1112 = vrot.slane %v1110, 4
        %v1113 = vshll.u32 %v1033, 16
        %v1115 = vrot.slane %v1113, 5
        %v1116 = vor.u32 %v1112, %v1115
        %v1117 = vrot.slane %v1116, 4
        %v1119 = vshll.u32 %v1034, 16
        %v1121 = vrot.slane %v1119, 5
        %v1122 = vsel %vm767, %v1117, %v1121
        %v1124 = vshrl.u32 %v1035, 16
        %v1126 = vrot.slane %v1124, 4
        %v1127 = vshll.u32 %v1035, 16
        %v1129 = vrot.slane %v1127, 5
        %v1130 = vor.u32 %v1126, %v1129
        %v1131 = vrot.slane %v1130, 4
        %v1133 = vshll.u32 %v1036, 16
        %v1135 = vrot.slane %v1133, 5
        %v1136 = vsel %vm767, %v1131, %v1135
        %v1138 = vshrl.u32 %v1037, 16
        %v1140 = vrot.slane %v1138, 4
        %v1141 = vshll.u32 %v1037, 16
        %v1143 = vrot.slane %v1141, 5
        %v1144 = vor.u32 %v1140, %v1143
        %v1145 = vrot.slane %v1144, 4
        %v1147 = vshll.u32 %v1038, 16
        %v1149 = vrot.slane %v1147, 5
        %v1150 = vsel %vm767, %v1145, %v1149
        %v1151 = vunpack.c.l.b16 %v1052
        %v1152 = vunpack.c.l.b16 %v1066
        %v1153 = vunpack.c.l.b16 %v1080
        %v1154 = vunpack.c.l.b16 %v1094
        %v1155 = vunpack.c.l.b16 %v1108
        %v1156 = vunpack.c.l.b16 %v1122
        %v1157 = vunpack.c.l.b16 %v1136
        %v1158 = vunpack.c.l.b16 %v1150
        %v1159 = vpack.c.b16 %v1152, %v1151
        %v1160 = vpack.c.b16 %v1154, %v1153
        %v1161 = vpack.c.b16 %v1156, %v1155
        %v1162 = vpack.c.b16 %v1158, %v1157
        %1167 = vst [vmem:[#allocation3 + $0x20] sm:$0xff] %v1159
        %1168 = vst [vmem:[#allocation3 + $0x68] sm:$0xff] %v1160
        %1169 = vst [vmem:[#allocation3 + $0xb0] sm:$0xff] %v1161
        %1170 = vst [vmem:[#allocation3 + $0xf8] sm:$0xff] %v1162
        %v1171 = vld [vmem:[%s658] sm:$0xe]
        %v1172 = vld [vmem:[%s658 + $0x4] sm:$0x1]
        %v1173 = vld [vmem:[%s658 + $0x8] sm:$0xe]
        %v1174 = vld [vmem:[%s658 + $0xc] sm:$0x1]
        %v1175 = vld [vmem:[%s658 + $0x10] sm:$0xe]
        %v1176 = vld [vmem:[%s658 + $0x14] sm:$0x1]
        %v1177 = vld [vmem:[%s658 + $0x18] sm:$0xe]
        %v1178 = vld [vmem:[%s658 + $0x1c] sm:$0x1]
        %v1179 = vld [vmem:[%s658 + $0x20] sm:$0xe]
        %v1180 = vld [vmem:[%s658 + $0x24] sm:$0x1]
        %v1181 = vld [vmem:[%s658 + $0x28] sm:$0xe]
        %v1182 = vld [vmem:[%s658 + $0x2c] sm:$0x1]
        %v1183 = vld [vmem:[%s658 + $0x30] sm:$0xe]
        %v1184 = vld [vmem:[%s658 + $0x34] sm:$0x1]
        %v1185 = vld [vmem:[%s658 + $0x38] sm:$0xe]
        %v1186 = vld [vmem:[%s658 + $0x3c] sm:$0x1]
        %v1203 = vrot.slane %v1171, 5
        %v1204 = vrot.slane %v1203, 4
        %v1205 = vrot.slane %v1172, 5
        %v1206 = vsel %vm934, %v1204, %v1205
        %v1207 = vrot.slane %v1173, 5
        %v1208 = vrot.slane %v1207, 4
        %v1209 = vrot.slane %v1174, 5
        %v1210 = vsel %vm934, %v1208, %v1209
        %v1211 = vrot.slane %v1175, 5
        %v1212 = vrot.slane %v1211, 4
        %v1213 = vrot.slane %v1176, 5
        %v1214 = vsel %vm934, %v1212, %v1213
        %v1215 = vrot.slane %v1177, 5
        %v1216 = vrot.slane %v1215, 4
        %v1217 = vrot.slane %v1178, 5
        %v1218 = vsel %vm934, %v1216, %v1217
        %v1219 = vrot.slane %v1179, 5
        %v1220 = vrot.slane %v1219, 4
        %v1221 = vrot.slane %v1180, 5
        %v1222 = vsel %vm934, %v1220, %v1221
        %v1223 = vrot.slane %v1181, 5
        %v1224 = vrot.slane %v1223, 4
        %v1225 = vrot.slane %v1182, 5
        %v1226 = vsel %vm934, %v1224, %v1225
        %v1227 = vrot.slane %v1183, 5
        %v1228 = vrot.slane %v1227, 4
        %v1229 = vrot.slane %v1184, 5
        %v1230 = vsel %vm934, %v1228, %v1229
        %v1231 = vrot.slane %v1185, 5
        %v1232 = vrot.slane %v1231, 4
        %v1233 = vrot.slane %v1186, 5
        %v1234 = vsel %vm934, %v1232, %v1233
        %v1235 = vunpack.c.l.b16 %v1206
        %v1236 = vunpack.c.l.b16 %v1210
        %v1237 = vunpack.c.l.b16 %v1214
        %v1238 = vunpack.c.l.b16 %v1218
        %v1239 = vunpack.c.l.b16 %v1222
        %v1240 = vunpack.c.l.b16 %v1226
        %v1241 = vunpack.c.l.b16 %v1230
        %v1242 = vunpack.c.l.b16 %v1234
        %v1243 = vpack.c.b16 %v1236, %v1235
        %v1244 = vpack.c.b16 %v1238, %v1237
        %v1245 = vpack.c.b16 %v1240, %v1239
        %v1246 = vpack.c.b16 %v1242, %v1241
        %1251 = vst [vmem:[#allocation3 + $0x28] sm:$0xff] %v1243
        %1252 = vst [vmem:[#allocation3 + $0x70] sm:$0xff] %v1244
        %1253 = vst [vmem:[#allocation3 + $0xb8] sm:$0xff] %v1245
        %1254 = vst [vmem:[#allocation3 + $0x100] sm:$0xff] %v1246
        %s1255 = scalar_lea.vmem [#allocation2], 16
        %v1256 = vld [vmem:[%s1255] sm:$0xf]
        %v1257 = vld [vmem:[%s1255 + $0x8] sm:$0xf]
        %v1258 = vld [vmem:[%s1255 + $0x10] sm:$0xf]
        %v1259 = vld [vmem:[%s1255 + $0x18] sm:$0xf]
        %v1260 = vld [vmem:[%s1255 + $0x20] sm:$0xf]
        %v1261 = vld [vmem:[%s1255 + $0x28] sm:$0xf]
        %v1262 = vld [vmem:[%s1255 + $0x30] sm:$0xf]
        %v1263 = vld [vmem:[%s1255 + $0x38] sm:$0xf]
        %v1272 = vunpack.c.l.b16 %v1256
        %v1273 = vunpack.c.l.b16 %v1257
        %v1274 = vunpack.c.l.b16 %v1258
        %v1275 = vunpack.c.l.b16 %v1259
        %v1276 = vunpack.c.l.b16 %v1260
        %v1277 = vunpack.c.l.b16 %v1261
        %v1278 = vunpack.c.l.b16 %v1262
        %v1279 = vunpack.c.l.b16 %v1263
        %v1280 = vpack.c.b16 %v1273, %v1272
        %v1281 = vpack.c.b16 %v1275, %v1274
        %v1282 = vpack.c.b16 %v1277, %v1276
        %v1283 = vpack.c.b16 %v1279, %v1278
        %1288 = vst [vmem:[#allocation3 + $0x30] sm:$0xff] %v1280
        %1289 = vst [vmem:[#allocation3 + $0x78] sm:$0xff] %v1281
        %1290 = vst [vmem:[#allocation3 + $0xc0] sm:$0xff] %v1282
        %1291 = vst [vmem:[#allocation3 + $0x108] sm:$0xff] %v1283
        %v1292 = vld [vmem:[%s1255] sm:$0xf]
        %v1293 = vld [vmem:[%s1255 + $0x4] sm:$0x1]
        %v1294 = vld [vmem:[%s1255 + $0x8] sm:$0xf]
        %v1295 = vld [vmem:[%s1255 + $0xc] sm:$0x1]
        %v1296 = vld [vmem:[%s1255 + $0x10] sm:$0xf]
        %v1297 = vld [vmem:[%s1255 + $0x14] sm:$0x1]
        %v1298 = vld [vmem:[%s1255 + $0x18] sm:$0xf]
        %v1299 = vld [vmem:[%s1255 + $0x1c] sm:$0x1]
        %v1300 = vld [vmem:[%s1255 + $0x20] sm:$0xf]
        %v1301 = vld [vmem:[%s1255 + $0x24] sm:$0x1]
        %v1302 = vld [vmem:[%s1255 + $0x28] sm:$0xf]
        %v1303 = vld [vmem:[%s1255 + $0x2c] sm:$0x1]
        %v1304 = vld [vmem:[%s1255 + $0x30] sm:$0xf]
        %v1305 = vld [vmem:[%s1255 + $0x34] sm:$0x1]
        %v1306 = vld [vmem:[%s1255 + $0x38] sm:$0xf]
        %v1307 = vld [vmem:[%s1255 + $0x3c] sm:$0x1]
        %v1309 = vshrl.u32 %v1292, 16
        %v1311 = vrot.slane %v1309, 4
        %v1312 = vshll.u32 %v1292, 16
        %v1314 = vrot.slane %v1312, 5
        %v1315 = vor.u32 %v1311, %v1314
        %v1316 = vrot.slane %v1315, 4
        %v1318 = vshll.u32 %v1293, 16
        %v1320 = vrot.slane %v1318, 5
        %v1321 = vsel %vm767, %v1316, %v1320
        %v1323 = vshrl.u32 %v1294, 16
        %v1325 = vrot.slane %v1323, 4
        %v1326 = vshll.u32 %v1294, 16
        %v1328 = vrot.slane %v1326, 5
        %v1329 = vor.u32 %v1325, %v1328
        %v1330 = vrot.slane %v1329, 4
        %v1332 = vshll.u32 %v1295, 16
        %v1334 = vrot.slane %v1332, 5
        %v1335 = vsel %vm767, %v1330, %v1334
        %v1337 = vshrl.u32 %v1296, 16
        %v1339 = vrot.slane %v1337, 4
        %v1340 = vshll.u32 %v1296, 16
        %v1342 = vrot.slane %v1340, 5
        %v1343 = vor.u32 %v1339, %v1342
        %v1344 = vrot.slane %v1343, 4
        %v1346 = vshll.u32 %v1297, 16
        %v1348 = vrot.slane %v1346, 5
        %v1349 = vsel %vm767, %v1344, %v1348
        %v1351 = vshrl.u32 %v1298, 16
        %v1353 = vrot.slane %v1351, 4
        %v1354 = vshll.u32 %v1298, 16
        %v1356 = vrot.slane %v1354, 5
        %v1357 = vor.u32 %v1353, %v1356
        %v1358 = vrot.slane %v1357, 4
        %v1360 = vshll.u32 %v1299, 16
        %v1362 = vrot.slane %v1360, 5
        %v1363 = vsel %vm767, %v1358, %v1362
        %v1365 = vshrl.u32 %v1300, 16
        %v1367 = vrot.slane %v1365, 4
        %v1368 = vshll.u32 %v1300, 16
        %v1370 = vrot.slane %v1368, 5
        %v1371 = vor.u32 %v1367, %v1370
        %v1372 = vrot.slane %v1371, 4
        %v1374 = vshll.u32 %v1301, 16
        %v1376 = vrot.slane %v1374, 5
        %v1377 = vsel %vm767, %v1372, %v1376
        %v1379 = vshrl.u32 %v1302, 16
        %v1381 = vrot.slane %v1379, 4
        %v1382 = vshll.u32 %v1302, 16
        %v1384 = vrot.slane %v1382, 5
        %v1385 = vor.u32 %v1381, %v1384
        %v1386 = vrot.slane %v1385, 4
        %v1388 = vshll.u32 %v1303, 16
        %v1390 = vrot.slane %v1388, 5
        %v1391 = vsel %vm767, %v1386, %v1390
        %v1393 = vshrl.u32 %v1304, 16
        %v1395 = vrot.slane %v1393, 4
        %v1396 = vshll.u32 %v1304, 16
        %v1398 = vrot.slane %v1396, 5
        %v1399 = vor.u32 %v1395, %v1398
        %v1400 = vrot.slane %v1399, 4
        %v1402 = vshll.u32 %v1305, 16
        %v1404 = vrot.slane %v1402, 5
        %v1405 = vsel %vm767, %v1400, %v1404
        %v1407 = vshrl.u32 %v1306, 16
        %v1409 = vrot.slane %v1407, 4
        %v1410 = vshll.u32 %v1306, 16
        %v1412 = vrot.slane %v1410, 5
        %v1413 = vor.u32 %v1409, %v1412
        %v1414 = vrot.slane %v1413, 4
        %v1416 = vshll.u32 %v1307, 16
        %v1418 = vrot.slane %v1416, 5
        %v1419 = vsel %vm767, %v1414, %v1418
        %v1420 = vunpack.c.l.b16 %v1321
        %v1421 = vunpack.c.l.b16 %v1335
        %v1422 = vunpack.c.l.b16 %v1349
        %v1423 = vunpack.c.l.b16 %v1363
        %v1424 = vunpack.c.l.b16 %v1377
        %v1425 = vunpack.c.l.b16 %v1391
        %v1426 = vunpack.c.l.b16 %v1405
        %v1427 = vunpack.c.l.b16 %v1419
        %v1428 = vpack.c.b16 %v1421, %v1420
        %v1429 = vpack.c.b16 %v1423, %v1422
        %v1430 = vpack.c.b16 %v1425, %v1424
        %v1431 = vpack.c.b16 %v1427, %v1426
        %1436 = vst [vmem:[#allocation3 + $0x38] sm:$0xff] %v1428
        %1437 = vst [vmem:[#allocation3 + $0x80] sm:$0xff] %v1429
        %1438 = vst [vmem:[#allocation3 + $0xc8] sm:$0xff] %v1430
        %1439 = vst [vmem:[#allocation3 + $0x110] sm:$0xff] %v1431
        %v1440 = vld [vmem:[%s1255] sm:$0xe]
        %v1441 = vld [vmem:[%s1255 + $0x4] sm:$0x1]
        %v1442 = vld [vmem:[%s1255 + $0x8] sm:$0xe]
        %v1443 = vld [vmem:[%s1255 + $0xc] sm:$0x1]
        %v1444 = vld [vmem:[%s1255 + $0x10] sm:$0xe]
        %v1445 = vld [vmem:[%s1255 + $0x14] sm:$0x1]
        %v1446 = vld [vmem:[%s1255 + $0x18] sm:$0xe]
        %v1447 = vld [vmem:[%s1255 + $0x1c] sm:$0x1]
        %v1448 = vld [vmem:[%s1255 + $0x20] sm:$0xe]
        %v1449 = vld [vmem:[%s1255 + $0x24] sm:$0x1]
        %v1450 = vld [vmem:[%s1255 + $0x28] sm:$0xe]
        %v1451 = vld [vmem:[%s1255 + $0x2c] sm:$0x1]
        %v1452 = vld [vmem:[%s1255 + $0x30] sm:$0xe]
        %v1453 = vld [vmem:[%s1255 + $0x34] sm:$0x1]
        %v1454 = vld [vmem:[%s1255 + $0x38] sm:$0xe]
        %v1455 = vld [vmem:[%s1255 + $0x3c] sm:$0x1]
        %v1472 = vrot.slane %v1440, 5
        %v1473 = vrot.slane %v1472, 4
        %v1474 = vrot.slane %v1441, 5
        %v1475 = vsel %vm934, %v1473, %v1474
        %v1476 = vrot.slane %v1442, 5
        %v1477 = vrot.slane %v1476, 4
        %v1478 = vrot.slane %v1443, 5
        %v1479 = vsel %vm934, %v1477, %v1478
        %v1480 = vrot.slane %v1444, 5
        %v1481 = vrot.slane %v1480, 4
        %v1482 = vrot.slane %v1445, 5
        %v1483 = vsel %vm934, %v1481, %v1482
        %v1484 = vrot.slane %v1446, 5
        %v1485 = vrot.slane %v1484, 4
        %v1486 = vrot.slane %v1447, 5
        %v1487 = vsel %vm934, %v1485, %v1486
        %v1488 = vrot.slane %v1448, 5
        %v1489 = vrot.slane %v1488, 4
        %v1490 = vrot.slane %v1449, 5
        %v1491 = vsel %vm934, %v1489, %v1490
        %v1492 = vrot.slane %v1450, 5
        %v1493 = vrot.slane %v1492, 4
        %v1494 = vrot.slane %v1451, 5
        %v1495 = vsel %vm934, %v1493, %v1494
        %v1496 = vrot.slane %v1452, 5
        %v1497 = vrot.slane %v1496, 4
        %v1498 = vrot.slane %v1453, 5
        %v1499 = vsel %vm934, %v1497, %v1498
        %v1500 = vrot.slane %v1454, 5
        %v1501 = vrot.slane %v1500, 4
        %v1502 = vrot.slane %v1455, 5
        %v1503 = vsel %vm934, %v1501, %v1502
        %v1504 = vunpack.c.l.b16 %v1475
        %v1505 = vunpack.c.l.b16 %v1479
        %v1506 = vunpack.c.l.b16 %v1483
        %v1507 = vunpack.c.l.b16 %v1487
        %v1508 = vunpack.c.l.b16 %v1491
        %v1509 = vunpack.c.l.b16 %v1495
        %v1510 = vunpack.c.l.b16 %v1499
        %v1511 = vunpack.c.l.b16 %v1503
        %v1512 = vpack.c.b16 %v1505, %v1504
        %v1513 = vpack.c.b16 %v1507, %v1506
        %v1514 = vpack.c.b16 %v1509, %v1508
        %v1515 = vpack.c.b16 %v1511, %v1510
        %1520 = vst [vmem:[#allocation3 + $0x40] sm:$0xff] %v1512
        %1521 = vst [vmem:[#allocation3 + $0x88] sm:$0xff] %v1513
        %1522 = vst [vmem:[#allocation3 + $0xd0] sm:$0xff] %v1514
        %1523 = vst [vmem:[#allocation3 + $0x118] sm:$0xff] %v1515
        %v1524 = vld [vmem:[#allocation3] sm:$0xff]
        %v1525 = vld [vmem:[#allocation3 + $0x8] sm:$0xff]
        %v1526 = vld [vmem:[#allocation3 + $0x10] sm:$0xff]
        %v1527 = vld [vmem:[#allocation3 + $0x18] sm:$0xff]
        %v1528 = vld [vmem:[#allocation3 + $0x20] sm:$0xff]
        %v1529 = vld [vmem:[#allocation3 + $0x28] sm:$0xff]
        %v1530 = vld [vmem:[#allocation3 + $0x30] sm:$0xff]
        %v1531 = vld [vmem:[#allocation3 + $0x38] sm:$0xff]
        %v1532 = vld [vmem:[#allocation3 + $0x40] sm:$0xff]
        %v1533 = vld [vmem:[#allocation3 + $0x48] sm:$0xff]
        %v1534 = vld [vmem:[#allocation3 + $0x50] sm:$0xff]
        %v1535 = vld [vmem:[#allocation3 + $0x58] sm:$0xff]
        %v1536 = vld [vmem:[#allocation3 + $0x60] sm:$0xff]
        %v1537 = vld [vmem:[#allocation3 + $0x68] sm:$0xff]
        %v1538 = vld [vmem:[#allocation3 + $0x70] sm:$0xff]
        %v1539 = vld [vmem:[#allocation3 + $0x78] sm:$0xff]
        %v1540 = vld [vmem:[#allocation3 + $0x80] sm:$0xff]
        %v1541 = vld [vmem:[#allocation3 + $0x88] sm:$0xff]
        %v1542 = vld [vmem:[#allocation3 + $0x90] sm:$0xff]
        %v1543 = vld [vmem:[#allocation3 + $0x98] sm:$0xff]
        %v1544 = vld [vmem:[#allocation3 + $0xa0] sm:$0xff]
        %v1545 = vld [vmem:[#allocation3 + $0xa8] sm:$0xff]
        %v1546 = vld [vmem:[#allocation3 + $0xb0] sm:$0xff]
        %v1547 = vld [vmem:[#allocation3 + $0xb8] sm:$0xff]
        %v1548 = vld [vmem:[#allocation3 + $0xc0] sm:$0xff]
        %v1549 = vld [vmem:[#allocation3 + $0xc8] sm:$0xff]
        %v1550 = vld [vmem:[#allocation3 + $0xd0] sm:$0xff]
        %v1551 = vld [vmem:[#allocation3 + $0xd8] sm:$0xff]
        %v1552 = vld [vmem:[#allocation3 + $0xe0] sm:$0xff]
        %v1553 = vld [vmem:[#allocation3 + $0xe8] sm:$0xff]
        %v1554 = vld [vmem:[#allocation3 + $0xf0] sm:$0xff]
        %v1555 = vld [vmem:[#allocation3 + $0xf8] sm:$0xff]
        %v1556 = vld [vmem:[#allocation3 + $0x100] sm:$0xff]
        %v1557 = vld [vmem:[#allocation3 + $0x108] sm:$0xff]
        %v1558 = vld [vmem:[#allocation3 + $0x110] sm:$0xff]
        %v1559 = vld [vmem:[#allocation3 + $0x118] sm:$0xff]
        %v1560 = vld [vmem:[#allocation10] sm:$0xf]
        %v1561 = vld [vmem:[#allocation10 + $0x4] sm:$0xf]
        %v1562 = vld [vmem:[#allocation10 + $0x8] sm:$0xf]
        %v1563 = vld [vmem:[#allocation10 + $0xc] sm:$0xf]
        %v1564 = vld [vmem:[#allocation10 + $0x10] sm:$0xf]
        %v1565 = vld [vmem:[#allocation10 + $0x14] sm:$0xf]
        %v1566 = vld [vmem:[#allocation10 + $0x18] sm:$0xf]
        %v1567 = vld [vmem:[#allocation10 + $0x1c] sm:$0xf]
        %v1568 = vld [vmem:[#allocation10 + $0x20] sm:$0xf]
        %v1569 = vld [vmem:[#allocation10 + $0x24] sm:$0xf]
        %v1570 = vld [vmem:[#allocation10 + $0x28] sm:$0xf]
        %v1571 = vld [vmem:[#allocation10 + $0x2c] sm:$0xf]
        %v1572 = vld [vmem:[#allocation10 + $0x30] sm:$0xf]
        %v1573 = vld [vmem:[#allocation10 + $0x34] sm:$0xf]
        %v1574 = vld [vmem:[#allocation10 + $0x38] sm:$0xf]
        %v1575 = vld [vmem:[#allocation10 + $0x3c] sm:$0xf]
        %v1576 = vld [vmem:[#allocation10 + $0x40] sm:$0xf]
        %v1577 = vld [vmem:[#allocation10 + $0x44] sm:$0xf]
        %v1578 = vld [vmem:[#allocation10 + $0x48] sm:$0xf]
        %v1579 = vld [vmem:[#allocation10 + $0x4c] sm:$0xf]
        %v1580 = vld [vmem:[#allocation10 + $0x50] sm:$0xf]
        %v1581 = vld [vmem:[#allocation10 + $0x54] sm:$0xf]
        %v1582 = vld [vmem:[#allocation10 + $0x58] sm:$0xf]
        %v1583 = vld [vmem:[#allocation10 + $0x5c] sm:$0xf]
        %v1584 = vld [vmem:[#allocation10 + $0x60] sm:$0xf]
        %v1585 = vld [vmem:[#allocation10 + $0x64] sm:$0xf]
        %v1586 = vld [vmem:[#allocation10 + $0x68] sm:$0xf]
        %v1587 = vld [vmem:[#allocation10 + $0x6c] sm:$0xf]
        %v1588 = vld [vmem:[#allocation10 + $0x70] sm:$0xf]
        %v1589 = vld [vmem:[#allocation10 + $0x74] sm:$0xf]
        %v1590 = vld [vmem:[#allocation10 + $0x78] sm:$0xf]
        %v1591 = vld [vmem:[#allocation10 + $0x7c] sm:$0xf]
        %v1592 = vld [vmem:[#allocation10 + $0x80] sm:$0xf]
        %v1593 = vld [vmem:[#allocation10 + $0x84] sm:$0xf]
        %v1594 = vld [vmem:[#allocation10 + $0x88] sm:$0xf]
        %v1595 = vld [vmem:[#allocation10 + $0x8c] sm:$0xf]
        %v1596 = vld [vmem:[#allocation10 + $0x90] sm:$0xf]
        %v1597 = vld [vmem:[#allocation10 + $0x94] sm:$0xf]
        %v1598 = vld [vmem:[#allocation10 + $0x98] sm:$0xf]
        %v1599 = vld [vmem:[#allocation10 + $0x9c] sm:$0xf]
        %v1600 = vld [vmem:[#allocation10 + $0xa0] sm:$0xf]
        %v1601 = vld [vmem:[#allocation10 + $0xa4] sm:$0xf]
        %v1602 = vld [vmem:[#allocation10 + $0xa8] sm:$0xf]
        %v1603 = vld [vmem:[#allocation10 + $0xac] sm:$0xf]
        %v1604 = vld [vmem:[#allocation10 + $0xb0] sm:$0xf]
        %v1605 = vld [vmem:[#allocation10 + $0xb4] sm:$0xf]
        %v1606 = vld [vmem:[#allocation10 + $0xb8] sm:$0xf]
        %v1607 = vld [vmem:[#allocation10 + $0xbc] sm:$0xf]
        %v1608 = vld [vmem:[#allocation10 + $0xc0] sm:$0xf]
        %v1609 = vld [vmem:[#allocation10 + $0xc4] sm:$0xf]
        %v1610 = vld [vmem:[#allocation10 + $0xc8] sm:$0xf]
        %v1611 = vld [vmem:[#allocation10 + $0xcc] sm:$0xf]
        %v1612 = vld [vmem:[#allocation10 + $0xd0] sm:$0xf]
        %v1613 = vld [vmem:[#allocation10 + $0xd4] sm:$0xf]
        %v1614 = vld [vmem:[#allocation10 + $0xd8] sm:$0xf]
        %v1615 = vld [vmem:[#allocation10 + $0xdc] sm:$0xf]
        %v1616 = vld [vmem:[#allocation10 + $0xe0] sm:$0xf]
        %v1617 = vld [vmem:[#allocation10 + $0xe4] sm:$0xf]
        %v1618 = vld [vmem:[#allocation10 + $0xe8] sm:$0xf]
        %v1619 = vld [vmem:[#allocation10 + $0xec] sm:$0xf]
        %v1620 = vld [vmem:[#allocation10 + $0xf0] sm:$0xf]
        %v1621 = vld [vmem:[#allocation10 + $0xf4] sm:$0xf]
        %v1622 = vld [vmem:[#allocation10 + $0xf8] sm:$0xf]
        %v1623 = vld [vmem:[#allocation10 + $0xfc] sm:$0xf]
        %v1624 = vld [vmem:[#allocation10 + $0x100] sm:$0xf]
        %v1625 = vld [vmem:[#allocation10 + $0x104] sm:$0xf]
        %v1626 = vld [vmem:[#allocation10 + $0x108] sm:$0xf]
        %v1627 = vld [vmem:[#allocation10 + $0x10c] sm:$0xf]
        %v1628 = vld [vmem:[#allocation10 + $0x110] sm:$0xf]
        %v1629 = vld [vmem:[#allocation10 + $0x114] sm:$0xf]
        %v1630 = vld [vmem:[#allocation10 + $0x118] sm:$0xf]
        %v1631 = vld [vmem:[#allocation10 + $0x11c] sm:$0xf]
        %v1632 = vld [vmem:[#allocation10 + $0x120] sm:$0xf]
        %v1633 = vld [vmem:[#allocation10 + $0x124] sm:$0xf]
        %v1634 = vld [vmem:[#allocation10 + $0x128] sm:$0xf]
        %v1635 = vld [vmem:[#allocation10 + $0x12c] sm:$0xf]
        %v1636 = vld [vmem:[#allocation10 + $0x130] sm:$0xf]
        %v1637 = vld [vmem:[#allocation10 + $0x134] sm:$0xf]
        %v1638 = vld [vmem:[#allocation10 + $0x138] sm:$0xf]
        %v1639 = vld [vmem:[#allocation10 + $0x13c] sm:$0xf]
        %v1640 = vld [vmem:[#allocation10 + $0x140] sm:$0xf]
        %v1641 = vld [vmem:[#allocation10 + $0x144] sm:$0xf]
        %v1642 = vld [vmem:[#allocation10 + $0x148] sm:$0xf]
        %v1643 = vld [vmem:[#allocation10 + $0x14c] sm:$0xf]
        %v1644 = vld [vmem:[#allocation10 + $0x150] sm:$0xf]
        %v1645 = vld [vmem:[#allocation10 + $0x154] sm:$0xf]
        %v1646 = vld [vmem:[#allocation10 + $0x158] sm:$0xf]
        %v1647 = vld [vmem:[#allocation10 + $0x15c] sm:$0xf]
        %v1648 = vld [vmem:[#allocation10 + $0x160] sm:$0xf]
        %v1649 = vld [vmem:[#allocation10 + $0x164] sm:$0xf]
        %v1650 = vld [vmem:[#allocation10 + $0x168] sm:$0xf]
        %v1651 = vld [vmem:[#allocation10 + $0x16c] sm:$0xf]
        %v1652 = vld [vmem:[#allocation10 + $0x170] sm:$0xf]
        %v1653 = vld [vmem:[#allocation10 + $0x174] sm:$0xf]
        %v1654 = vld [vmem:[#allocation10 + $0x178] sm:$0xf]
        %v1655 = vld [vmem:[#allocation10 + $0x17c] sm:$0xf]
        %v1656 = vld [vmem:[#allocation10 + $0x180] sm:$0xf]
        %v1657 = vld [vmem:[#allocation10 + $0x184] sm:$0xf]
        %v1658 = vld [vmem:[#allocation10 + $0x188] sm:$0xf]
        %v1659 = vld [vmem:[#allocation10 + $0x18c] sm:$0xf]
        %v1660 = vld [vmem:[#allocation10 + $0x190] sm:$0xf]
        %v1661 = vld [vmem:[#allocation10 + $0x194] sm:$0xf]
        %v1662 = vld [vmem:[#allocation10 + $0x198] sm:$0xf]
        %v1663 = vld [vmem:[#allocation10 + $0x19c] sm:$0xf]
        %v1664 = vld [vmem:[#allocation10 + $0x1a0] sm:$0xf]
        %v1665 = vld [vmem:[#allocation10 + $0x1a4] sm:$0xf]
        %v1666 = vld [vmem:[#allocation10 + $0x1a8] sm:$0xf]
        %v1667 = vld [vmem:[#allocation10 + $0x1ac] sm:$0xf]
        %v1668 = vld [vmem:[#allocation10 + $0x1b0] sm:$0xf]
        %v1669 = vld [vmem:[#allocation10 + $0x1b4] sm:$0xf]
        %v1670 = vld [vmem:[#allocation10 + $0x1b8] sm:$0xf]
        %v1671 = vld [vmem:[#allocation10 + $0x1bc] sm:$0xf]
        %v1672 = vld [vmem:[#allocation10 + $0x1c0] sm:$0xf]
        %v1673 = vld [vmem:[#allocation10 + $0x1c4] sm:$0xf]
        %v1674 = vld [vmem:[#allocation10 + $0x1c8] sm:$0xf]
        %v1675 = vld [vmem:[#allocation10 + $0x1cc] sm:$0xf]
        %v1676 = vld [vmem:[#allocation10 + $0x1d0] sm:$0xf]
        %v1677 = vld [vmem:[#allocation10 + $0x1d4] sm:$0xf]
        %v1678 = vld [vmem:[#allocation10 + $0x1d8] sm:$0xf]
        %v1679 = vld [vmem:[#allocation10 + $0x1dc] sm:$0xf]
        %v1680 = vld [vmem:[#allocation10 + $0x1e0] sm:$0xf]
        %v1681 = vld [vmem:[#allocation10 + $0x1e4] sm:$0xf]
        %v1682 = vld [vmem:[#allocation10 + $0x1e8] sm:$0xf]
        %v1683 = vld [vmem:[#allocation10 + $0x1ec] sm:$0xf]
        %v1684 = vld [vmem:[#allocation10 + $0x1f0] sm:$0xf]
        %v1685 = vld [vmem:[#allocation10 + $0x1f4] sm:$0xf]
        %v1686 = vld [vmem:[#allocation10 + $0x1f8] sm:$0xf]
        %v1687 = vld [vmem:[#allocation10 + $0x1fc] sm:$0xf]
        %v1688 = vld [vmem:[#allocation10 + $0x200] sm:$0xf]
        %v1689 = vld [vmem:[#allocation10 + $0x204] sm:$0xf]
        %v1690 = vld [vmem:[#allocation10 + $0x208] sm:$0xf]
        %v1691 = vld [vmem:[#allocation10 + $0x20c] sm:$0xf]
        %v1692 = vld [vmem:[#allocation10 + $0x210] sm:$0xf]
        %v1693 = vld [vmem:[#allocation10 + $0x214] sm:$0xf]
        %v1694 = vld [vmem:[#allocation10 + $0x218] sm:$0xf]
        %v1695 = vld [vmem:[#allocation10 + $0x21c] sm:$0xf]
        %v1696 = vld [vmem:[#allocation10 + $0x220] sm:$0xf]
        %v1697 = vld [vmem:[#allocation10 + $0x224] sm:$0xf]
        %v1698 = vld [vmem:[#allocation10 + $0x228] sm:$0xf]
        %v1699 = vld [vmem:[#allocation10 + $0x22c] sm:$0xf]
        %v1700 = vld [vmem:[#allocation10 + $0x230] sm:$0xf]
        %v1701 = vld [vmem:[#allocation10 + $0x234] sm:$0xf]
        %v1702 = vld [vmem:[#allocation10 + $0x238] sm:$0xf]
        %v1703 = vld [vmem:[#allocation10 + $0x23c] sm:$0xf]
        %v1848 = vunpack.c.l.b16 %v1560
        %v1849 = vunpack.c.l.b16 %v1561
        %v1850 = vunpack.c.l.b16 %v1562
        %v1851 = vunpack.c.l.b16 %v1563
        %v1852 = vunpack.c.l.b16 %v1564
        %v1853 = vunpack.c.l.b16 %v1565
        %v1854 = vunpack.c.l.b16 %v1566
        %v1855 = vunpack.c.l.b16 %v1567
        %v1856 = vunpack.c.l.b16 %v1568
        %v1857 = vunpack.c.l.b16 %v1569
        %v1858 = vunpack.c.l.b16 %v1570
        %v1859 = vunpack.c.l.b16 %v1571
        %v1860 = vunpack.c.l.b16 %v1572
        %v1861 = vunpack.c.l.b16 %v1573
        %v1862 = vunpack.c.l.b16 %v1574
        %v1863 = vunpack.c.l.b16 %v1575
        %v1864 = vunpack.c.l.b16 %v1576
        %v1865 = vunpack.c.l.b16 %v1577
        %v1866 = vunpack.c.l.b16 %v1578
        %v1867 = vunpack.c.l.b16 %v1579
        %v1868 = vunpack.c.l.b16 %v1580
        %v1869 = vunpack.c.l.b16 %v1581
        %v1870 = vunpack.c.l.b16 %v1582
        %v1871 = vunpack.c.l.b16 %v1583
        %v1872 = vunpack.c.l.b16 %v1584
        %v1873 = vunpack.c.l.b16 %v1585
        %v1874 = vunpack.c.l.b16 %v1586
        %v1875 = vunpack.c.l.b16 %v1587
        %v1876 = vunpack.c.l.b16 %v1588
        %v1877 = vunpack.c.l.b16 %v1589
        %v1878 = vunpack.c.l.b16 %v1590
        %v1879 = vunpack.c.l.b16 %v1591
        %v1880 = vunpack.c.l.b16 %v1592
        %v1881 = vunpack.c.l.b16 %v1593
        %v1882 = vunpack.c.l.b16 %v1594
        %v1883 = vunpack.c.l.b16 %v1595
        %v1884 = vunpack.c.l.b16 %v1596
        %v1885 = vunpack.c.l.b16 %v1597
        %v1886 = vunpack.c.l.b16 %v1598
        %v1887 = vunpack.c.l.b16 %v1599
        %v1888 = vunpack.c.l.b16 %v1600
        %v1889 = vunpack.c.l.b16 %v1601
        %v1890 = vunpack.c.l.b16 %v1602
        %v1891 = vunpack.c.l.b16 %v1603
        %v1892 = vunpack.c.l.b16 %v1604
        %v1893 = vunpack.c.l.b16 %v1605
        %v1894 = vunpack.c.l.b16 %v1606
        %v1895 = vunpack.c.l.b16 %v1607
        %v1896 = vunpack.c.l.b16 %v1608
        %v1897 = vunpack.c.l.b16 %v1609
        %v1898 = vunpack.c.l.b16 %v1610
        %v1899 = vunpack.c.l.b16 %v1611
        %v1900 = vunpack.c.l.b16 %v1612
        %v1901 = vunpack.c.l.b16 %v1613
        %v1902 = vunpack.c.l.b16 %v1614
        %v1903 = vunpack.c.l.b16 %v1615
        %v1904 = vunpack.c.l.b16 %v1616
        %v1905 = vunpack.c.l.b16 %v1617
        %v1906 = vunpack.c.l.b16 %v1618
        %v1907 = vunpack.c.l.b16 %v1619
        %v1908 = vunpack.c.l.b16 %v1620
        %v1909 = vunpack.c.l.b16 %v1621
        %v1910 = vunpack.c.l.b16 %v1622
        %v1911 = vunpack.c.l.b16 %v1623
        %v1912 = vunpack.c.l.b16 %v1624
        %v1913 = vunpack.c.l.b16 %v1625
        %v1914 = vunpack.c.l.b16 %v1626
        %v1915 = vunpack.c.l.b16 %v1627
        %v1916 = vunpack.c.l.b16 %v1628
        %v1917 = vunpack.c.l.b16 %v1629
        %v1918 = vunpack.c.l.b16 %v1630
        %v1919 = vunpack.c.l.b16 %v1631
        %v1920 = vunpack.c.l.b16 %v1632
        %v1921 = vunpack.c.l.b16 %v1633
        %v1922 = vunpack.c.l.b16 %v1634
        %v1923 = vunpack.c.l.b16 %v1635
        %v1924 = vunpack.c.l.b16 %v1636
        %v1925 = vunpack.c.l.b16 %v1637
        %v1926 = vunpack.c.l.b16 %v1638
        %v1927 = vunpack.c.l.b16 %v1639
        %v1928 = vunpack.c.l.b16 %v1640
        %v1929 = vunpack.c.l.b16 %v1641
        %v1930 = vunpack.c.l.b16 %v1642
        %v1931 = vunpack.c.l.b16 %v1643
        %v1932 = vunpack.c.l.b16 %v1644
        %v1933 = vunpack.c.l.b16 %v1645
        %v1934 = vunpack.c.l.b16 %v1646
        %v1935 = vunpack.c.l.b16 %v1647
        %v1936 = vunpack.c.l.b16 %v1648
        %v1937 = vunpack.c.l.b16 %v1649
        %v1938 = vunpack.c.l.b16 %v1650
        %v1939 = vunpack.c.l.b16 %v1651
        %v1940 = vunpack.c.l.b16 %v1652
        %v1941 = vunpack.c.l.b16 %v1653
        %v1942 = vunpack.c.l.b16 %v1654
        %v1943 = vunpack.c.l.b16 %v1655
        %v1944 = vunpack.c.l.b16 %v1656
        %v1945 = vunpack.c.l.b16 %v1657
        %v1946 = vunpack.c.l.b16 %v1658
        %v1947 = vunpack.c.l.b16 %v1659
        %v1948 = vunpack.c.l.b16 %v1660
        %v1949 = vunpack.c.l.b16 %v1661
        %v1950 = vunpack.c.l.b16 %v1662
        %v1951 = vunpack.c.l.b16 %v1663
        %v1952 = vunpack.c.l.b16 %v1664
        %v1953 = vunpack.c.l.b16 %v1665
        %v1954 = vunpack.c.l.b16 %v1666
        %v1955 = vunpack.c.l.b16 %v1667
        %v1956 = vunpack.c.l.b16 %v1668
        %v1957 = vunpack.c.l.b16 %v1669
        %v1958 = vunpack.c.l.b16 %v1670
        %v1959 = vunpack.c.l.b16 %v1671
        %v1960 = vunpack.c.l.b16 %v1672
        %v1961 = vunpack.c.l.b16 %v1673
        %v1962 = vunpack.c.l.b16 %v1674
        %v1963 = vunpack.c.l.b16 %v1675
        %v1964 = vunpack.c.l.b16 %v1676
        %v1965 = vunpack.c.l.b16 %v1677
        %v1966 = vunpack.c.l.b16 %v1678
        %v1967 = vunpack.c.l.b16 %v1679
        %v1968 = vunpack.c.l.b16 %v1680
        %v1969 = vunpack.c.l.b16 %v1681
        %v1970 = vunpack.c.l.b16 %v1682
        %v1971 = vunpack.c.l.b16 %v1683
        %v1972 = vunpack.c.l.b16 %v1684
        %v1973 = vunpack.c.l.b16 %v1685
        %v1974 = vunpack.c.l.b16 %v1686
        %v1975 = vunpack.c.l.b16 %v1687
        %v1976 = vunpack.c.l.b16 %v1688
        %v1977 = vunpack.c.l.b16 %v1689
        %v1978 = vunpack.c.l.b16 %v1690
        %v1979 = vunpack.c.l.b16 %v1691
        %v1980 = vunpack.c.l.b16 %v1692
        %v1981 = vunpack.c.l.b16 %v1693
        %v1982 = vunpack.c.l.b16 %v1694
        %v1983 = vunpack.c.l.b16 %v1695
        %v1984 = vunpack.c.l.b16 %v1696
        %v1985 = vunpack.c.l.b16 %v1697
        %v1986 = vunpack.c.l.b16 %v1698
        %v1987 = vunpack.c.l.b16 %v1699
        %v1988 = vunpack.c.l.b16 %v1700
        %v1989 = vunpack.c.l.b16 %v1701
        %v1990 = vunpack.c.l.b16 %v1702
        %v1991 = vunpack.c.l.b16 %v1703
        %v1992 = vpack.c.b16 %v1849, %v1848
        %v1993 = vpack.c.b16 %v1851, %v1850
        %v1994 = vpack.c.b16 %v1853, %v1852
        %v1995 = vpack.c.b16 %v1855, %v1854
        %v1996 = vpack.c.b16 %v1857, %v1856
        %v1997 = vpack.c.b16 %v1859, %v1858
        %v1998 = vpack.c.b16 %v1861, %v1860
        %v1999 = vpack.c.b16 %v1863, %v1862
        %v2000 = vpack.c.b16 %v1865, %v1864
        %v2001 = vpack.c.b16 %v1867, %v1866
        %v2002 = vpack.c.b16 %v1869, %v1868
        %v2003 = vpack.c.b16 %v1871, %v1870
        %v2004 = vpack.c.b16 %v1873, %v1872
        %v2005 = vpack.c.b16 %v1875, %v1874
        %v2006 = vpack.c.b16 %v1877, %v1876
        %v2007 = vpack.c.b16 %v1879, %v1878
        %v2008 = vpack.c.b16 %v1881, %v1880
        %v2009 = vpack.c.b16 %v1883, %v1882
        %v2010 = vpack.c.b16 %v1885, %v1884
        %v2011 = vpack.c.b16 %v1887, %v1886
        %v2012 = vpack.c.b16 %v1889, %v1888
        %v2013 = vpack.c.b16 %v1891, %v1890
        %v2014 = vpack.c.b16 %v1893, %v1892
        %v2015 = vpack.c.b16 %v1895, %v1894
        %v2016 = vpack.c.b16 %v1897, %v1896
        %v2017 = vpack.c.b16 %v1899, %v1898
        %v2018 = vpack.c.b16 %v1901, %v1900
        %v2019 = vpack.c.b16 %v1903, %v1902
        %v2020 = vpack.c.b16 %v1905, %v1904
        %v2021 = vpack.c.b16 %v1907, %v1906
        %v2022 = vpack.c.b16 %v1909, %v1908
        %v2023 = vpack.c.b16 %v1911, %v1910
        %v2024 = vpack.c.b16 %v1913, %v1912
        %v2025 = vpack.c.b16 %v1915, %v1914
        %v2026 = vpack.c.b16 %v1917, %v1916
        %v2027 = vpack.c.b16 %v1919, %v1918
        %v2028 = vpack.c.b16 %v1921, %v1920
        %v2029 = vpack.c.b16 %v1923, %v1922
        %v2030 = vpack.c.b16 %v1925, %v1924
        %v2031 = vpack.c.b16 %v1927, %v1926
        %v2032 = vpack.c.b16 %v1929, %v1928
        %v2033 = vpack.c.b16 %v1931, %v1930
        %v2034 = vpack.c.b16 %v1933, %v1932
        %v2035 = vpack.c.b16 %v1935, %v1934
        %v2036 = vpack.c.b16 %v1937, %v1936
        %v2037 = vpack.c.b16 %v1939, %v1938
        %v2038 = vpack.c.b16 %v1941, %v1940
        %v2039 = vpack.c.b16 %v1943, %v1942
        %v2040 = vpack.c.b16 %v1945, %v1944
        %v2041 = vpack.c.b16 %v1947, %v1946
        %v2042 = vpack.c.b16 %v1949, %v1948
        %v2043 = vpack.c.b16 %v1951, %v1950
        %v2044 = vpack.c.b16 %v1953, %v1952
        %v2045 = vpack.c.b16 %v1955, %v1954
        %v2046 = vpack.c.b16 %v1957, %v1956
        %v2047 = vpack.c.b16 %v1959, %v1958
        %v2048 = vpack.c.b16 %v1961, %v1960
        %v2049 = vpack.c.b16 %v1963, %v1962
        %v2050 = vpack.c.b16 %v1965, %v1964
        %v2051 = vpack.c.b16 %v1967, %v1966
        %v2052 = vpack.c.b16 %v1969, %v1968
        %v2053 = vpack.c.b16 %v1971, %v1970
        %v2054 = vpack.c.b16 %v1973, %v1972
        %v2055 = vpack.c.b16 %v1975, %v1974
        %v2056 = vpack.c.b16 %v1977, %v1976
        %v2057 = vpack.c.b16 %v1979, %v1978
        %v2058 = vpack.c.b16 %v1981, %v1980
        %v2059 = vpack.c.b16 %v1983, %v1982
        %v2060 = vpack.c.b16 %v1985, %v1984
        %v2061 = vpack.c.b16 %v1987, %v1986
        %v2062 = vpack.c.b16 %v1989, %v1988
        %v2063 = vpack.c.b16 %v1991, %v1990
        %2136 = vmatprep.subr.bf16.mxu0 0
        %2137 = vmatpush1.bf16.msra.mxu0 %v1992
        %2138 = vmatprep.subr.bf16.mxu0 0
        %2139 = vmatpush1.bf16.msra.mxu0 %v1993
        %2140 = vmatprep.subr.bf16.mxu0 0
        %2141 = vmatpush1.bf16.msra.mxu0 %v1994
        %2142 = vmatprep.subr.bf16.mxu0 0
        %2143 = vmatpush1.bf16.msra.mxu0 %v1995
        %2144 = vmatprep.subr.bf16.mxu0 0
        %2145 = vmatpush1.bf16.msra.mxu0 %v1996
        %2146 = vmatprep.subr.bf16.mxu0 0
        %2147 = vmatpush1.bf16.msra.mxu0 %v1997
        %2148 = vmatprep.subr.bf16.mxu0 0
        %2149 = vmatpush1.bf16.msra.mxu0 %v1998
        %2150 = vmatprep.subr.bf16.mxu0 0
        %2151 = vmatpush1.bf16.msra.mxu0 %v1999
        %2152 = vmatprep.subr.bf16.mxu0 0
        %2153 = vmatpush1.bf16.msra.mxu0 %v2000
        %2154 = vmatprep.subr.bf16.mxu0 0
        %2155 = vmatpush1.bf16.msra.mxu0 %v2001
        %2156 = vmatprep.subr.bf16.mxu0 0
        %2157 = vmatpush1.bf16.msra.mxu0 %v2002
        %2158 = vmatprep.subr.bf16.mxu0 0
        %2159 = vmatpush1.bf16.msra.mxu0 %v2003
        %2160 = vmatprep.subr.bf16.mxu0 0
        %2161 = vmatpush1.bf16.msra.mxu0 %v2004
        %2162 = vmatprep.subr.bf16.mxu0 0
        %2163 = vmatpush1.bf16.msra.mxu0 %v2005
        %2164 = vmatprep.subr.bf16.mxu0 0
        %2165 = vmatpush1.bf16.msra.mxu0 %v2006
        %2166 = vmatprep.subr.bf16.mxu0 0
        %2167 = vmatpush1.bf16.msra.mxu0 %v2007
        %2168 = vmatprep.mubr.bf16.mxu0 %v1525
        %2169 = vmatmul.mubr.bf16.gmra.mrb[0].mxu0 %v1524
        %v2170 = vpop.f32.mrb[0].mxu0
        %v2171 = vadd.f32 0.0, %v2170
        %v2172 = vpop.f32.mrb[0].mxu0
        %v2173 = vpop.f32.mrb[0].mxu0
        %v2174 = vadd.f32 0.0, %v2173
        %v2175 = vpop.f32.mrb[0].mxu0
        %2176 = vmatprep.mubr.bf16.mxu0 %v1534
        %2177 = vmatmul.mubr.bf16.gmra.mrb[0].mxu0 %v1533
        %v2178 = vpop.f32.mrb[0].mxu0
        %v2179 = vadd.f32 0.0, %v2178
        %v2180 = vpop.f32.mrb[0].mxu0
        %v2181 = vpop.f32.mrb[0].mxu0
        %v2182 = vadd.f32 0.0, %v2181
        %v2183 = vpop.f32.mrb[0].mxu0
        %2184 = vmatprep.mubr.bf16.mxu0 %v1543
        %2185 = vmatmul.mubr.bf16.gmra.mrb[0].mxu0 %v1542
        %v2186 = vpop.f32.mrb[0].mxu0
        %v2187 = vadd.f32 0.0, %v2186
        %v2188 = vpop.f32.mrb[0].mxu0
        %v2189 = vpop.f32.mrb[0].mxu0
        %v2190 = vadd.f32 0.0, %v2189
        %v2191 = vpop.f32.mrb[0].mxu0
        %2192 = vmatprep.mubr.bf16.mxu0 %v1552
        %2193 = vmatmul.mubr.bf16.gmra.mrb[0].mxu0 %v1551
        %v2194 = vpop.f32.mrb[0].mxu0
        %v2195 = vadd.f32 0.0, %v2194
        %v2196 = vpop.f32.mrb[0].mxu0
        %v2197 = vpop.f32.mrb[0].mxu0
        %v2198 = vadd.f32 0.0, %v2197
        %v2199 = vpop.f32.mrb[0].mxu0
        %2200 = vdwg.mxu0
        %2201 = vmatprep.subr.bf16.mxu0 0
        %2202 = vmatpush1.bf16.msra.mxu0 %v2008
        %2203 = vmatprep.subr.bf16.mxu0 0
        %2204 = vmatpush1.bf16.msra.mxu0 %v2009
        %2205 = vmatprep.subr.bf16.mxu0 0
        %2206 = vmatpush1.bf16.msra.mxu0 %v2010
        %2207 = vmatprep.subr.bf16.mxu0 0
        %2208 = vmatpush1.bf16.msra.mxu0 %v2011
        %2209 = vmatprep.subr.bf16.mxu0 0
        %2210 = vmatpush1.bf16.msra.mxu0 %v2012
        %2211 = vmatprep.subr.bf16.mxu0 0
        %2212 = vmatpush1.bf16.msra.mxu0 %v2013
        %2213 = vmatprep.subr.bf16.mxu0 0
        %2214 = vmatpush1.bf16.msra.mxu0 %v2014
        %2215 = vmatprep.subr.bf16.mxu0 0
        %2216 = vmatpush1.bf16.msra.mxu0 %v2015
        %2217 = vmatprep.subr.bf16.mxu0 0
        %2218 = vmatpush1.bf16.msra.mxu0 %v2016
        %2219 = vmatprep.subr.bf16.mxu0 0
        %2220 = vmatpush1.bf16.msra.mxu0 %v2017
        %2221 = vmatprep.subr.bf16.mxu0 0
        %2222 = vmatpush1.bf16.msra.mxu0 %v2018
        %2223 = vmatprep.subr.bf16.mxu0 0
        %2224 = vmatpush1.bf16.msra.mxu0 %v2019
        %2225 = vmatprep.subr.bf16.mxu0 0
        %2226 = vmatpush1.bf16.msra.mxu0 %v2020
        %2227 = vmatprep.subr.bf16.mxu0 0
        %2228 = vmatpush1.bf16.msra.mxu0 %v2021
        %2229 = vmatprep.subr.bf16.mxu0 0
        %2230 = vmatpush1.bf16.msra.mxu0 %v2022
        %2231 = vmatprep.subr.bf16.mxu0 0
        %2232 = vmatpush1.bf16.msra.mxu0 %v2023
        %2233 = vmatprep.mubr.bf16.mxu0 %v1527
        %2234 = vmatmul.mubr.bf16.gmra.mrb[0].mxu0 %v1526
        %v2235 = vpop.f32.mrb[0].mxu0
        %v2236 = vadd.f32 %v2171, %v2235
        %v2237 = vpop.f32.mrb[0].mxu0
        %v2238 = vpop.f32.mrb[0].mxu0
        %v2239 = vadd.f32 %v2174, %v2238
        %v2240 = vpop.f32.mrb[0].mxu0
        %2241 = vmatprep.mubr.bf16.mxu0 %v1536
        %2242 = vmatmul.mubr.bf16.gmra.mrb[0].mxu0 %v1535
        %v2243 = vpop.f32.mrb[0].mxu0
        %v2244 = vadd.f32 %v2179, %v2243
        %v2245 = vpop.f32.mrb[0].mxu0
        %v2246 = vpop.f32.mrb[0].mxu0
        %v2247 = vadd.f32 %v2182, %v2246
        %v2248 = vpop.f32.mrb[0].mxu0
        %2249 = vmatprep.mubr.bf16.mxu0 %v1545
        %2250 = vmatmul.mubr.bf16.gmra.mrb[0].mxu0 %v1544
        %v2251 = vpop.f32.mrb[0].mxu0
        %v2252 = vadd.f32 %v2187, %v2251
        %v2253 = vpop.f32.mrb[0].mxu0
        %v2254 = vpop.f32.mrb[0].mxu0
        %v2255 = vadd.f32 %v2190, %v2254
        %v2256 = vpop.f32.mrb[0].mxu0
        %2257 = vmatprep.mubr.bf16.mxu0 %v1554
        %2258 = vmatmul.mubr.bf16.gmra.mrb[0].mxu0 %v1553
        %v2259 = vpop.f32.mrb[0].mxu0
        %v2260 = vadd.f32 %v2195, %v2259
        %v2261 = vpop.f32.mrb[0].mxu0
        %v2262 = vpop.f32.mrb[0].mxu0
        %v2263 = vadd.f32 %v2198, %v2262
        %v2264 = vpop.f32.mrb[0].mxu0
        %2265 = vdwg.mxu0
        %2266 = vmatprep.subr.bf16.mxu0 0
        %2267 = vmatpush1.bf16.msra.mxu0 %v2024
        %2268 = vmatprep.subr.bf16.mxu0 0
        %2269 = vmatpush1.bf16.msra.mxu0 %v2025
        %2270 = vmatprep.subr.bf16.mxu0 0
        %2271 = vmatpush1.bf16.msra.mxu0 %v2026
        %2272 = vmatprep.subr.bf16.mxu0 0
        %2273 = vmatpush1.bf16.msra.mxu0 %v2027
        %2274 = vmatprep.subr.bf16.mxu0 0
        %2275 = vmatpush1.bf16.msra.mxu0 %v2028
        %2276 = vmatprep.subr.bf16.mxu0 0
        %2277 = vmatpush1.bf16.msra.mxu0 %v2029
        %2278 = vmatprep.subr.bf16.mxu0 0
        %2279 = vmatpush1.bf16.msra.mxu0 %v2030
        %2280 = vmatprep.subr.bf16.mxu0 0
        %2281 = vmatpush1.bf16.msra.mxu0 %v2031
        %2282 = vmatprep.subr.bf16.mxu0 0
        %2283 = vmatpush1.bf16.msra.mxu0 %v2032
        %2284 = vmatprep.subr.bf16.mxu0 0
        %2285 = vmatpush1.bf16.msra.mxu0 %v2033
        %2286 = vmatprep.subr.bf16.mxu0 0
        %2287 = vmatpush1.bf16.msra.mxu0 %v2034
        %2288 = vmatprep.subr.bf16.mxu0 0
        %2289 = vmatpush1.bf16.msra.mxu0 %v2035
        %2290 = vmatprep.subr.bf16.mxu0 0
        %2291 = vmatpush1.bf16.msra.mxu0 %v2036
        %2292 = vmatprep.subr.bf16.mxu0 0
        %2293 = vmatpush1.bf16.msra.mxu0 %v2037
        %2294 = vmatprep.subr.bf16.mxu0 0
        %2295 = vmatpush1.bf16.msra.mxu0 %v2038
        %2296 = vmatprep.subr.bf16.mxu0 0
        %2297 = vmatpush1.bf16.msra.mxu0 %v2039
        %2298 = vmatprep.mubr.bf16.mxu0 %v1529
        %2299 = vmatmul.mubr.bf16.gmra.mrb[0].mxu0 %v1528
        %v2300 = vpop.f32.mrb[0].mxu0
        %v2301 = vadd.f32 %v2236, %v2300
        %v2302 = vpop.f32.mrb[0].mxu0
        %v2303 = vpop.f32.mrb[0].mxu0
        %v2304 = vadd.f32 %v2239, %v2303
        %v2305 = vpop.f32.mrb[0].mxu0
        %2306 = vmatprep.mubr.bf16.mxu0 %v1538
        %2307 = vmatmul.mubr.bf16.gmra.mrb[0].mxu0 %v1537
        %v2308 = vpop.f32.mrb[0].mxu0
        %v2309 = vadd.f32 %v2244, %v2308
        %v2310 = vpop.f32.mrb[0].mxu0
        %v2311 = vpop.f32.mrb[0].mxu0
        %v2312 = vadd.f32 %v2247, %v2311
        %v2313 = vpop.f32.mrb[0].mxu0
        %2314 = vmatprep.mubr.bf16.mxu0 %v1547
        %2315 = vmatmul.mubr.bf16.gmra.mrb[0].mxu0 %v1546
        %v2316 = vpop.f32.mrb[0].mxu0
        %v2317 = vadd.f32 %v2252, %v2316
        %v2318 = vpop.f32.mrb[0].mxu0
        %v2319 = vpop.f32.mrb[0].mxu0
        %v2320 = vadd.f32 %v2255, %v2319
        %v2321 = vpop.f32.mrb[0].mxu0
        %2322 = vmatprep.mubr.bf16.mxu0 %v1556
        %2323 = vmatmul.mubr.bf16.gmra.mrb[0].mxu0 %v1555
        %v2324 = vpop.f32.mrb[0].mxu0
        %v2325 = vadd.f32 %v2260, %v2324
        %v2326 = vpop.f32.mrb[0].mxu0
        %v2327 = vpop.f32.mrb[0].mxu0
        %v2328 = vadd.f32 %v2263, %v2327
        %v2329 = vpop.f32.mrb[0].mxu0
        %2330 = vdwg.mxu0
        %2331 = vmatprep.subr.bf16.mxu0 0
        %2332 = vmatpush1.bf16.msra.mxu0 %v2040
        %2333 = vmatprep.subr.bf16.mxu0 0
        %2334 = vmatpush1.bf16.msra.mxu0 %v2041
        %2335 = vmatprep.subr.bf16.mxu0 0
        %2336 = vmatpush1.bf16.msra.mxu0 %v2042
        %2337 = vmatprep.subr.bf16.mxu0 0
        %2338 = vmatpush1.bf16.msra.mxu0 %v2043
        %2339 = vmatprep.subr.bf16.mxu0 0
        %2340 = vmatpush1.bf16.msra.mxu0 %v2044
        %2341 = vmatprep.subr.bf16.mxu0 0
        %2342 = vmatpush1.bf16.msra.mxu0 %v2045
        %2343 = vmatprep.subr.bf16.mxu0 0
        %2344 = vmatpush1.bf16.msra.mxu0 %v2046
        %2345 = vmatprep.subr.bf16.mxu0 0
        %2346 = vmatpush1.bf16.msra.mxu0 %v2047
        %2347 = vmatprep.subr.bf16.mxu0 0
        %2348 = vmatpush1.bf16.msra.mxu0 %v2048
        %2349 = vmatprep.subr.bf16.mxu0 0
        %2350 = vmatpush1.bf16.msra.mxu0 %v2049
        %2351 = vmatprep.subr.bf16.mxu0 0
        %2352 = vmatpush1.bf16.msra.mxu0 %v2050
        %2353 = vmatprep.subr.bf16.mxu0 0
        %2354 = vmatpush1.bf16.msra.mxu0 %v2051
        %2355 = vmatprep.subr.bf16.mxu0 0
        %2356 = vmatpush1.bf16.msra.mxu0 %v2052
        %2357 = vmatprep.subr.bf16.mxu0 0
        %2358 = vmatpush1.bf16.msra.mxu0 %v2053
        %2359 = vmatprep.subr.bf16.mxu0 0
        %2360 = vmatpush1.bf16.msra.mxu0 %v2054
        %2361 = vmatprep.subr.bf16.mxu0 0
        %2362 = vmatpush1.bf16.msra.mxu0 %v2055
        %2363 = vmatprep.mubr.bf16.mxu0 %v1531
        %2364 = vmatmul.mubr.bf16.gmra.mrb[0].mxu0 %v1530
        %v2365 = vpop.f32.mrb[0].mxu0
        %v2366 = vadd.f32 %v2301, %v2365
        %v2367 = vpop.f32.mrb[0].mxu0
        %v2368 = vpop.f32.mrb[0].mxu0
        %v2369 = vadd.f32 %v2304, %v2368
        %v2370 = vpop.f32.mrb[0].mxu0
        %2371 = vmatprep.mubr.bf16.mxu0 %v1540
        %2372 = vmatmul.mubr.bf16.gmra.mrb[0].mxu0 %v1539
        %v2373 = vpop.f32.mrb[0].mxu0
        %v2374 = vadd.f32 %v2309, %v2373
        %v2375 = vpop.f32.mrb[0].mxu0
        %v2376 = vpop.f32.mrb[0].mxu0
        %v2377 = vadd.f32 %v2312, %v2376
        %v2378 = vpop.f32.mrb[0].mxu0
        %2379 = vmatprep.mubr.bf16.mxu0 %v1549
        %2380 = vmatmul.mubr.bf16.gmra.mrb[0].mxu0 %v1548
        %v2381 = vpop.f32.mrb[0].mxu0
        %v2382 = vadd.f32 %v2317, %v2381
        %v2383 = vpop.f32.mrb[0].mxu0
        %v2384 = vpop.f32.mrb[0].mxu0
        %v2385 = vadd.f32 %v2320, %v2384
        %v2386 = vpop.f32.mrb[0].mxu0
        %2387 = vmatprep.mubr.bf16.mxu0 %v1558
        %2388 = vmatmul.mubr.bf16.gmra.mrb[0].mxu0 %v1557
        %v2389 = vpop.f32.mrb[0].mxu0
        %v2390 = vadd.f32 %v2325, %v2389
        %v2391 = vpop.f32.mrb[0].mxu0
        %v2392 = vpop.f32.mrb[0].mxu0
        %v2393 = vadd.f32 %v2328, %v2392
        %v2394 = vpop.f32.mrb[0].mxu0
        %2395 = vdwg.mxu0
        %2396 = vmatprep.subr.bf16.mxu0 0
        %2397 = vmatpush1.bf16.msra.mxu0 %v2056
        %2398 = vmatprep.subr.bf16.mxu0 0
        %2399 = vmatpush1.bf16.msra.mxu0 %v2057
        %2400 = vmatprep.subr.bf16.mxu0 0
        %2401 = vmatpush1.bf16.msra.mxu0 %v2058
        %2402 = vmatprep.subr.bf16.mxu0 0
        %2403 = vmatpush1.bf16.msra.mxu0 %v2059
        %2404 = vmatprep.subr.bf16.mxu0 0
        %2405 = vmatpush1.bf16.msra.mxu0 %v2060
        %2406 = vmatprep.subr.bf16.mxu0 0
        %2407 = vmatpush1.bf16.msra.mxu0 %v2061
        %2408 = vmatprep.subr.bf16.mxu0 0
        %2409 = vmatpush1.bf16.msra.mxu0 %v2062
        %2410 = vmatprep.subr.bf16.mxu0 0
        %2411 = vmatpush1.bf16.msra.mxu0 %v2063
        %2412 = vmatprep.subr.bf16.mxu0 0
        %2413 = vmatpush1.bf16.msra.mxu0 0
        %2414 = vmatprep.subr.bf16.mxu0 0
        %2415 = vmatpush1.bf16.msra.mxu0 0
        %2416 = vmatprep.subr.bf16.mxu0 0
        %2417 = vmatpush1.bf16.msra.mxu0 0
        %2418 = vmatprep.subr.bf16.mxu0 0
        %2419 = vmatpush1.bf16.msra.mxu0 0
        %2420 = vmatprep.subr.bf16.mxu0 0
        %2421 = vmatpush1.bf16.msra.mxu0 0
        %2422 = vmatprep.subr.bf16.mxu0 0
        %2423 = vmatpush1.bf16.msra.mxu0 0
        %2424 = vmatprep.subr.bf16.mxu0 0
        %2425 = vmatpush1.bf16.msra.mxu0 0
        %2426 = vmatprep.subr.bf16.mxu0 0
        %2427 = vmatpush1.bf16.msra.mxu0 0
        %2428 = vmatprep.mubr.bf16.mxu0 0
        %2429 = vmatmul.mubr.bf16.gmra.mrb[0].mxu0 %v1532
        %v2430 = vpop.f32.mrb[0].mxu0
        %v2431 = vadd.f32 %v2366, %v2430
        %v2432 = vpop.f32.mrb[0].mxu0
        %v2433 = vpop.f32.mrb[0].mxu0
        %v2434 = vadd.f32 %v2369, %v2433
        %v2435 = vpop.f32.mrb[0].mxu0
        %2436 = vmatprep.mubr.bf16.mxu0 0
        %2437 = vmatmul.mubr.bf16.gmra.mrb[0].mxu0 %v1541
        %v2438 = vpop.f32.mrb[0].mxu0
        %v2439 = vadd.f32 %v2374, %v2438
        %v2440 = vpop.f32.mrb[0].mxu0
        %v2441 = vpop.f32.mrb[0].mxu0
        %v2442 = vadd.f32 %v2377, %v2441
        %v2443 = vpop.f32.mrb[0].mxu0
        %2444 = vmatprep.mubr.bf16.mxu0 0
        %2445 = vmatmul.mubr.bf16.gmra.mrb[0].mxu0 %v1550
        %v2446 = vpop.f32.mrb[0].mxu0
        %v2447 = vadd.f32 %v2382, %v2446
        %v2448 = vpop.f32.mrb[0].mxu0
        %v2449 = vpop.f32.mrb[0].mxu0
        %v2450 = vadd.f32 %v2385, %v2449
        %v2451 = vpop.f32.mrb[0].mxu0
        %2452 = vmatprep.mubr.bf16.mxu0 0
        %2453 = vmatmul.mubr.bf16.gmra.mrb[0].mxu0 %v1559
        %v2454 = vpop.f32.mrb[0].mxu0
        %v2455 = vadd.f32 %v2390, %v2454
        %v2456 = vpop.f32.mrb[0].mxu0
        %v2457 = vpop.f32.mrb[0].mxu0
        %v2458 = vadd.f32 %v2393, %v2457
        %v2459 = vpop.f32.mrb[0].mxu0
        %2460 = vdwg.mxu0
        %v2461 = vpack.c.bf16 %v2434, %v2431
        %v2462 = vpack.c.bf16 %v2442, %v2439
        %v2463 = vpack.c.bf16 %v2450, %v2447
        %v2464 = vpack.c.bf16 %v2458, %v2455
        %v2469 = vunpack.c.l.b16 %v2461
        %v2470 = vunpack.c.h.b16 %v2461
        %v2471 = vunpack.c.l.b16 %v2462
        %v2472 = vunpack.c.h.b16 %v2462
        %v2473 = vunpack.c.l.b16 %v2463
        %v2474 = vunpack.c.h.b16 %v2463
        %v2475 = vunpack.c.l.b16 %v2464
        %v2476 = vunpack.c.h.b16 %v2464
        %v2477 = vpack.c.b16 %v2469, %v2469
        %v2478 = vpack.c.b16 %v2470, %v2470
        %v2479 = vpack.c.b16 %v2471, %v2471
        %v2480 = vpack.c.b16 %v2472, %v2472
        %v2481 = vpack.c.b16 %v2473, %v2473
        %v2482 = vpack.c.b16 %v2474, %v2474
        %v2483 = vpack.c.b16 %v2475, %v2475
        %v2484 = vpack.c.b16 %v2476, %v2476
        %2493 = vst [vmem:[%s446] sm:$0xf] %v2477
        %2494 = vst [vmem:[%s446 + $0x4] sm:$0xf] %v2478
        %2495 = vst [vmem:[%s446 + $0x8] sm:$0xf] %v2479
        %2496 = vst [vmem:[%s446 + $0xc] sm:$0xf] %v2480
        %2497 = vst [vmem:[%s446 + $0x10] sm:$0xf] %v2481
        %2498 = vst [vmem:[%s446 + $0x14] sm:$0xf] %v2482
        %2499 = vst [vmem:[%s446 + $0x18] sm:$0xf] %v2483
        %2500 = vst [vmem:[%s446 + $0x1c] sm:$0xf] %v2484
        %v2501 = vadd.f32 %v2431, %v2434
        %v2502 = vadd.f32 %v2501, %v2439
        %v2503 = vadd.f32 %v2502, %v2442
        %v2504 = vadd.f32 %v2503, %v2447
        %v2505 = vadd.f32 %v2504, %v2450
        %v2506 = vadd.f32 %v2505, %v2455
        %v2507 = vadd.f32 %v2506, %v2458
        %v2508 = vrot.slane %v2507, 4
        %v2509 = vadd.f32 %v2507, %v2508
        %v2510 = vrot.slane %v2509, 2
        %v2511 = vadd.f32 %v2509, %v2510
        %v2512 = vrot.slane %v2511, 1
        %v2513 = vadd.f32 %v2511, %v2512
        %2514 = vst [vmem:[%s453] sm:$0x1] %v2513
        %v2515 = vmul.f32 %v2431, %v2431
        %v2516 = vmul.f32 %v2434, %v2434
        %v2517 = vmul.f32 %v2439, %v2439
        %v2518 = vmul.f32 %v2442, %v2442
        %v2519 = vmul.f32 %v2447, %v2447
        %v2520 = vmul.f32 %v2450, %v2450
        %v2521 = vmul.f32 %v2455, %v2455
        %v2522 = vmul.f32 %v2458, %v2458
        %v2523 = vadd.f32 %v2515, %v2516
        %v2524 = vadd.f32 %v2523, %v2517
        %v2525 = vadd.f32 %v2524, %v2518
        %v2526 = vadd.f32 %v2525, %v2519
        %v2527 = vadd.f32 %v2526, %v2520
        %v2528 = vadd.f32 %v2527, %v2521
        %v2529 = vadd.f32 %v2528, %v2522
        %v2530 = vrot.slane %v2529, 4
        %v2531 = vadd.f32 %v2529, %v2530
        %v2532 = vrot.slane %v2531, 2
        %v2533 = vadd.f32 %v2531, %v2532
        %v2534 = vrot.slane %v2533, 1
        %v2535 = vadd.f32 %v2533, %v2534
        %2536 = vst [vmem:[%s453 + $0x1] sm:$0x1] %v2535
        %v2537 = vld [vmem:[%s409] sm:$0xf]
        %v2538 = vld [vmem:[%s409 + $0x4] sm:$0xf]
        %v2539 = vld [vmem:[%s409 + $0x8] sm:$0xf]
        %v2540 = vld [vmem:[%s409 + $0xc] sm:$0xf]
        %v2541 = vld [vmem:[%s409 + $0x10] sm:$0xf]
        %v2542 = vld [vmem:[%s409 + $0x14] sm:$0xf]
        %v2543 = vld [vmem:[%s409 + $0x18] sm:$0xf]
        %v2544 = vld [vmem:[%s409 + $0x1c] sm:$0xf]
        %v2545 = vld [vmem:[#allocation13] sm:$0xf]
        %v2554 = vunpack.c.l.b16 %v2537
        %v2555 = vunpack.c.l.b16 %v2538
        %v2556 = vunpack.c.l.b16 %v2539
        %v2557 = vunpack.c.l.b16 %v2540
        %v2558 = vunpack.c.l.b16 %v2541
        %v2559 = vunpack.c.l.b16 %v2542
        %v2560 = vunpack.c.l.b16 %v2543
        %v2561 = vunpack.c.l.b16 %v2544
        %v2562 = vpack.c.b16 %v2555, %v2554
        %v2563 = vpack.c.b16 %v2557, %v2556
        %v2564 = vpack.c.b16 %v2559, %v2558
        %v2565 = vpack.c.b16 %v2561, %v2560
        %vm2566 = vcmask 64512
        %v2568 = vsel %vm2566, %v2562, 0
        %v2571 = vsel %vm2566, %v2563, 0
        %v2574 = vsel %vm2566, %v2564, 0
        %v2577 = vsel %vm2566, %v2565, 0
        %vm2579 = vcmask 1043456
        %v2581 = vsel %vm2579, %v2545, 0
        %2583 = vmatprep.subr.bf16.mxu0 0
        %2584 = vmatpush1.bf16.msra.mxu0 %v2581
        %2585 = vmatprep.subr.bf16.mxu0 0
        %2586 = vmatpush1.bf16.msra.mxu0 0
        %2587 = vmatprep.subr.bf16.mxu0 0
        %2588 = vmatpush1.bf16.msra.mxu0 0
        %2589 = vmatprep.subr.bf16.mxu0 0
        %2590 = vmatpush1.bf16.msra.mxu0 0
        %2591 = vmatprep.subr.bf16.mxu0 0
        %2592 = vmatpush1.bf16.msra.mxu0 0
        %2593 = vmatprep.subr.bf16.mxu0 0
        %2594 = vmatpush1.bf16.msra.mxu0 0
        %2595 = vmatprep.subr.bf16.mxu0 0
        %2596 = vmatpush1.bf16.msra.mxu0 0
        %2597 = vmatprep.subr.bf16.mxu0 0
        %2598 = vmatpush1.bf16.msra.mxu0 0
        %2599 = vmatprep.subr.bf16.mxu0 0
        %2600 = vmatpush1.bf16.msra.mxu0 0
        %2601 = vmatprep.subr.bf16.mxu0 0
        %2602 = vmatpush1.bf16.msra.mxu0 0
        %2603 = vmatprep.subr.bf16.mxu0 0
        %2604 = vmatpush1.bf16.msra.mxu0 0
        %2605 = vmatprep.subr.bf16.mxu0 0
        %2606 = vmatpush1.bf16.msra.mxu0 0
        %2607 = vmatprep.subr.bf16.mxu0 0
        %2608 = vmatpush1.bf16.msra.mxu0 0
        %2609 = vmatprep.subr.bf16.mxu0 0
        %2610 = vmatpush1.bf16.msra.mxu0 0
        %2611 = vmatprep.subr.bf16.mxu0 0
        %2612 = vmatpush1.bf16.msra.mxu0 0
        %2613 = vmatprep.subr.bf16.mxu0 0
        %2614 = vmatpush1.bf16.msra.mxu0 0
        %2615 = vmatprep.mubr.bf16.mxu0 0
        %2616 = vmatmul.mubr.bf16.gmra.mrb[0].mxu0 %v2568
        %v2617 = vpop.f32.mrb[0].mxu0
        %v2618 = vadd.f32 0.0, %v2617
        %v2619 = vpop.f32.mrb[0].mxu0
        %v2620 = vpop.f32.mrb[0].mxu0
        %v2621 = vadd.f32 0.0, %v2620
        %v2622 = vpop.f32.mrb[0].mxu0
        %2623 = vmatprep.mubr.bf16.mxu0 0
        %2624 = vmatmul.mubr.bf16.gmra.mrb[0].mxu0 %v2571
        %v2625 = vpop.f32.mrb[0].mxu0
        %v2626 = vadd.f32 0.0, %v2625
        %v2627 = vpop.f32.mrb[0].mxu0
        %v2628 = vpop.f32.mrb[0].mxu0
        %v2629 = vadd.f32 0.0, %v2628
        %v2630 = vpop.f32.mrb[0].mxu0
        %2631 = vmatprep.mubr.bf16.mxu0 0
        %2632 = vmatmul.mubr.bf16.gmra.mrb[0].mxu0 %v2574
        %v2633 = vpop.f32.mrb[0].mxu0
        %v2634 = vadd.f32 0.0, %v2633
        %v2635 = vpop.f32.mrb[0].mxu0
        %v2636 = vpop.f32.mrb[0].mxu0
        %v2637 = vadd.f32 0.0, %v2636
        %v2638 = vpop.f32.mrb[0].mxu0
        %2639 = vmatprep.mubr.bf16.mxu0 0
        %2640 = vmatmul.mubr.bf16.gmra.mrb[0].mxu0 %v2577
        %v2641 = vpop.f32.mrb[0].mxu0
        %v2642 = vadd.f32 0.0, %v2641
        %v2643 = vpop.f32.mrb[0].mxu0
        %v2644 = vpop.f32.mrb[0].mxu0
        %v2645 = vadd.f32 0.0, %v2644
        %v2646 = vpop.f32.mrb[0].mxu0
        %2647 = vdwg.mxu0
        %v2648 = vpack.c.bf16 %v2621, %v2618
        %v2649 = vpack.c.bf16 %v2629, %v2626
        %v2650 = vpack.c.bf16 %v2637, %v2634
        %v2651 = vpack.c.bf16 %v2645, %v2642
        %v2656 = vunpack.c.l.b16 %v2648
        %v2657 = vunpack.c.h.b16 %v2648
        %v2658 = vunpack.c.l.b16 %v2649
        %v2659 = vunpack.c.h.b16 %v2649
        %v2660 = vunpack.c.l.b16 %v2650
        %v2661 = vunpack.c.h.b16 %v2650
        %v2662 = vunpack.c.l.b16 %v2651
        %v2663 = vunpack.c.h.b16 %v2651
        %v2664 = vpack.c.b16 %v2656, %v2656
        %v2665 = vpack.c.b16 %v2657, %v2657
        %v2666 = vpack.c.b16 %v2658, %v2658
        %v2667 = vpack.c.b16 %v2659, %v2659
        %v2668 = vpack.c.b16 %v2660, %v2660
        %v2669 = vpack.c.b16 %v2661, %v2661
        %v2670 = vpack.c.b16 %v2662, %v2662
        %v2671 = vpack.c.b16 %v2663, %v2663
        %2680 = vst [vmem:[%s460] sm:$0xf] %v2664
        %2681 = vst [vmem:[%s460 + $0x4] sm:$0xf] %v2665
        %2682 = vst [vmem:[%s460 + $0x8] sm:$0xf] %v2666
        %2683 = vst [vmem:[%s460 + $0xc] sm:$0xf] %v2667
        %2684 = vst [vmem:[%s460 + $0x10] sm:$0xf] %v2668
        %2685 = vst [vmem:[%s460 + $0x14] sm:$0xf] %v2669
        %2686 = vst [vmem:[%s460 + $0x18] sm:$0xf] %v2670
        %2687 = vst [vmem:[%s460 + $0x1c] sm:$0xf] %v2671
        %v2688 = vadd.f32 %v2618, %v2621
        %v2689 = vadd.f32 %v2688, %v2626
        %v2690 = vadd.f32 %v2689, %v2629
        %v2691 = vadd.f32 %v2690, %v2634
        %v2692 = vadd.f32 %v2691, %v2637
        %v2693 = vadd.f32 %v2692, %v2642
        %v2694 = vadd.f32 %v2693, %v2645
        %v2695 = vrot.slane %v2694, 4
        %v2696 = vadd.f32 %v2694, %v2695
        %v2697 = vrot.slane %v2696, 2
        %v2698 = vadd.f32 %v2696, %v2697
        %v2699 = vrot.slane %v2698, 1
        %v2700 = vadd.f32 %v2698, %v2699
        %2701 = vst [vmem:[%s467] sm:$0x1] %v2700
        %v2702 = vmul.f32 %v2618, %v2618
        %v2703 = vmul.f32 %v2621, %v2621
        %v2704 = vmul.f32 %v2626, %v2626
        %v2705 = vmul.f32 %v2629, %v2629
        %v2706 = vmul.f32 %v2634, %v2634
        %v2707 = vmul.f32 %v2637, %v2637
        %v2708 = vmul.f32 %v2642, %v2642
        %v2709 = vmul.f32 %v2645, %v2645
        %v2710 = vadd.f32 %v2702, %v2703
        %v2711 = vadd.f32 %v2710, %v2704
        %v2712 = vadd.f32 %v2711, %v2705
        %v2713 = vadd.f32 %v2712, %v2706
        %v2714 = vadd.f32 %v2713, %v2707
        %v2715 = vadd.f32 %v2714, %v2708
        %v2716 = vadd.f32 %v2715, %v2709
        %v2717 = vrot.slane %v2716, 4
        %v2718 = vadd.f32 %v2716, %v2717
        %v2719 = vrot.slane %v2718, 2
        %v2720 = vadd.f32 %v2718, %v2719
        %v2721 = vrot.slane %v2720, 1
        %v2722 = vadd.f32 %v2720, %v2721
        %2723 = vst [vmem:[%s467 + $0x1] sm:$0x1] %v2722
        %s2724 = sand.u32 %s179, 1
        %s2725 = scalar_lea.sflag [#allocation6], %s2724
        %s2726 = sand.u32 %s179, 1
        %s2727 = smul.addr %s2726, 32
        %s2728 = scalar_lea.vmem [#allocation14], %s2727
        %s2729 = sand.u32 %s35, 1
        %s2730 = scalar_lea.sflag [#allocation16], %s2729
        %s2731 = sand.u32 %s205, 1
        %s2732 = smul.addr %s2731, 2
        %s2733 = scalar_lea.vmem [#allocation15], %s2732
        %s2734 = sand.u32 %s35, 1
        %s2735 = scalar_lea.sflag [#allocation16], %s2734
        %s2736 = sand.u32 %s231, 1
        %s2737 = smul.addr %s2736, 32
        %s2738 = scalar_lea.vmem [#allocation17], %s2737
        %s2739 = sand.u32 %s257, 1
        %s2740 = scalar_lea.sflag [#allocation19], %s2739
        %s2741 = sand.u32 %s257, 1
        %s2742 = smul.addr %s2741, 2
        %s2743 = scalar_lea.vmem [#allocation18], %s2742
        // Predicated region
        $region69: #{basic_block_forward.4} parent=43 // pred_check
          %p2744 = pneg %p189
        $region70: #{basic_block_forward.4} parent=43 // pred_check_branch
          %2746 = sbr.rel (%p2744) target = $region72
        $region71: #{basic_block_forward.4} parent=43 // pred_region
          %s2747 = smul.u32 8, %s35
          %s2749 = ssub.s32 512, 512
          %2750 = vsyncadd %s2725, %s2749
          %s2751 = smul.addr %s2747, 64
          %s2752 = scalar_lea.hbm %s6, %s2751
          %s2753 = sshll.u32 %s2728, 4
          %s2754 = int_to_ptr.vmem [resolvable:$true] %s2753
          %2759 = dma.vmem_to_hbm [thread:$0]  %s2754, 512, %s2752, %s2725, 64, 64, 4
        $region72: #{basic_block_forward.4} parent=43 // pred_fallthru
          _
        // Predicated region
        $region73: #{basic_block_forward.4} parent=43 // pred_check
          %p2760 = pneg %p215
        $region74: #{basic_block_forward.4} parent=43 // pred_check_branch
          %2762 = sbr.rel (%p2760) target = $region76
        $region75: #{basic_block_forward.4} parent=43 // pred_region
          %s2764 = ssub.s32 32, 32
          %2765 = vsyncadd %s2730, %s2764
          %s2766 = smul.addr %s35, 32
          %s2767 = scalar_lea.hbm %s7, %s2766
          %s2769 = sshll.u32 %s2733, 4
          %s2770 = int_to_ptr.vmem [resolvable:$true] %s2769
          %2772 = dma.vmem_to_hbm [thread:$0]  %s2770, 32, %s2767, %s2730
        $region76: #{basic_block_forward.4} parent=43 // pred_fallthru
          _
        // Predicated region
        $region77: #{basic_block_forward.4} parent=43 // pred_check
          %p2773 = pneg %p241
        $region78: #{basic_block_forward.4} parent=43 // pred_check_branch
          %2775 = sbr.rel (%p2773) target = $region80
        $region79: #{basic_block_forward.4} parent=43 // pred_region
          %s2776 = smul.u32 8, %s35
          %s2778 = ssub.s32 512, 512
          %2779 = vsyncadd %s2735, %s2778
          %s2780 = smul.addr %s2776, 64
          %s2781 = scalar_lea.hbm %s8, %s2780
          %s2782 = sshll.u32 %s2738, 4
          %s2783 = int_to_ptr.vmem [resolvable:$true] %s2782
          %2788 = dma.vmem_to_hbm [thread:$0]  %s2783, 512, %s2781, %s2735, 64, 64, 4
        $region80: #{basic_block_forward.4} parent=43 // pred_fallthru
          _
        // Predicated region
        $region81: #{basic_block_forward.4} parent=43 // pred_check
          %p2789 = pneg %p267
        $region82: #{basic_block_forward.4} parent=43 // pred_check_branch
          %2791 = sbr.rel (%p2789) target = $region84
        $region83: #{basic_block_forward.4} parent=43 // pred_region
          %s2793 = ssub.s32 32, 32
          %2794 = vsyncadd %s2740, %s2793
          %s2795 = smul.addr %s35, 32
          %s2796 = scalar_lea.hbm %s9, %s2795
          %s2798 = sshll.u32 %s2743, 4
          %s2799 = int_to_ptr.vmem [resolvable:$true] %s2798
          %2801 = dma.vmem_to_hbm [thread:$0]  %s2799, 32, %s2796, %s2740
        $region84: #{basic_block_forward.4} parent=43 // pred_fallthru
          _
      $region44: #{basic_block_forward.4} parent=5 // pred_fallthru
        _
      %p2802 = scmp.le.s32.totalorder 2, %s30
      // Predicated region
      $region85: #{basic_block_forward.4} parent=5 // pred_check
        %p2803 = pneg %p2802
      $region86: #{basic_block_forward.4} parent=5 // pred_check_branch
        %2805 = sbr.rel (%p2803) target = $region88
      $region87: #{basic_block_forward.4} parent=5 // pred_region
        %s2806 = ssub.s32 %s30, 2
        // Predicated region
        $region89: #{basic_block_forward.4} parent=87 // pred_check
          %p2807 = pneg %p195
        $region90: #{basic_block_forward.4} parent=87 // pred_check_branch
          %2809 = sbr.rel (%p2807) target = $region92
        $region91: #{basic_block_forward.4} parent=87 // pred_region
          %s2810 = sand.u32 %s180, 1
          %s2811 = scalar_lea.sflag [#allocation6], %s2810
          %s2812 = sand.u32 %s180, 1
          %s2813 = smul.addr %s2812, 32
          %s2814 = scalar_lea.vmem [#allocation14], %s2813
          %2815 = dma.done %s2811, 512
        $region92: #{basic_block_forward.4} parent=87 // pred_fallthru
          _
        // Predicated region
        $region93: #{basic_block_forward.4} parent=87 // pred_check
          %p2816 = pneg %p221
        $region94: #{basic_block_forward.4} parent=87 // pred_check_branch
          %2818 = sbr.rel (%p2816) target = $region96
        $region95: #{basic_block_forward.4} parent=87 // pred_region
          %s2819 = sand.u32 %s36, 1
          %s2820 = scalar_lea.sflag [#allocation16], %s2819
          %s2821 = sand.u32 %s206, 1
          %s2822 = smul.addr %s2821, 2
          %s2823 = scalar_lea.vmem [#allocation15], %s2822
          %2824 = dma.done %s2820, 32
        $region96: #{basic_block_forward.4} parent=87 // pred_fallthru
          _
        // Predicated region
        $region97: #{basic_block_forward.4} parent=87 // pred_check
          %p2825 = pneg %p247
        $region98: #{basic_block_forward.4} parent=87 // pred_check_branch
          %2827 = sbr.rel (%p2825) target = $region100
        $region99: #{basic_block_forward.4} parent=87 // pred_region
          %s2828 = sand.u32 %s36, 1
          %s2829 = scalar_lea.sflag [#allocation16], %s2828
          %s2830 = sand.u32 %s232, 1
          %s2831 = smul.addr %s2830, 32
          %s2832 = scalar_lea.vmem [#allocation17], %s2831
          %2833 = dma.done %s2829, 512
        $region100: #{basic_block_forward.4} parent=87 // pred_fallthru
          _
        // Predicated region
        $region101: #{basic_block_forward.4} parent=87 // pred_check
          %p2834 = pneg %p273
        $region102: #{basic_block_forward.4} parent=87 // pred_check_branch
          %2836 = sbr.rel (%p2834) target = $region104
        $region103: #{basic_block_forward.4} parent=87 // pred_region
          %s2837 = sand.u32 %s258, 1
          %s2838 = scalar_lea.sflag [#allocation19], %s2837
          %s2839 = sand.u32 %s258, 1
          %s2840 = smul.addr %s2839, 2
          %s2841 = scalar_lea.vmem [#allocation18], %s2840
          %2842 = dma.done %s2838, 32
        $region104: #{basic_block_forward.4} parent=87 // pred_fallthru
          _
      $region88: #{basic_block_forward.4} parent=5 // pred_fallthru
        _
    $region6: #{basic_block_forward.4} parent=1 // loop_footer
      %s34 = sadd.s32 1, %s30
    $region7: #{basic_block_forward.4} parent=1 // loop_footer_branch
      %29 = sbr.rel target = $region3
    $region8: #{basic_block_forward.4} parent=1 // loop_exit
      _
    %2843 = vsyncpa [#allocation5], 1
    %s2844 = scalar_lea.sflag [#allocation5], 1
    %2845 = vsyncpa %s2844, 1
    %2846 = vsyncpa [#allocation8], 1
    %2847 = vsyncpa [#allocation11], 1
    %2848 = vsyncpa [#allocation6], 1
    %s2849 = scalar_lea.sflag [#allocation6], 1
    %2850 = vsyncpa %s2849, 1
    %2851 = vsyncpa [#allocation16], 1
    %s2852 = scalar_lea.sflag [#allocation16], 1
    %2853 = vsyncpa %s2852, 1
    %2854 = vsyncpa [#allocation19], 1
    %s2855 = scalar_lea.sflag [#allocation19], 1
    %2856 = vsyncpa %s2855, 1

</llo_original>
